<compile_context>
chip_gen: v6e
topology: v6e:2x2x1
jax: 0.10.0
libtpu: 0.0.40
codegen_flags: <defaults>
</compile_context>

<pallas_src>
import jax
import jax.numpy as jnp
from jax.experimental import pallas as pl
from jax.experimental.pallas import tpu as pltpu


MXU_DTYPE = jnp.bfloat16   # MXU operand dtype; accumulation/epilogue stay f32


# ----------------------------------------------------------------------------
# Pallas kernels
# ----------------------------------------------------------------------------
def _conv_relu_maxpool_kernel(p_ref, w_ref, b_ref, o_ref):
    """Fused Conv3x3 (im2col GEMM) + bias + ReLU + 2x2/stride-2 max-pool.

    p_ref : (4, tile_m, K)   im2col patches, one slab per pool-window position
    w_ref : (K, Cout)        conv weights as a K x Cout matrix (bf16)
    b_ref : (1, Cout)        bias (f32)
    o_ref : (tile_m, Cout)   pooled output rows (f32)
    """
    w = w_ref[...]
    y = jnp.dot(p_ref[0], w, preferred_element_type=jnp.float32)
    for j in range(1, 4):                                   # static unroll
        y = jnp.maximum(y, jnp.dot(p_ref[j], w,
                                   preferred_element_type=jnp.float32))
    # maxpool(relu(conv + b)) == relu(max_j(conv_j) + b); epilogue in f32.
    o_ref[...] = jnp.maximum(y + b_ref[...], 0.0).astype(o_ref.dtype)


def _classifier_kernel(x_ref, w1_ref, b1_ref, w2_ref, b2_ref, w3_ref, b3_ref,
                       o_ref):
    """Fused classifier: (avgpool+flatten folded into w1) -> fc1+ReLU ->
    fc2+ReLU -> fc3.  All weights VMEM-resident; intermediates never hit HBM."""
    h = jnp.dot(x_ref[...], w1_ref[...], preferred_element_type=jnp.float32)
    h = jnp.maximum(h + b1_ref[...], 0.0)
    h = jnp.dot(h.astype(w2_ref.dtype), w2_ref[...],
                preferred_element_type=jnp.float32)
    h = jnp.maximum(h + b2_ref[...], 0.0)
    h = jnp.dot(h.astype(w3_ref.dtype), w3_ref[...],
                preferred_element_type=jnp.float32)
    o_ref[...] = (h + b3_ref[...]).astype(o_ref.dtype)


# ----------------------------------------------------------------------------
# Wrappers (glue: im2col patch extraction stays in XLA — pure rearrangement)
# ----------------------------------------------------------------------------
def _pick_row_tile(m, cap=1024):
    """Largest row tile <= cap (multiple of 32) dividing m, else full array."""
    if m <= cap:
        return m
    t = (cap // 32) * 32
    while t >= 32:
        if m % t == 0:
            return t
        t -= 32
    return m


def _im2col_pool_patches(x_nhwc, dtype):
    """(N,H,W,Cin) -> (4, N*(H//2)*(W//2), 9*Cin) patches.

    Axis 0 indexes the 2x2 max-pool window position (py,px); each row holds
    the 3x3xCin receptive field (padding=1) of the corresponding conv output
    pixel, K-ordered as (dy, dx, cin) to match the prepared weight matrix.
    """
    N, H, W, Cin = x_nhwc.shape
    OH, OW = H // 2, W // 2
    xp = jnp.pad(x_nhwc, ((0, 0), (1, 1), (1, 1), (0, 0)))
    groups = []
    for py in range(2):
        for px in range(2):
            taps = []
            for dy in range(3):
                for dx in range(3):
                    s, t = py + dy, px + dx
                    tap = xp[:, s:s + 2 * OH:2, t:t + 2 * OW:2, :]
                    taps.append(tap.reshape(N * OH * OW, Cin))
            groups.append(jnp.concatenate(taps, axis=-1))    # (M, 9*Cin)
    return jnp.stack(groups, axis=0).astype(dtype)           # (4, M, 9*Cin)


def conv3x3_relu_maxpool2(x_nhwc, w_mat, b_row):
    """Conv2d(3x3, stride 1, pad 1) + ReLU + MaxPool2d(2) in one pallas_call."""
    N, H, W, _ = x_nhwc.shape
    assert H % 2 == 0 and W % 2 == 0, "2x2 max-pool needs even spatial dims"
    OH, OW = H // 2, W // 2
    K, Cout = w_mat.shape
    M = N * OH * OW
    patches = _im2col_pool_patches(x_nhwc, w_mat.dtype)       # (4, M, K) bf16
    tile_m = _pick_row_tile(M)

    out = pl.pallas_call(
        _conv_relu_maxpool_kernel,
        out_shape=jax.ShapeDtypeStruct((M, Cout), jnp.float32),
        grid_spec=pltpu.PrefetchScalarGridSpec(
            num_scalar_prefetch=0,
            grid=(M // tile_m,),
            in_specs=[
                pl.BlockSpec((4, tile_m, K), lambda i: (0, i, 0)),
                pl.BlockSpec((K, Cout), lambda i: (0, 0)),
                pl.BlockSpec((1, Cout), lambda i: (0, 0)),
            ],
            out_specs=pl.BlockSpec((tile_m, Cout), lambda i: (i, 0)),
        ),
        # Row tiles are independent -> "parallel" lets v7x use both TensorCores.
        compiler_params=pltpu.CompilerParams(
            dimension_semantics=("parallel",)),
    )(patches, w_mat, b_row)
    return out.reshape(N, OH, OW, Cout)


def classifier(x_flat, p):
    """Fused avgpool/flatten-absorbed 3-layer MLP (single pallas_call)."""
    N = x_flat.shape[0]
    num_classes = p["fc3_b"].shape[1]
    return pl.pallas_call(
        _classifier_kernel,
        out_shape=jax.ShapeDtypeStruct((N, num_classes), jnp.float32),
    )(x_flat.astype(p["fc1_w"].dtype),
      p["fc1_w"], p["fc1_b"], p["fc2_w"], p["fc2_b"], p["fc3_w"], p["fc3_b"])


# ----------------------------------------------------------------------------
# Full VGG forward
# ----------------------------------------------------------------------------
def vgg_forward(p, x_nchw):
    x = jnp.transpose(x_nchw, (0, 2, 3, 1))                    # NCHW -> NHWC
    x = conv3x3_relu_maxpool2(x, p["conv1_w"], p["conv1_b"])   # (N, 8, 8, 16)
    x = conv3x3_relu_maxpool2(x, p["conv2_w"], p["conv2_b"])   # (N, 4, 4, 32)
    # AdaptiveAvgPool2d((2,2)) + torch.flatten (channel-major) are folded into
    # fc1_w at prep time, so feed the NHWC-flattened map directly (free reshape).
    x = x.reshape(x.shape[0], -1)                              # (N, 512)
    return classifier(x, p)                                    # (N, 10)


# ----------------------------------------------------------------------------
# Parameters: PyTorch-convention init + one-time kernel-layout preparation
# ----------------------------------------------------------------------------
def init_params(key):
    """PyTorch-convention parameters (Conv2d OIHW, Linear (out, in))."""
    ks = jax.random.split(key, 10)

    def rnd(k, shape, fan_in):
        return (jax.random.normal(k, shape, jnp.float32)
                / jnp.sqrt(jnp.float32(fan_in)))

    return {
        "conv1_w": rnd(ks[0], (16, 3, 3, 3), 3 * 9),
        "conv1_b": rnd(ks[1], (16,), 16),
        "conv2_w": rnd(ks[2], (32, 16, 3, 3), 16 * 9),
        "conv2_b": rnd(ks[3], (32,), 32),
        "fc1_w":   rnd(ks[4], (1024, 32 * 2 * 2), 128),
        "fc1_b":   rnd(ks[5], (1024,), 1024),
        "fc2_w":   rnd(ks[6], (256, 1024), 1024),
        "fc2_b":   rnd(ks[7], (256,), 256),
        "fc3_w":   rnd(ks[8], (10, 256), 256),
        "fc3_b":   rnd(ks[9], (10,), 10),
    }


def _fold_avgpool_flatten_into_fc1(fc1_w, c_last, hf, wf):
    """Return (hf*wf*c_last, 1024) matrix acting on the NHWC-flat feature map.

    AdaptiveAvgPool2d((2,2)) on an even hf x wf map equals an average pool
    with kernel (hf//2, wf//2); being linear, it — plus the NCHW channel-major
    flatten — folds exactly into fc1's input columns. Numerically identical.
    """
    assert hf % 2 == 0 and wf % 2 == 0, "fold assumes even pre-avgpool dims"
    ph, pw = hf // 2, wf // 2
    hh, ww, cc = jnp.meshgrid(jnp.arange(hf), jnp.arange(wf),
                              jnp.arange(c_last), indexing="ij")
    cols = cc * 4 + (hh // ph) * 2 + (ww // pw)       # torch-flatten column id
    w = jnp.take(fc1_w, cols.reshape(-1), axis=1) / float(ph * pw)
    return jnp.transpose(w)                           # (hf*wf*c_last, 1024)


def prepare_params(params, input_hw=16, mxu_dtype=MXU_DTYPE):
    """One-time layout prep (runs eagerly, outside jit): no per-forward
    transposes, flatten permutation absorbed, GEMM weights cast to bf16."""
    def conv_mat(w_oihw):
        co, ci, kh, kw = w_oihw.shape
        # Row index = (dy*KW + dx)*Cin + cin — matches im2col tap ordering.
        return jnp.transpose(w_oihw, (2, 3, 1, 0)).reshape(
            kh * kw * ci, co).astype(mxu_dtype)

    c_last = params["conv2_w"].shape[0]
    hf = wf = input_hw // 4            # two stride-2 max-pools before avgpool
    return {
        "conv1_w": conv_mat(params["conv1_w"]),
        "conv1_b": params["conv1_b"].reshape(1, -1).astype(jnp.float32),
        "conv2_w": conv_mat(params["conv2_w"]),
        "conv2_b": params["conv2_b"].reshape(1, -1).astype(jnp.float32),
        "fc1_w": _fold_avgpool_flatten_into_fc1(
            params["fc1_w"], c_last, hf, wf).astype(mxu_dtype),
        "fc1_b": params["fc1_b"].reshape(1, -1).astype(jnp.float32),
        "fc2_w": jnp.transpose(params["fc2_w"]).astype(mxu_dtype),
        "fc2_b": params["fc2_b"].reshape(1, -1).astype(jnp.float32),
        "fc3_w": jnp.transpose(params["fc3_w"]).astype(mxu_dtype),
        "fc3_b": params["fc3_b"].reshape(1, -1).astype(jnp.float32),
    }


if __name__ == "__main__":
    key = jax.random.PRNGKey(0)
    pkey, xkey = jax.random.split(key)
    params = prepare_params(init_params(pkey))

    # PyTorch-convention NCHW input: batch=2, channels=3, 16x16 spatial.
    x = jax.random.normal(xkey, (2, 3, 16, 16), jnp.float32)

    out = jax.jit(vgg_forward)(params, x)
    out = jax.block_until_ready(out)

    assert out.shape == (2, 10), out.shape
    assert out.dtype == jnp.float32
    print("KERNEL_OK")
</pallas_src>

<mosaic_0001>
module attributes {stable_mosaic.version = 11 : i64} {
  func.func @_conv_relu_maxpool_kernel(%arg0: i32, %arg1: memref<4x128x27xbf16, #tpu.memory_space<vmem>>, %arg2: memref<27x16xbf16, #tpu.memory_space<vmem>>, %arg3: memref<1x16xf32, #tpu.memory_space<vmem>>, %arg4: memref<128x16xf32, #tpu.memory_space<vmem>>) attributes {dimension_semantics = [#tpu.dimension_semantics<parallel>], iteration_bounds = array<i64: 1>, scalar_prefetch = 0 : i64, scratch_operands = 0 : i64, tpu.core_type = #tpu.core_type<tc>, window_params = [{transform_indices = @transform_0, window_bounds = array<i64: 4, 128, 27>}, {pipeline_mode = #tpu.pipeline_mode<synchronous>, transform_indices = @transform_1, window_bounds = array<i64: 27, 16>}, {pipeline_mode = #tpu.pipeline_mode<synchronous>, transform_indices = @transform_2, window_bounds = array<i64: 1, 16>}, {transform_indices = @transform_3, window_bounds = array<i64: 128, 16>}]} {
    %c0 = arith.constant 0 : index
    %c0_0 = arith.constant 0 : index
    %0 = vector.load %arg2[%c0, %c0_0] : memref<27x16xbf16, #tpu.memory_space<vmem>>, vector<27x16xbf16>
    %c0_1 = arith.constant 0 : index
    %c0_2 = arith.constant 0 : index
    %c0_3 = arith.constant 0 : index
    %1 = vector.load %arg1[%c0_1, %c0_2, %c0_3] : memref<4x128x27xbf16, #tpu.memory_space<vmem>>, vector<1x128x27xbf16>
    %2 = vector.shape_cast %1 : vector<1x128x27xbf16> to vector<128x27xbf16>
    %cst = arith.constant dense<0.000000e+00> : vector<128x16xf32>
    %3 = tpu.matmul %2, %0, %cst {dimension_numbers = #tpu.dot_dimension_numbers<[1], [0], [0], [1], [0, 0, 1, 1], [], []>} : vector<128x27xbf16>, vector<27x16xbf16>, vector<128x16xf32> -> vector<128x16xf32>
    %c1 = arith.constant 1 : index
    %c0_4 = arith.constant 0 : index
    %c0_5 = arith.constant 0 : index
    %4 = vector.load %arg1[%c1, %c0_4, %c0_5] : memref<4x128x27xbf16, #tpu.memory_space<vmem>>, vector<1x128x27xbf16>
    %5 = vector.shape_cast %4 : vector<1x128x27xbf16> to vector<128x27xbf16>
    %cst_6 = arith.constant dense<0.000000e+00> : vector<128x16xf32>
    %6 = tpu.matmul %5, %0, %cst_6 {dimension_numbers = #tpu.dot_dimension_numbers<[1], [0], [0], [1], [0, 0, 1, 1], [], []>} : vector<128x27xbf16>, vector<27x16xbf16>, vector<128x16xf32> -> vector<128x16xf32>
    %7 = arith.maximumf %3, %6 : vector<128x16xf32>
    %c2 = arith.constant 2 : index
    %c0_7 = arith.constant 0 : index
    %c0_8 = arith.constant 0 : index
    %8 = vector.load %arg1[%c2, %c0_7, %c0_8] : memref<4x128x27xbf16, #tpu.memory_space<vmem>>, vector<1x128x27xbf16>
    %9 = vector.shape_cast %8 : vector<1x128x27xbf16> to vector<128x27xbf16>
    %cst_9 = arith.constant dense<0.000000e+00> : vector<128x16xf32>
    %10 = tpu.matmul %9, %0, %cst_9 {dimension_numbers = #tpu.dot_dimension_numbers<[1], [0], [0], [1], [0, 0, 1, 1], [], []>} : vector<128x27xbf16>, vector<27x16xbf16>, vector<128x16xf32> -> vector<128x16xf32>
    %11 = arith.maximumf %7, %10 : vector<128x16xf32>
    %c3 = arith.constant 3 : index
    %c0_10 = arith.constant 0 : index
    %c0_11 = arith.constant 0 : index
    %12 = vector.load %arg1[%c3, %c0_10, %c0_11] : memref<4x128x27xbf16, #tpu.memory_space<vmem>>, vector<1x128x27xbf16>
    %13 = vector.shape_cast %12 : vector<1x128x27xbf16> to vector<128x27xbf16>
    %cst_12 = arith.constant dense<0.000000e+00> : vector<128x16xf32>
    %14 = tpu.matmul %13, %0, %cst_12 {dimension_numbers = #tpu.dot_dimension_numbers<[1], [0], [0], [1], [0, 0, 1, 1], [], []>} : vector<128x27xbf16>, vector<27x16xbf16>, vector<128x16xf32> -> vector<128x16xf32>
    %15 = arith.maximumf %11, %14 : vector<128x16xf32>
    %c0_13 = arith.constant 0 : index
    %c0_14 = arith.constant 0 : index
    %16 = vector.load %arg3[%c0_13, %c0_14] : memref<1x16xf32, #tpu.memory_space<vmem>>, vector<1x16xf32>
    %17 = vector.broadcast %16 : vector<1x16xf32> to vector<128x16xf32>
    %18 = arith.addf %15, %17 : vector<128x16xf32>
    %cst_15 = arith.constant 0.000000e+00 : f32
    %19 = vector.broadcast %cst_15 : f32 to vector<128x16xf32>
    %20 = arith.maximumf %18, %19 : vector<128x16xf32>
    %c0_16 = arith.constant 0 : index
    %c0_17 = arith.constant 0 : index
    %21 = vector.load %arg4[%c0_16, %c0_17] : memref<128x16xf32, #tpu.memory_space<vmem>>, vector<128x16xf32>
    tpu.vector_store %arg4[%c0_16, %c0_17], %20 {strides = array<i32>} : memref<128x16xf32, #tpu.memory_space<vmem>>, vector<128x16xf32>,
    return
  }
  func.func @transform_0(%arg0: i32) -> (i32, i32, i32) {
    %c0_i32 = arith.constant 0 : i32
    %c0_i32_0 = arith.constant 0 : i32
    %c0_i32_1 = arith.constant 0 : i32
    return %c0_i32, %arg0, %c0_i32_0 : i32, i32, i32
  }
  func.func @transform_1(%arg0: i32) -> (i32, i32) {
    %c0_i32 = arith.constant 0 : i32
    %c0_i32_0 = arith.constant 0 : i32
    %c0_i32_1 = arith.constant 0 : i32
    return %c0_i32, %c0_i32_0 : i32, i32
  }
  func.func @transform_2(%arg0: i32) -> (i32, i32) {
    %c0_i32 = arith.constant 0 : i32
    %c0_i32_0 = arith.constant 0 : i32
    %c0_i32_1 = arith.constant 0 : i32
    return %c0_i32, %c0_i32_0 : i32, i32
  }
  func.func @transform_3(%arg0: i32) -> (i32, i32) {
    %c0_i32 = arith.constant 0 : i32
    %c0_i32_0 = arith.constant 0 : i32
    return %arg0, %c0_i32 : i32, i32
  }
}

module attributes {stable_mosaic.version = 11 : i64} {
  func.func @_conv_relu_maxpool_kernel(%arg0: i32, %arg1: memref<4x32x144xbf16, #tpu.memory_space<vmem>>, %arg2: memref<144x32xbf16, #tpu.memory_space<vmem>>, %arg3: memref<1x32xf32, #tpu.memory_space<vmem>>, %arg4: memref<32x32xf32, #tpu.memory_space<vmem>>) attributes {dimension_semantics = [#tpu.dimension_semantics<parallel>], iteration_bounds = array<i64: 1>, scalar_prefetch = 0 : i64, scratch_operands = 0 : i64, tpu.core_type = #tpu.core_type<tc>, window_params = [{transform_indices = @transform_0, window_bounds = array<i64: 4, 32, 144>}, {pipeline_mode = #tpu.pipeline_mode<synchronous>, transform_indices = @transform_1, window_bounds = array<i64: 144, 32>}, {pipeline_mode = #tpu.pipeline_mode<synchronous>, transform_indices = @transform_2, window_bounds = array<i64: 1, 32>}, {transform_indices = @transform_3, window_bounds = array<i64: 32, 32>}]} {
    %c0 = arith.constant 0 : index
    %c0_0 = arith.constant 0 : index
    %0 = vector.load %arg2[%c0, %c0_0] : memref<144x32xbf16, #tpu.memory_space<vmem>>, vector<144x32xbf16>
    %c0_1 = arith.constant 0 : index
    %c0_2 = arith.constant 0 : index
    %c0_3 = arith.constant 0 : index
    %1 = vector.load %arg1[%c0_1, %c0_2, %c0_3] : memref<4x32x144xbf16, #tpu.memory_space<vmem>>, vector<1x32x144xbf16>
    %2 = vector.shape_cast %1 : vector<1x32x144xbf16> to vector<32x144xbf16>
    %cst = arith.constant dense<0.000000e+00> : vector<32x32xf32>
    %3 = tpu.matmul %2, %0, %cst {dimension_numbers = #tpu.dot_dimension_numbers<[1], [0], [0], [1], [0, 0, 1, 1], [], []>} : vector<32x144xbf16>, vector<144x32xbf16>, vector<32x32xf32> -> vector<32x32xf32>
    %c1 = arith.constant 1 : index
    %c0_4 = arith.constant 0 : index
    %c0_5 = arith.constant 0 : index
    %4 = vector.load %arg1[%c1, %c0_4, %c0_5] : memref<4x32x144xbf16, #tpu.memory_space<vmem>>, vector<1x32x144xbf16>
    %5 = vector.shape_cast %4 : vector<1x32x144xbf16> to vector<32x144xbf16>
    %cst_6 = arith.constant dense<0.000000e+00> : vector<32x32xf32>
    %6 = tpu.matmul %5, %0, %cst_6 {dimension_numbers = #tpu.dot_dimension_numbers<[1], [0], [0], [1], [0, 0, 1, 1], [], []>} : vector<32x144xbf16>, vector<144x32xbf16>, vector<32x32xf32> -> vector<32x32xf32>
    %7 = arith.maximumf %3, %6 : vector<32x32xf32>
    %c2 = arith.constant 2 : index
    %c0_7 = arith.constant 0 : index
    %c0_8 = arith.constant 0 : index
    %8 = vector.load %arg1[%c2, %c0_7, %c0_8] : memref<4x32x144xbf16, #tpu.memory_space<vmem>>, vector<1x32x144xbf16>
    %9 = vector.shape_cast %8 : vector<1x32x144xbf16> to vector<32x144xbf16>
    %cst_9 = arith.constant dense<0.000000e+00> : vector<32x32xf32>
    %10 = tpu.matmul %9, %0, %cst_9 {dimension_numbers = #tpu.dot_dimension_numbers<[1], [0], [0], [1], [0, 0, 1, 1], [], []>} : vector<32x144xbf16>, vector<144x32xbf16>, vector<32x32xf32> -> vector<32x32xf32>
    %11 = arith.maximumf %7, %10 : vector<32x32xf32>
    %c3 = arith.constant 3 : index
    %c0_10 = arith.constant 0 : index
    %c0_11 = arith.constant 0 : index
    %12 = vector.load %arg1[%c3, %c0_10, %c0_11] : memref<4x32x144xbf16, #tpu.memory_space<vmem>>, vector<1x32x144xbf16>
    %13 = vector.shape_cast %12 : vector<1x32x144xbf16> to vector<32x144xbf16>
    %cst_12 = arith.constant dense<0.000000e+00> : vector<32x32xf32>
    %14 = tpu.matmul %13, %0, %cst_12 {dimension_numbers = #tpu.dot_dimension_numbers<[1], [0], [0], [1], [0, 0, 1, 1], [], []>} : vector<32x144xbf16>, vector<144x32xbf16>, vector<32x32xf32> -> vector<32x32xf32>
    %15 = arith.maximumf %11, %14 : vector<32x32xf32>
    %c0_13 = arith.constant 0 : index
    %c0_14 = arith.constant 0 : index
    %16 = vector.load %arg3[%c0_13, %c0_14] : memref<1x32xf32, #tpu.memory_space<vmem>>, vector<1x32xf32>
    %17 = vector.broadcast %16 : vector<1x32xf32> to vector<32x32xf32>
    %18 = arith.addf %15, %17 : vector<32x32xf32>
    %cst_15 = arith.constant 0.000000e+00 : f32
    %19 = vector.broadcast %cst_15 : f32 to vector<32x32xf32>
    %20 = arith.maximumf %18, %19 : vector<32x32xf32>
    %c0_16 = arith.constant 0 : index
    %c0_17 = arith.constant 0 : index
    %21 = vector.load %arg4[%c0_16, %c0_17] : memref<32x32xf32, #tpu.memory_space<vmem>>, vector<32x32xf32>
    tpu.vector_store %arg4[%c0_16, %c0_17], %20 {strides = array<i32>} : memref<32x32xf32, #tpu.memory_space<vmem>>, vector<32x32xf32>,
    return
  }
  func.func @transform_0(%arg0: i32) -> (i32, i32, i32) {
    %c0_i32 = arith.constant 0 : i32
    %c0_i32_0 = arith.constant 0 : i32
    %c0_i32_1 = arith.constant 0 : i32
    return %c0_i32, %arg0, %c0_i32_0 : i32, i32, i32
  }
  func.func @transform_1(%arg0: i32) -> (i32, i32) {
    %c0_i32 = arith.constant 0 : i32
    %c0_i32_0 = arith.constant 0 : i32
    %c0_i32_1 = arith.constant 0 : i32
    return %c0_i32, %c0_i32_0 : i32, i32
  }
  func.func @transform_2(%arg0: i32) -> (i32, i32) {
    %c0_i32 = arith.constant 0 : i32
    %c0_i32_0 = arith.constant 0 : i32
    %c0_i32_1 = arith.constant 0 : i32
    return %c0_i32, %c0_i32_0 : i32, i32
  }
  func.func @transform_3(%arg0: i32) -> (i32, i32) {
    %c0_i32 = arith.constant 0 : i32
    %c0_i32_0 = arith.constant 0 : i32
    return %arg0, %c0_i32 : i32, i32
  }
}

module attributes {stable_mosaic.version = 11 : i64} {
  func.func @_classifier_kernel(%arg0: memref<2x512xbf16, #tpu.memory_space<vmem>>, %arg1: memref<512x1024xbf16, #tpu.memory_space<vmem>>, %arg2: memref<1x1024xf32, #tpu.memory_space<vmem>>, %arg3: memref<1024x256xbf16, #tpu.memory_space<vmem>>, %arg4: memref<1x256xf32, #tpu.memory_space<vmem>>, %arg5: memref<256x10xbf16, #tpu.memory_space<vmem>>, %arg6: memref<1x10xf32, #tpu.memory_space<vmem>>, %arg7: memref<2x10xf32, #tpu.memory_space<vmem>>) attributes {dimension_semantics = [], scalar_prefetch = 0 : i64, scratch_operands = 0 : i64, tpu.core_type = #tpu.core_type<tc>} {
    %c0 = arith.constant 0 : index
    %c0_0 = arith.constant 0 : index
    %0 = vector.load %arg0[%c0, %c0_0] : memref<2x512xbf16, #tpu.memory_space<vmem>>, vector<2x512xbf16>
    %c0_1 = arith.constant 0 : index
    %c0_2 = arith.constant 0 : index
    %1 = vector.load %arg1[%c0_1, %c0_2] : memref<512x1024xbf16, #tpu.memory_space<vmem>>, vector<512x1024xbf16>
    %cst = arith.constant dense<0.000000e+00> : vector<2x1024xf32>
    %2 = tpu.matmul %0, %1, %cst {dimension_numbers = #tpu.dot_dimension_numbers<[1], [0], [0], [1], [0, 0, 1, 1], [], []>} : vector<2x512xbf16>, vector<512x1024xbf16>, vector<2x1024xf32> -> vector<2x1024xf32>
    %c0_3 = arith.constant 0 : index
    %c0_4 = arith.constant 0 : index
    %3 = vector.load %arg2[%c0_3, %c0_4] : memref<1x1024xf32, #tpu.memory_space<vmem>>, vector<1x1024xf32>
    %4 = vector.broadcast %3 : vector<1x1024xf32> to vector<2x1024xf32>
    %5 = arith.addf %2, %4 : vector<2x1024xf32>
    %cst_5 = arith.constant 0.000000e+00 : f32
    %6 = vector.broadcast %cst_5 : f32 to vector<2x1024xf32>
    %7 = arith.maximumf %5, %6 : vector<2x1024xf32>
    %8 = arith.truncf %7 : vector<2x1024xf32> to vector<2x1024xbf16>
    %c0_6 = arith.constant 0 : index
    %c0_7 = arith.constant 0 : index
    %9 = vector.load %arg3[%c0_6, %c0_7] : memref<1024x256xbf16, #tpu.memory_space<vmem>>, vector<1024x256xbf16>
    %cst_8 = arith.constant dense<0.000000e+00> : vector<2x256xf32>
    %10 = tpu.matmul %8, %9, %cst_8 {dimension_numbers = #tpu.dot_dimension_numbers<[1], [0], [0], [1], [0, 0, 1, 1], [], []>} : vector<2x1024xbf16>, vector<1024x256xbf16>, vector<2x256xf32> -> vector<2x256xf32>
    %c0_9 = arith.constant 0 : index
    %c0_10 = arith.constant 0 : index
    %11 = vector.load %arg4[%c0_9, %c0_10] : memref<1x256xf32, #tpu.memory_space<vmem>>, vector<1x256xf32>
    %12 = vector.broadcast %11 : vector<1x256xf32> to vector<2x256xf32>
    %13 = arith.addf %10, %12 : vector<2x256xf32>
    %cst_11 = arith.constant 0.000000e+00 : f32
    %14 = vector.broadcast %cst_11 : f32 to vector<2x256xf32>
    %15 = arith.maximumf %13, %14 : vector<2x256xf32>
    %16 = arith.truncf %15 : vector<2x256xf32> to vector<2x256xbf16>
    %c0_12 = arith.constant 0 : index
    %c0_13 = arith.constant 0 : index
    %17 = vector.load %arg5[%c0_12, %c0_13] : memref<256x10xbf16, #tpu.memory_space<vmem>>, vector<256x10xbf16>
    %cst_14 = arith.constant dense<0.000000e+00> : vector<2x10xf32>
    %18 = tpu.matmul %16, %17, %cst_14 {dimension_numbers = #tpu.dot_dimension_numbers<[1], [0], [0], [1], [0, 0, 1, 1], [], []>} : vector<2x256xbf16>, vector<256x10xbf16>, vector<2x10xf32> -> vector<2x10xf32>
    %c0_15 = arith.constant 0 : index
    %c0_16 = arith.constant 0 : index
    %19 = vector.load %arg6[%c0_15, %c0_16] : memref<1x10xf32, #tpu.memory_space<vmem>>, vector<1x10xf32>
    %20 = vector.broadcast %19 : vector<1x10xf32> to vector<2x10xf32>
    %21 = arith.addf %18, %20 : vector<2x10xf32>
    %c0_17 = arith.constant 0 : index
    %c0_18 = arith.constant 0 : index
    %22 = vector.load %arg7[%c0_17, %c0_18] : memref<2x10xf32, #tpu.memory_space<vmem>>, vector<2x10xf32>
    tpu.vector_store %arg7[%c0_17, %c0_18], %21 {strides = array<i32>} : memref<2x10xf32, #tpu.memory_space<vmem>>, vector<2x10xf32>,
    return
  }
}

</mosaic_0001>

<llo_original>
// kernel: vgg_forward.3
$region0: #{vgg_forward.3}
  #allocation0 [shape = 'u32[]', space=smem, size = 0x4, offset = 0x4, fixed_abs, tag = 'smem constant byte address 0x4 - core index']
  #allocation1 [shape = 'u32[144,128]{1,0:T(1,128)}', space=vmem, size = 0x12000, scoped, tag = 'internal scratch']
  %s0 = inlined_call_operand.vmem [shape: bf16[4,128,27], index: 0, kind: input, shape index: {}]
  %s1 = inlined_call_operand.vmem [shape: bf16[27,16], index: 1, kind: input, shape index: {}]
  %s2 = inlined_call_operand.vmem [shape: f32[1,16], index: 2, kind: input, shape index: {}]
  %s3 = inlined_call_operand.vmem [shape: f32[128,16], index: 3, kind: output, shape index: {}]
  %s4 = sld [smem:[#allocation0]]
  $region22: #{vgg_forward.3} parent=0
    _
  %s6 = ssub.s32 1, %s4
  %s7 = scalar_select 0, %s6, %s4
  // Predicated region
  $region2: #{vgg_forward.3} parent=0 // pred_check
    _
  $region3: #{vgg_forward.3} parent=0 // pred_check_branch
    %9 = sbr.rel (0) target = $region5
  $region4: #{vgg_forward.3} parent=0 // pred_region
    _
  $region5: #{vgg_forward.3} parent=0 // pred_fallthru
    _
  // Predicated region
  $region6: #{vgg_forward.3} parent=0 // pred_check
    _
  $region7: #{vgg_forward.3} parent=0 // pred_check_branch
    %11 = sbr.rel (0) target = $region9
  $region8: #{vgg_forward.3} parent=0 // pred_region
    _
  $region9: #{vgg_forward.3} parent=0 // pred_fallthru
    _
  // Predicated region
  $region10: #{vgg_forward.3} parent=0 // pred_check
    _
  $region11: #{vgg_forward.3} parent=0 // pred_check_branch
    %13 = sbr.rel (0) target = $region13
  $region12: #{vgg_forward.3} parent=0 // pred_region
    _
  $region13: #{vgg_forward.3} parent=0 // pred_fallthru
    _
  %v15 = vld [vmem:[%s1] sm:$0xf]
  %v16 = vld [vmem:[%s1 + $0x4] sm:$0xf]
  %v17 = vld [vmem:[%s1 + $0x8] sm:$0xf]
  %v18 = vld [vmem:[%s1 + $0xc] sm:$0x3]
  %v19 = vld [vmem:[%s0] sm:$0xf]
  %v20 = vld [vmem:[%s0 + $0x4] sm:$0xf]
  %v21 = vld [vmem:[%s0 + $0x8] sm:$0xf]
  %v22 = vld [vmem:[%s0 + $0xc] sm:$0xf]
  %v23 = vld [vmem:[%s0 + $0x10] sm:$0xf]
  %v24 = vld [vmem:[%s0 + $0x14] sm:$0xf]
  %v25 = vld [vmem:[%s0 + $0x18] sm:$0xf]
  %v26 = vld [vmem:[%s0 + $0x1c] sm:$0xf]
  %v27 = vld [vmem:[%s0 + $0x20] sm:$0xf]
  %v28 = vld [vmem:[%s0 + $0x24] sm:$0xf]
  %v29 = vld [vmem:[%s0 + $0x28] sm:$0xf]
  %v30 = vld [vmem:[%s0 + $0x2c] sm:$0xf]
  %v31 = vld [vmem:[%s0 + $0x30] sm:$0xf]
  %v32 = vld [vmem:[%s0 + $0x34] sm:$0xf]
  %v33 = vld [vmem:[%s0 + $0x38] sm:$0xf]
  %v34 = vld [vmem:[%s0 + $0x3c] sm:$0xf]
  %v51 = vunpack.c.l.b16 %v19
  %v52 = vunpack.c.l.b16 %v20
  %v53 = vunpack.c.l.b16 %v21
  %v54 = vunpack.c.l.b16 %v22
  %v55 = vunpack.c.l.b16 %v23
  %v56 = vunpack.c.l.b16 %v24
  %v57 = vunpack.c.l.b16 %v25
  %v58 = vunpack.c.l.b16 %v26
  %v59 = vunpack.c.l.b16 %v27
  %v60 = vunpack.c.l.b16 %v28
  %v61 = vunpack.c.l.b16 %v29
  %v62 = vunpack.c.l.b16 %v30
  %v63 = vunpack.c.l.b16 %v31
  %v64 = vunpack.c.l.b16 %v32
  %v65 = vunpack.c.l.b16 %v33
  %v66 = vunpack.c.l.b16 %v34
  %v67 = vpack.c.b16 %v52, %v51
  %v68 = vpack.c.b16 %v54, %v53
  %v69 = vpack.c.b16 %v56, %v55
  %v70 = vpack.c.b16 %v58, %v57
  %v71 = vpack.c.b16 %v60, %v59
  %v72 = vpack.c.b16 %v62, %v61
  %v73 = vpack.c.b16 %v64, %v63
  %v74 = vpack.c.b16 %v66, %v65
  %v79 = vunpack.c.l.b16 %v15
  %v80 = vunpack.c.l.b16 %v16
  %v81 = vunpack.c.l.b16 %v17
  %v82 = vunpack.c.l.b16 %v18
  %v83 = vpack.c.b16 %v80, %v79
  %v84 = vpack.c.b16 %v82, %v81
  %vm86 = vcmask 220160
  %v88 = vsel %vm86, %v67, 0
  %v91 = vsel %vm86, %v68, 0
  %v94 = vsel %vm86, %v69, 0
  %v97 = vsel %vm86, %v70, 0
  %v100 = vsel %vm86, %v71, 0
  %v103 = vsel %vm86, %v72, 0
  %v106 = vsel %vm86, %v73, 0
  %v109 = vsel %vm86, %v74, 0
  %vm111 = vcmask 1044480
  %vm112 = vcmask 1045504
  %v113 = vsel %vm111, 4294967295, 65535
  %v114 = vsel %vm112, %v113, 0
  %v116 = vand.u32 %v84, %v114
  %118 = vmatprep.subr.bf16.mxu0 0
  %119 = vmatpush1.bf16.msra.mxu0 0
  %120 = vmatprep.subr.bf16.mxu0 0
  %121 = vmatpush1.bf16.msra.mxu0 0
  %122 = vmatprep.subr.bf16.mxu0 0
  %123 = vmatpush1.bf16.msra.mxu0 0
  %124 = vmatprep.subr.bf16.mxu0 0
  %125 = vmatpush1.bf16.msra.mxu0 0
  %126 = vmatprep.subr.bf16.mxu0 0
  %127 = vmatpush1.bf16.msra.mxu0 0
  %128 = vmatprep.subr.bf16.mxu0 0
  %129 = vmatpush1.bf16.msra.mxu0 0
  %130 = vmatprep.subr.bf16.mxu0 0
  %131 = vmatpush1.bf16.msra.mxu0 %v116
  %132 = vmatprep.subr.bf16.mxu0 0
  %133 = vmatpush1.bf16.msra.mxu0 %v83
  %134 = vmatprep.subr.bf16.mxu0 0
  %135 = vmatpush2.bf16.msra.mxu0 0
  %136 = vmatprep.subr.bf16.mxu0 0
  %137 = vmatpush2.bf16.msra.mxu0 0
  %138 = vmatprep.subr.bf16.mxu0 0
  %139 = vmatpush2.bf16.msra.mxu0 0
  %140 = vmatprep.subr.bf16.mxu0 0
  %141 = vmatpush2.bf16.msra.mxu0 0
  %142 = vmatprep.subr.bf16.mxu0 0
  %143 = vmatpush2.bf16.msra.mxu0 0
  %144 = vmatprep.subr.bf16.mxu0 0
  %145 = vmatpush2.bf16.msra.mxu0 0
  %146 = vmatprep.subr.bf16.mxu0 0
  %147 = vmatpush2.bf16.msra.mxu0 0
  %148 = vmatprep.subr.bf16.mxu0 0
  %149 = vmatpush2.bf16.msra.mxu0 0
  %150 = vmatprep.mubr.bf16.mxu0 0
  %151 = vmatmul.mubr.bf16.gmra.mxu0 %v88
  %v152 = vpop.f32.mrf.mxu0
  %v153 = vadd.f32 0.0, %v152
  %v154 = vpop.f32.mrf.mxu0
  %v155 = vpop.f32.mrf.mxu0
  %v156 = vadd.f32 0.0, %v155
  %v157 = vpop.f32.mrf.mxu0
  %158 = vmatprep.mubr.bf16.mxu0 0
  %159 = vmatmul.mubr.bf16.gmra.mxu0 %v91
  %v160 = vpop.f32.mrf.mxu0
  %v161 = vadd.f32 0.0, %v160
  %v162 = vpop.f32.mrf.mxu0
  %v163 = vpop.f32.mrf.mxu0
  %v164 = vadd.f32 0.0, %v163
  %v165 = vpop.f32.mrf.mxu0
  %166 = vmatprep.mubr.bf16.mxu0 0
  %167 = vmatmul.mubr.bf16.gmra.mxu0 %v94
  %v168 = vpop.f32.mrf.mxu0
  %v169 = vadd.f32 0.0, %v168
  %v170 = vpop.f32.mrf.mxu0
  %v171 = vpop.f32.mrf.mxu0
  %v172 = vadd.f32 0.0, %v171
  %v173 = vpop.f32.mrf.mxu0
  %174 = vmatprep.mubr.bf16.mxu0 0
  %175 = vmatmul.mubr.bf16.gmra.mxu0 %v97
  %v176 = vpop.f32.mrf.mxu0
  %v177 = vadd.f32 0.0, %v176
  %v178 = vpop.f32.mrf.mxu0
  %v179 = vpop.f32.mrf.mxu0
  %v180 = vadd.f32 0.0, %v179
  %v181 = vpop.f32.mrf.mxu0
  %182 = vmatprep.mubr.bf16.mxu0 0
  %183 = vmatmul.mubr.bf16.gmra.mxu0 %v100
  %v184 = vpop.f32.mrf.mxu0
  %v185 = vadd.f32 0.0, %v184
  %v186 = vpop.f32.mrf.mxu0
  %v187 = vpop.f32.mrf.mxu0
  %v188 = vadd.f32 0.0, %v187
  %v189 = vpop.f32.mrf.mxu0
  %190 = vmatprep.mubr.bf16.mxu0 0
  %191 = vmatmul.mubr.bf16.gmra.mxu0 %v103
  %v192 = vpop.f32.mrf.mxu0
  %v193 = vadd.f32 0.0, %v192
  %v194 = vpop.f32.mrf.mxu0
  %v195 = vpop.f32.mrf.mxu0
  %v196 = vadd.f32 0.0, %v195
  %v197 = vpop.f32.mrf.mxu0
  %198 = vmatprep.mubr.bf16.mxu0 0
  %199 = vmatmul.mubr.bf16.gmra.mxu0 %v106
  %v200 = vpop.f32.mrf.mxu0
  %v201 = vadd.f32 0.0, %v200
  %v202 = vpop.f32.mrf.mxu0
  %v203 = vpop.f32.mrf.mxu0
  %v204 = vadd.f32 0.0, %v203
  %v205 = vpop.f32.mrf.mxu0
  %206 = vmatprep.mubr.bf16.mxu0 0
  %207 = vmatmul.mubr.bf16.gmra.mxu0 %v109
  %v208 = vpop.f32.mrf.mxu0
  %v209 = vadd.f32 0.0, %v208
  %v210 = vpop.f32.mrf.mxu0
  %v211 = vpop.f32.mrf.mxu0
  %v212 = vadd.f32 0.0, %v211
  %v213 = vpop.f32.mrf.mxu0
  %214 = vdwg.mxu0
  %s215 = scalar_lea.vmem %s0, 64
  %v216 = vld [vmem:[%s215] sm:$0xf]
  %v217 = vld [vmem:[%s215 + $0x4] sm:$0xf]
  %v218 = vld [vmem:[%s215 + $0x8] sm:$0xf]
  %v219 = vld [vmem:[%s215 + $0xc] sm:$0xf]
  %v220 = vld [vmem:[%s215 + $0x10] sm:$0xf]
  %v221 = vld [vmem:[%s215 + $0x14] sm:$0xf]
  %v222 = vld [vmem:[%s215 + $0x18] sm:$0xf]
  %v223 = vld [vmem:[%s215 + $0x1c] sm:$0xf]
  %v224 = vld [vmem:[%s215 + $0x20] sm:$0xf]
  %v225 = vld [vmem:[%s215 + $0x24] sm:$0xf]
  %v226 = vld [vmem:[%s215 + $0x28] sm:$0xf]
  %v227 = vld [vmem:[%s215 + $0x2c] sm:$0xf]
  %v228 = vld [vmem:[%s215 + $0x30] sm:$0xf]
  %v229 = vld [vmem:[%s215 + $0x34] sm:$0xf]
  %v230 = vld [vmem:[%s215 + $0x38] sm:$0xf]
  %v231 = vld [vmem:[%s215 + $0x3c] sm:$0xf]
  %v248 = vunpack.c.l.b16 %v216
  %v249 = vunpack.c.l.b16 %v217
  %v250 = vunpack.c.l.b16 %v218
  %v251 = vunpack.c.l.b16 %v219
  %v252 = vunpack.c.l.b16 %v220
  %v253 = vunpack.c.l.b16 %v221
  %v254 = vunpack.c.l.b16 %v222
  %v255 = vunpack.c.l.b16 %v223
  %v256 = vunpack.c.l.b16 %v224
  %v257 = vunpack.c.l.b16 %v225
  %v258 = vunpack.c.l.b16 %v226
  %v259 = vunpack.c.l.b16 %v227
  %v260 = vunpack.c.l.b16 %v228
  %v261 = vunpack.c.l.b16 %v229
  %v262 = vunpack.c.l.b16 %v230
  %v263 = vunpack.c.l.b16 %v231
  %v264 = vpack.c.b16 %v249, %v248
  %v265 = vpack.c.b16 %v251, %v250
  %v266 = vpack.c.b16 %v253, %v252
  %v267 = vpack.c.b16 %v255, %v254
  %v268 = vpack.c.b16 %v257, %v256
  %v269 = vpack.c.b16 %v259, %v258
  %v270 = vpack.c.b16 %v261, %v260
  %v271 = vpack.c.b16 %v263, %v262
  %v273 = vsel %vm86, %v264, 0
  %v276 = vsel %vm86, %v265, 0
  %v279 = vsel %vm86, %v266, 0
  %v282 = vsel %vm86, %v267, 0
  %v285 = vsel %vm86, %v268, 0
  %v288 = vsel %vm86, %v269, 0
  %v291 = vsel %vm86, %v270, 0
  %v294 = vsel %vm86, %v271, 0
  %296 = vmatprep.subr.bf16.mxu0 0
  %297 = vmatpush1.bf16.msra.mxu0 0
  %298 = vmatprep.subr.bf16.mxu0 0
  %299 = vmatpush1.bf16.msra.mxu0 0
  %300 = vmatprep.subr.bf16.mxu0 0
  %301 = vmatpush1.bf16.msra.mxu0 0
  %302 = vmatprep.subr.bf16.mxu0 0
  %303 = vmatpush1.bf16.msra.mxu0 0
  %304 = vmatprep.subr.bf16.mxu0 0
  %305 = vmatpush1.bf16.msra.mxu0 0
  %306 = vmatprep.subr.bf16.mxu0 0
  %307 = vmatpush1.bf16.msra.mxu0 0
  %308 = vmatprep.subr.bf16.mxu0 0
  %309 = vmatpush1.bf16.msra.mxu0 %v116
  %310 = vmatprep.subr.bf16.mxu0 0
  %311 = vmatpush1.bf16.msra.mxu0 %v83
  %312 = vmatprep.subr.bf16.mxu0 0
  %313 = vmatpush2.bf16.msra.mxu0 0
  %314 = vmatprep.subr.bf16.mxu0 0
  %315 = vmatpush2.bf16.msra.mxu0 0
  %316 = vmatprep.subr.bf16.mxu0 0
  %317 = vmatpush2.bf16.msra.mxu0 0
  %318 = vmatprep.subr.bf16.mxu0 0
  %319 = vmatpush2.bf16.msra.mxu0 0
  %320 = vmatprep.subr.bf16.mxu0 0
  %321 = vmatpush2.bf16.msra.mxu0 0
  %322 = vmatprep.subr.bf16.mxu0 0
  %323 = vmatpush2.bf16.msra.mxu0 0
  %324 = vmatprep.subr.bf16.mxu0 0
  %325 = vmatpush2.bf16.msra.mxu0 0
  %326 = vmatprep.subr.bf16.mxu0 0
  %327 = vmatpush2.bf16.msra.mxu0 0
  %328 = vmatprep.mubr.bf16.mxu0 0
  %329 = vmatmul.mubr.bf16.gmra.mxu0 %v273
  %v330 = vpop.f32.mrf.mxu0
  %v331 = vadd.f32 0.0, %v330
  %v332 = vpop.f32.mrf.mxu0
  %v333 = vpop.f32.mrf.mxu0
  %v334 = vadd.f32 0.0, %v333
  %v335 = vpop.f32.mrf.mxu0
  %336 = vmatprep.mubr.bf16.mxu0 0
  %337 = vmatmul.mubr.bf16.gmra.mxu0 %v276
  %v338 = vpop.f32.mrf.mxu0
  %v339 = vadd.f32 0.0, %v338
  %v340 = vpop.f32.mrf.mxu0
  %v341 = vpop.f32.mrf.mxu0
  %v342 = vadd.f32 0.0, %v341
  %v343 = vpop.f32.mrf.mxu0
  %344 = vmatprep.mubr.bf16.mxu0 0
  %345 = vmatmul.mubr.bf16.gmra.mxu0 %v279
  %v346 = vpop.f32.mrf.mxu0
  %v347 = vadd.f32 0.0, %v346
  %v348 = vpop.f32.mrf.mxu0
  %v349 = vpop.f32.mrf.mxu0
  %v350 = vadd.f32 0.0, %v349
  %v351 = vpop.f32.mrf.mxu0
  %352 = vmatprep.mubr.bf16.mxu0 0
  %353 = vmatmul.mubr.bf16.gmra.mxu0 %v282
  %v354 = vpop.f32.mrf.mxu0
  %v355 = vadd.f32 0.0, %v354
  %v356 = vpop.f32.mrf.mxu0
  %v357 = vpop.f32.mrf.mxu0
  %v358 = vadd.f32 0.0, %v357
  %v359 = vpop.f32.mrf.mxu0
  %360 = vmatprep.mubr.bf16.mxu0 0
  %361 = vmatmul.mubr.bf16.gmra.mxu0 %v285
  %v362 = vpop.f32.mrf.mxu0
  %v363 = vadd.f32 0.0, %v362
  %v364 = vpop.f32.mrf.mxu0
  %v365 = vpop.f32.mrf.mxu0
  %v366 = vadd.f32 0.0, %v365
  %v367 = vpop.f32.mrf.mxu0
  %368 = vmatprep.mubr.bf16.mxu0 0
  %369 = vmatmul.mubr.bf16.gmra.mxu0 %v288
  %v370 = vpop.f32.mrf.mxu0
  %v371 = vadd.f32 0.0, %v370
  %v372 = vpop.f32.mrf.mxu0
  %v373 = vpop.f32.mrf.mxu0
  %v374 = vadd.f32 0.0, %v373
  %v375 = vpop.f32.mrf.mxu0
  %376 = vmatprep.mubr.bf16.mxu0 0
  %377 = vmatmul.mubr.bf16.gmra.mxu0 %v291
  %v378 = vpop.f32.mrf.mxu0
  %v379 = vadd.f32 0.0, %v378
  %v380 = vpop.f32.mrf.mxu0
  %v381 = vpop.f32.mrf.mxu0
  %v382 = vadd.f32 0.0, %v381
  %v383 = vpop.f32.mrf.mxu0
  %384 = vmatprep.mubr.bf16.mxu0 0
  %385 = vmatmul.mubr.bf16.gmra.mxu0 %v294
  %v386 = vpop.f32.mrf.mxu0
  %v387 = vadd.f32 0.0, %v386
  %v388 = vpop.f32.mrf.mxu0
  %v389 = vpop.f32.mrf.mxu0
  %v390 = vadd.f32 0.0, %v389
  %v391 = vpop.f32.mrf.mxu0
  %392 = vdwg.mxu0
  %v393 = vmax.f32 %v153, %v331
  %v394 = vmax.f32 %v156, %v334
  %v395 = vmax.f32 %v161, %v339
  %v396 = vmax.f32 %v164, %v342
  %v397 = vmax.f32 %v169, %v347
  %v398 = vmax.f32 %v172, %v350
  %v399 = vmax.f32 %v177, %v355
  %v400 = vmax.f32 %v180, %v358
  %v401 = vmax.f32 %v185, %v363
  %v402 = vmax.f32 %v188, %v366
  %v403 = vmax.f32 %v193, %v371
  %v404 = vmax.f32 %v196, %v374
  %v405 = vmax.f32 %v201, %v379
  %v406 = vmax.f32 %v204, %v382
  %v407 = vmax.f32 %v209, %v387
  %v408 = vmax.f32 %v212, %v390
  %s409 = scalar_lea.vmem %s0, 128
  %v410 = vld [vmem:[%s409] sm:$0xf]
  %v411 = vld [vmem:[%s409 + $0x4] sm:$0xf]
  %v412 = vld [vmem:[%s409 + $0x8] sm:$0xf]
  %v413 = vld [vmem:[%s409 + $0xc] sm:$0xf]
  %v414 = vld [vmem:[%s409 + $0x10] sm:$0xf]
  %v415 = vld [vmem:[%s409 + $0x14] sm:$0xf]
  %v416 = vld [vmem:[%s409 + $0x18] sm:$0xf]
  %v417 = vld [vmem:[%s409 + $0x1c] sm:$0xf]
  %v418 = vld [vmem:[%s409 + $0x20] sm:$0xf]
  %v419 = vld [vmem:[%s409 + $0x24] sm:$0xf]
  %v420 = vld [vmem:[%s409 + $0x28] sm:$0xf]
  %v421 = vld [vmem:[%s409 + $0x2c] sm:$0xf]
  %v422 = vld [vmem:[%s409 + $0x30] sm:$0xf]
  %v423 = vld [vmem:[%s409 + $0x34] sm:$0xf]
  %v424 = vld [vmem:[%s409 + $0x38] sm:$0xf]
  %v425 = vld [vmem:[%s409 + $0x3c] sm:$0xf]
  %v442 = vunpack.c.l.b16 %v410
  %v443 = vunpack.c.l.b16 %v411
  %v444 = vunpack.c.l.b16 %v412
  %v445 = vunpack.c.l.b16 %v413
  %v446 = vunpack.c.l.b16 %v414
  %v447 = vunpack.c.l.b16 %v415
  %v448 = vunpack.c.l.b16 %v416
  %v449 = vunpack.c.l.b16 %v417
  %v450 = vunpack.c.l.b16 %v418
  %v451 = vunpack.c.l.b16 %v419
  %v452 = vunpack.c.l.b16 %v420
  %v453 = vunpack.c.l.b16 %v421
  %v454 = vunpack.c.l.b16 %v422
  %v455 = vunpack.c.l.b16 %v423
  %v456 = vunpack.c.l.b16 %v424
  %v457 = vunpack.c.l.b16 %v425
  %v458 = vpack.c.b16 %v443, %v442
  %v459 = vpack.c.b16 %v445, %v444
  %v460 = vpack.c.b16 %v447, %v446
  %v461 = vpack.c.b16 %v449, %v448
  %v462 = vpack.c.b16 %v451, %v450
  %v463 = vpack.c.b16 %v453, %v452
  %v464 = vpack.c.b16 %v455, %v454
  %v465 = vpack.c.b16 %v457, %v456
  %v467 = vsel %vm86, %v458, 0
  %v470 = vsel %vm86, %v459, 0
  %v473 = vsel %vm86, %v460, 0
  %v476 = vsel %vm86, %v461, 0
  %v479 = vsel %vm86, %v462, 0
  %v482 = vsel %vm86, %v463, 0
  %v485 = vsel %vm86, %v464, 0
  %v488 = vsel %vm86, %v465, 0
  %490 = vmatprep.subr.bf16.mxu0 0
  %491 = vmatpush1.bf16.msra.mxu0 0
  %492 = vmatprep.subr.bf16.mxu0 0
  %493 = vmatpush1.bf16.msra.mxu0 0
  %494 = vmatprep.subr.bf16.mxu0 0
  %495 = vmatpush1.bf16.msra.mxu0 0
  %496 = vmatprep.subr.bf16.mxu0 0
  %497 = vmatpush1.bf16.msra.mxu0 0
  %498 = vmatprep.subr.bf16.mxu0 0
  %499 = vmatpush1.bf16.msra.mxu0 0
  %500 = vmatprep.subr.bf16.mxu0 0
  %501 = vmatpush1.bf16.msra.mxu0 0
  %502 = vmatprep.subr.bf16.mxu0 0
  %503 = vmatpush1.bf16.msra.mxu0 %v116
  %504 = vmatprep.subr.bf16.mxu0 0
  %505 = vmatpush1.bf16.msra.mxu0 %v83
  %506 = vmatprep.subr.bf16.mxu0 0
  %507 = vmatpush2.bf16.msra.mxu0 0
  %508 = vmatprep.subr.bf16.mxu0 0
  %509 = vmatpush2.bf16.msra.mxu0 0
  %510 = vmatprep.subr.bf16.mxu0 0
  %511 = vmatpush2.bf16.msra.mxu0 0
  %512 = vmatprep.subr.bf16.mxu0 0
  %513 = vmatpush2.bf16.msra.mxu0 0
  %514 = vmatprep.subr.bf16.mxu0 0
  %515 = vmatpush2.bf16.msra.mxu0 0
  %516 = vmatprep.subr.bf16.mxu0 0
  %517 = vmatpush2.bf16.msra.mxu0 0
  %518 = vmatprep.subr.bf16.mxu0 0
  %519 = vmatpush2.bf16.msra.mxu0 0
  %520 = vmatprep.subr.bf16.mxu0 0
  %521 = vmatpush2.bf16.msra.mxu0 0
  %522 = vmatprep.mubr.bf16.mxu0 0
  %523 = vmatmul.mubr.bf16.gmra.mxu0 %v467
  %v524 = vpop.f32.mrf.mxu0
  %v525 = vadd.f32 0.0, %v524
  %v526 = vpop.f32.mrf.mxu0
  %v527 = vpop.f32.mrf.mxu0
  %v528 = vadd.f32 0.0, %v527
  %v529 = vpop.f32.mrf.mxu0
  %530 = vmatprep.mubr.bf16.mxu0 0
  %531 = vmatmul.mubr.bf16.gmra.mxu0 %v470
  %v532 = vpop.f32.mrf.mxu0
  %v533 = vadd.f32 0.0, %v532
  %v534 = vpop.f32.mrf.mxu0
  %v535 = vpop.f32.mrf.mxu0
  %v536 = vadd.f32 0.0, %v535
  %v537 = vpop.f32.mrf.mxu0
  %538 = vmatprep.mubr.bf16.mxu0 0
  %539 = vmatmul.mubr.bf16.gmra.mxu0 %v473
  %v540 = vpop.f32.mrf.mxu0
  %v541 = vadd.f32 0.0, %v540
  %v542 = vpop.f32.mrf.mxu0
  %v543 = vpop.f32.mrf.mxu0
  %v544 = vadd.f32 0.0, %v543
  %v545 = vpop.f32.mrf.mxu0
  %546 = vmatprep.mubr.bf16.mxu0 0
  %547 = vmatmul.mubr.bf16.gmra.mxu0 %v476
  %v548 = vpop.f32.mrf.mxu0
  %v549 = vadd.f32 0.0, %v548
  %v550 = vpop.f32.mrf.mxu0
  %v551 = vpop.f32.mrf.mxu0
  %v552 = vadd.f32 0.0, %v551
  %v553 = vpop.f32.mrf.mxu0
  %554 = vmatprep.mubr.bf16.mxu0 0
  %555 = vmatmul.mubr.bf16.gmra.mxu0 %v479
  %v556 = vpop.f32.mrf.mxu0
  %v557 = vadd.f32 0.0, %v556
  %v558 = vpop.f32.mrf.mxu0
  %v559 = vpop.f32.mrf.mxu0
  %v560 = vadd.f32 0.0, %v559
  %v561 = vpop.f32.mrf.mxu0
  %562 = vmatprep.mubr.bf16.mxu0 0
  %563 = vmatmul.mubr.bf16.gmra.mxu0 %v482
  %v564 = vpop.f32.mrf.mxu0
  %v565 = vadd.f32 0.0, %v564
  %v566 = vpop.f32.mrf.mxu0
  %v567 = vpop.f32.mrf.mxu0
  %v568 = vadd.f32 0.0, %v567
  %v569 = vpop.f32.mrf.mxu0
  %570 = vmatprep.mubr.bf16.mxu0 0
  %571 = vmatmul.mubr.bf16.gmra.mxu0 %v485
  %v572 = vpop.f32.mrf.mxu0
  %v573 = vadd.f32 0.0, %v572
  %v574 = vpop.f32.mrf.mxu0
  %v575 = vpop.f32.mrf.mxu0
  %v576 = vadd.f32 0.0, %v575
  %v577 = vpop.f32.mrf.mxu0
  %578 = vmatprep.mubr.bf16.mxu0 0
  %579 = vmatmul.mubr.bf16.gmra.mxu0 %v488
  %v580 = vpop.f32.mrf.mxu0
  %v581 = vadd.f32 0.0, %v580
  %v582 = vpop.f32.mrf.mxu0
  %v583 = vpop.f32.mrf.mxu0
  %v584 = vadd.f32 0.0, %v583
  %v585 = vpop.f32.mrf.mxu0
  %586 = vdwg.mxu0
  %v587 = vmax.f32 %v393, %v525
  %v588 = vmax.f32 %v394, %v528
  %v589 = vmax.f32 %v395, %v533
  %v590 = vmax.f32 %v396, %v536
  %v591 = vmax.f32 %v397, %v541
  %v592 = vmax.f32 %v398, %v544
  %v593 = vmax.f32 %v399, %v549
  %v594 = vmax.f32 %v400, %v552
  %v595 = vmax.f32 %v401, %v557
  %v596 = vmax.f32 %v402, %v560
  %v597 = vmax.f32 %v403, %v565
  %v598 = vmax.f32 %v404, %v568
  %v599 = vmax.f32 %v405, %v573
  %v600 = vmax.f32 %v406, %v576
  %v601 = vmax.f32 %v407, %v581
  %v602 = vmax.f32 %v408, %v584
  %s603 = scalar_lea.vmem %s0, 192
  %v604 = vld [vmem:[%s603] sm:$0xf]
  %v605 = vld [vmem:[%s603 + $0x4] sm:$0xf]
  %v606 = vld [vmem:[%s603 + $0x8] sm:$0xf]
  %v607 = vld [vmem:[%s603 + $0xc] sm:$0xf]
  %v608 = vld [vmem:[%s603 + $0x10] sm:$0xf]
  %v609 = vld [vmem:[%s603 + $0x14] sm:$0xf]
  %v610 = vld [vmem:[%s603 + $0x18] sm:$0xf]
  %v611 = vld [vmem:[%s603 + $0x1c] sm:$0xf]
  %v612 = vld [vmem:[%s603 + $0x20] sm:$0xf]
  %v613 = vld [vmem:[%s603 + $0x24] sm:$0xf]
  %v614 = vld [vmem:[%s603 + $0x28] sm:$0xf]
  %v615 = vld [vmem:[%s603 + $0x2c] sm:$0xf]
  %v616 = vld [vmem:[%s603 + $0x30] sm:$0xf]
  %v617 = vld [vmem:[%s603 + $0x34] sm:$0xf]
  %v618 = vld [vmem:[%s603 + $0x38] sm:$0xf]
  %v619 = vld [vmem:[%s603 + $0x3c] sm:$0xf]
  %v636 = vunpack.c.l.b16 %v604
  %v637 = vunpack.c.l.b16 %v605
  %v638 = vunpack.c.l.b16 %v606
  %v639 = vunpack.c.l.b16 %v607
  %v640 = vunpack.c.l.b16 %v608
  %v641 = vunpack.c.l.b16 %v609
  %v642 = vunpack.c.l.b16 %v610
  %v643 = vunpack.c.l.b16 %v611
  %v644 = vunpack.c.l.b16 %v612
  %v645 = vunpack.c.l.b16 %v613
  %v646 = vunpack.c.l.b16 %v614
  %v647 = vunpack.c.l.b16 %v615
  %v648 = vunpack.c.l.b16 %v616
  %v649 = vunpack.c.l.b16 %v617
  %v650 = vunpack.c.l.b16 %v618
  %v651 = vunpack.c.l.b16 %v619
  %v652 = vpack.c.b16 %v637, %v636
  %v653 = vpack.c.b16 %v639, %v638
  %v654 = vpack.c.b16 %v641, %v640
  %v655 = vpack.c.b16 %v643, %v642
  %v656 = vpack.c.b16 %v645, %v644
  %v657 = vpack.c.b16 %v647, %v646
  %v658 = vpack.c.b16 %v649, %v648
  %v659 = vpack.c.b16 %v651, %v650
  %v661 = vsel %vm86, %v652, 0
  %v664 = vsel %vm86, %v653, 0
  %v667 = vsel %vm86, %v654, 0
  %v670 = vsel %vm86, %v655, 0
  %v673 = vsel %vm86, %v656, 0
  %v676 = vsel %vm86, %v657, 0
  %v679 = vsel %vm86, %v658, 0
  %v682 = vsel %vm86, %v659, 0
  %684 = vmatprep.subr.bf16.mxu0 0
  %685 = vmatpush1.bf16.msra.mxu0 0
  %686 = vmatprep.subr.bf16.mxu0 0
  %687 = vmatpush1.bf16.msra.mxu0 0
  %688 = vmatprep.subr.bf16.mxu0 0
  %689 = vmatpush1.bf16.msra.mxu0 0
  %690 = vmatprep.subr.bf16.mxu0 0
  %691 = vmatpush1.bf16.msra.mxu0 0
  %692 = vmatprep.subr.bf16.mxu0 0
  %693 = vmatpush1.bf16.msra.mxu0 0
  %694 = vmatprep.subr.bf16.mxu0 0
  %695 = vmatpush1.bf16.msra.mxu0 0
  %696 = vmatprep.subr.bf16.mxu0 0
  %697 = vmatpush1.bf16.msra.mxu0 %v116
  %698 = vmatprep.subr.bf16.mxu0 0
  %699 = vmatpush1.bf16.msra.mxu0 %v83
  %700 = vmatprep.subr.bf16.mxu0 0
  %701 = vmatpush2.bf16.msra.mxu0 0
  %702 = vmatprep.subr.bf16.mxu0 0
  %703 = vmatpush2.bf16.msra.mxu0 0
  %704 = vmatprep.subr.bf16.mxu0 0
  %705 = vmatpush2.bf16.msra.mxu0 0
  %706 = vmatprep.subr.bf16.mxu0 0
  %707 = vmatpush2.bf16.msra.mxu0 0
  %708 = vmatprep.subr.bf16.mxu0 0
  %709 = vmatpush2.bf16.msra.mxu0 0
  %710 = vmatprep.subr.bf16.mxu0 0
  %711 = vmatpush2.bf16.msra.mxu0 0
  %712 = vmatprep.subr.bf16.mxu0 0
  %713 = vmatpush2.bf16.msra.mxu0 0
  %714 = vmatprep.subr.bf16.mxu0 0
  %715 = vmatpush2.bf16.msra.mxu0 0
  %716 = vmatprep.mubr.bf16.mxu0 0
  %717 = vmatmul.mubr.bf16.gmra.mxu0 %v661
  %v718 = vpop.f32.mrf.mxu0
  %v719 = vadd.f32 0.0, %v718
  %v720 = vpop.f32.mrf.mxu0
  %v721 = vpop.f32.mrf.mxu0
  %v722 = vadd.f32 0.0, %v721
  %v723 = vpop.f32.mrf.mxu0
  %724 = vmatprep.mubr.bf16.mxu0 0
  %725 = vmatmul.mubr.bf16.gmra.mxu0 %v664
  %v726 = vpop.f32.mrf.mxu0
  %v727 = vadd.f32 0.0, %v726
  %v728 = vpop.f32.mrf.mxu0
  %v729 = vpop.f32.mrf.mxu0
  %v730 = vadd.f32 0.0, %v729
  %v731 = vpop.f32.mrf.mxu0
  %732 = vmatprep.mubr.bf16.mxu0 0
  %733 = vmatmul.mubr.bf16.gmra.mxu0 %v667
  %v734 = vpop.f32.mrf.mxu0
  %v735 = vadd.f32 0.0, %v734
  %v736 = vpop.f32.mrf.mxu0
  %v737 = vpop.f32.mrf.mxu0
  %v738 = vadd.f32 0.0, %v737
  %v739 = vpop.f32.mrf.mxu0
  %740 = vmatprep.mubr.bf16.mxu0 0
  %741 = vmatmul.mubr.bf16.gmra.mxu0 %v670
  %v742 = vpop.f32.mrf.mxu0
  %v743 = vadd.f32 0.0, %v742
  %v744 = vpop.f32.mrf.mxu0
  %v745 = vpop.f32.mrf.mxu0
  %v746 = vadd.f32 0.0, %v745
  %v747 = vpop.f32.mrf.mxu0
  %748 = vmatprep.mubr.bf16.mxu0 0
  %749 = vmatmul.mubr.bf16.gmra.mxu0 %v673
  %v750 = vpop.f32.mrf.mxu0
  %v751 = vadd.f32 0.0, %v750
  %v752 = vpop.f32.mrf.mxu0
  %v753 = vpop.f32.mrf.mxu0
  %v754 = vadd.f32 0.0, %v753
  %v755 = vpop.f32.mrf.mxu0
  %756 = vmatprep.mubr.bf16.mxu0 0
  %757 = vmatmul.mubr.bf16.gmra.mxu0 %v676
  %v758 = vpop.f32.mrf.mxu0
  %v759 = vadd.f32 0.0, %v758
  %v760 = vpop.f32.mrf.mxu0
  %v761 = vpop.f32.mrf.mxu0
  %v762 = vadd.f32 0.0, %v761
  %v763 = vpop.f32.mrf.mxu0
  %764 = vmatprep.mubr.bf16.mxu0 0
  %765 = vmatmul.mubr.bf16.gmra.mxu0 %v679
  %v766 = vpop.f32.mrf.mxu0
  %v767 = vadd.f32 0.0, %v766
  %v768 = vpop.f32.mrf.mxu0
  %v769 = vpop.f32.mrf.mxu0
  %v770 = vadd.f32 0.0, %v769
  %v771 = vpop.f32.mrf.mxu0
  %772 = vmatprep.mubr.bf16.mxu0 0
  %773 = vmatmul.mubr.bf16.gmra.mxu0 %v682
  %v774 = vpop.f32.mrf.mxu0
  %v775 = vadd.f32 0.0, %v774
  %v776 = vpop.f32.mrf.mxu0
  %v777 = vpop.f32.mrf.mxu0
  %v778 = vadd.f32 0.0, %v777
  %v779 = vpop.f32.mrf.mxu0
  %780 = vdwg.mxu0
  %v781 = vmax.f32 %v587, %v719
  %v782 = vmax.f32 %v588, %v722
  %v783 = vmax.f32 %v589, %v727
  %v784 = vmax.f32 %v590, %v730
  %v785 = vmax.f32 %v591, %v735
  %v786 = vmax.f32 %v592, %v738
  %v787 = vmax.f32 %v593, %v743
  %v788 = vmax.f32 %v594, %v746
  %v789 = vmax.f32 %v595, %v751
  %v790 = vmax.f32 %v596, %v754
  %v791 = vmax.f32 %v597, %v759
  %v792 = vmax.f32 %v598, %v762
  %v793 = vmax.f32 %v599, %v767
  %v794 = vmax.f32 %v600, %v770
  %v795 = vmax.f32 %v601, %v775
  %v796 = vmax.f32 %v602, %v778
  %v797 = vld [vmem:[%s2] sm:$0x1]
  %v799 = vlaneseq
  %v800 = vshrl.u32 %v799, 7
  %v801 = vsub.s32 0, %v800
  %v802 = vrot.slane %v797, %v801
  %v804 = vadd.f32 %v781, %v802
  %v805 = vadd.f32 %v782, %v802
  %v806 = vadd.f32 %v783, %v802
  %v807 = vadd.f32 %v784, %v802
  %v808 = vadd.f32 %v785, %v802
  %v809 = vadd.f32 %v786, %v802
  %v810 = vadd.f32 %v787, %v802
  %v811 = vadd.f32 %v788, %v802
  %v812 = vadd.f32 %v789, %v802
  %v813 = vadd.f32 %v790, %v802
  %v814 = vadd.f32 %v791, %v802
  %v815 = vadd.f32 %v792, %v802
  %v816 = vadd.f32 %v793, %v802
  %v817 = vadd.f32 %v794, %v802
  %v818 = vadd.f32 %v795, %v802
  %v819 = vadd.f32 %v796, %v802
  %v820 = vmax.f32 %v804, 0.0
  %v821 = vmax.f32 %v805, 0.0
  %v822 = vmax.f32 %v806, 0.0
  %v823 = vmax.f32 %v807, 0.0
  %v824 = vmax.f32 %v808, 0.0
  %v825 = vmax.f32 %v809, 0.0
  %v826 = vmax.f32 %v810, 0.0
  %v827 = vmax.f32 %v811, 0.0
  %v828 = vmax.f32 %v812, 0.0
  %v829 = vmax.f32 %v813, 0.0
  %v830 = vmax.f32 %v814, 0.0
  %v831 = vmax.f32 %v815, 0.0
  %v832 = vmax.f32 %v816, 0.0
  %v833 = vmax.f32 %v817, 0.0
  %v834 = vmax.f32 %v818, 0.0
  %v835 = vmax.f32 %v819, 0.0
  %vm836 = vcmask 130048
  %837 = vst.msk [vmem:[%s3] sm:$0xff] %vm836, %v820
  %838 = vst.msk [vmem:[%s3 + $0x8] sm:$0xff] %vm836, %v821
  %839 = vst.msk [vmem:[%s3 + $0x10] sm:$0xff] %vm836, %v822
  %840 = vst.msk [vmem:[%s3 + $0x18] sm:$0xff] %vm836, %v823
  %841 = vst.msk [vmem:[%s3 + $0x20] sm:$0xff] %vm836, %v824
  %842 = vst.msk [vmem:[%s3 + $0x28] sm:$0xff] %vm836, %v825
  %843 = vst.msk [vmem:[%s3 + $0x30] sm:$0xff] %vm836, %v826
  %844 = vst.msk [vmem:[%s3 + $0x38] sm:$0xff] %vm836, %v827
  %845 = vst.msk [vmem:[%s3 + $0x40] sm:$0xff] %vm836, %v828
  %846 = vst.msk [vmem:[%s3 + $0x48] sm:$0xff] %vm836, %v829
  %847 = vst.msk [vmem:[%s3 + $0x50] sm:$0xff] %vm836, %v830
  %848 = vst.msk [vmem:[%s3 + $0x58] sm:$0xff] %vm836, %v831
  %849 = vst.msk [vmem:[%s3 + $0x60] sm:$0xff] %vm836, %v832
  %850 = vst.msk [vmem:[%s3 + $0x68] sm:$0xff] %vm836, %v833
  %851 = vst.msk [vmem:[%s3 + $0x70] sm:$0xff] %vm836, %v834
  %852 = vst.msk [vmem:[%s3 + $0x78] sm:$0xff] %vm836, %v835
  // Predicated region
  $region14: #{vgg_forward.3} parent=0 // pred_check
    _
  $region15: #{vgg_forward.3} parent=0 // pred_check_branch
    %854 = sbr.rel (0) target = $region17
  $region16: #{vgg_forward.3} parent=0 // pred_region
    _
  $region17: #{vgg_forward.3} parent=0 // pred_fallthru
    _
  // Predicated region
  $region18: #{vgg_forward.3} parent=0 // pred_check
    _
  $region19: #{vgg_forward.3} parent=0 // pred_check_branch
    %856 = sbr.rel (0) target = $region21
  $region20: #{vgg_forward.3} parent=0 // pred_region
    _
  $region21: #{vgg_forward.3} parent=0 // pred_fallthru
    _

// kernel: vgg_forward.4
$region0: #{vgg_forward.4}
  #allocation0 [shape = 'u32[]', space=smem, size = 0x4, offset = 0x4, fixed_abs, tag = 'smem constant byte address 0x4 - core index']
  #allocation1 [shape = 'u32[144,128]{1,0:T(1,128)}', space=vmem, size = 0x12000, scoped, tag = 'internal scratch']
  %s0 = inlined_call_operand.vmem [shape: bf16[4,32,144], index: 0, kind: input, shape index: {}]
  %s1 = inlined_call_operand.vmem [shape: bf16[144,32], index: 1, kind: input, shape index: {}]
  %s2 = inlined_call_operand.vmem [shape: f32[1,32], index: 2, kind: input, shape index: {}]
  %s3 = inlined_call_operand.vmem [shape: f32[32,32], index: 3, kind: output, shape index: {}]
  %s4 = sld [smem:[#allocation0]]
  $region22: #{vgg_forward.4} parent=0
    _
  %s6 = ssub.s32 1, %s4
  %s7 = scalar_select 0, %s6, %s4
  // Predicated region
  $region2: #{vgg_forward.4} parent=0 // pred_check
    _
  $region3: #{vgg_forward.4} parent=0 // pred_check_branch
    %9 = sbr.rel (0) target = $region5
  $region4: #{vgg_forward.4} parent=0 // pred_region
    _
  $region5: #{vgg_forward.4} parent=0 // pred_fallthru
    _
  // Predicated region
  $region6: #{vgg_forward.4} parent=0 // pred_check
    _
  $region7: #{vgg_forward.4} parent=0 // pred_check_branch
    %11 = sbr.rel (0) target = $region9
  $region8: #{vgg_forward.4} parent=0 // pred_region
    _
  $region9: #{vgg_forward.4} parent=0 // pred_fallthru
    _
  // Predicated region
  $region10: #{vgg_forward.4} parent=0 // pred_check
    _
  $region11: #{vgg_forward.4} parent=0 // pred_check_branch
    %13 = sbr.rel (0) target = $region13
  $region12: #{vgg_forward.4} parent=0 // pred_region
    _
  $region13: #{vgg_forward.4} parent=0 // pred_fallthru
    _
  %v15 = vld [vmem:[%s1] sm:$0xf]
  %v16 = vld [vmem:[%s1 + $0x4] sm:$0xf]
  %v17 = vld [vmem:[%s1 + $0x8] sm:$0xf]
  %v18 = vld [vmem:[%s1 + $0xc] sm:$0xf]
  %v19 = vld [vmem:[%s1 + $0x10] sm:$0xf]
  %v20 = vld [vmem:[%s1 + $0x14] sm:$0xf]
  %v21 = vld [vmem:[%s1 + $0x18] sm:$0xf]
  %v22 = vld [vmem:[%s1 + $0x1c] sm:$0xf]
  %v23 = vld [vmem:[%s1 + $0x20] sm:$0xf]
  %v24 = vld [vmem:[%s1 + $0x24] sm:$0xf]
  %v25 = vld [vmem:[%s1 + $0x28] sm:$0xf]
  %v26 = vld [vmem:[%s1 + $0x2c] sm:$0xf]
  %v27 = vld [vmem:[%s1 + $0x30] sm:$0xf]
  %v28 = vld [vmem:[%s1 + $0x34] sm:$0xf]
  %v29 = vld [vmem:[%s1 + $0x38] sm:$0xf]
  %v30 = vld [vmem:[%s1 + $0x3c] sm:$0xf]
  %v31 = vld [vmem:[%s1 + $0x40] sm:$0xf]
  %v32 = vld [vmem:[%s1 + $0x44] sm:$0xf]
  %v33 = vld [vmem:[%s0] sm:$0xff]
  %v34 = vld [vmem:[%s0 + $0x8] sm:$0xff]
  %v35 = vld [vmem:[%s0 + $0x10] sm:$0xff]
  %v36 = vld [vmem:[%s0 + $0x18] sm:$0xff]
  %v41 = vunpack.c.l.b16 %v33
  %v42 = vunpack.c.h.b16 %v33
  %v43 = vunpack.c.l.b16 %v34
  %v44 = vunpack.c.h.b16 %v34
  %v45 = vunpack.c.l.b16 %v35
  %v46 = vunpack.c.h.b16 %v35
  %v47 = vunpack.c.l.b16 %v36
  %v48 = vunpack.c.h.b16 %v36
  %v49 = vpack.c.b16 %v43, %v41
  %v50 = vpack.c.b16 %v44, %v42
  %v51 = vpack.c.b16 %v47, %v45
  %v52 = vpack.c.b16 %v48, %v46
  %v73 = vunpack.c.l.b16 %v15
  %v74 = vunpack.c.l.b16 %v16
  %v75 = vunpack.c.l.b16 %v17
  %v76 = vunpack.c.l.b16 %v18
  %v77 = vunpack.c.l.b16 %v19
  %v78 = vunpack.c.l.b16 %v20
  %v79 = vunpack.c.l.b16 %v21
  %v80 = vunpack.c.l.b16 %v22
  %v81 = vunpack.c.l.b16 %v23
  %v82 = vunpack.c.l.b16 %v24
  %v83 = vunpack.c.l.b16 %v25
  %v84 = vunpack.c.l.b16 %v26
  %v85 = vunpack.c.l.b16 %v27
  %v86 = vunpack.c.l.b16 %v28
  %v87 = vunpack.c.l.b16 %v29
  %v88 = vunpack.c.l.b16 %v30
  %v89 = vunpack.c.l.b16 %v31
  %v90 = vunpack.c.l.b16 %v32
  %v91 = vpack.c.b16 %v74, %v73
  %v92 = vpack.c.b16 %v76, %v75
  %v93 = vpack.c.b16 %v78, %v77
  %v94 = vpack.c.b16 %v80, %v79
  %v95 = vpack.c.b16 %v82, %v81
  %v96 = vpack.c.b16 %v84, %v83
  %v97 = vpack.c.b16 %v86, %v85
  %v98 = vpack.c.b16 %v88, %v87
  %v99 = vpack.c.b16 %v90, %v89
  %vm109 = vcmask 130048
  %v111 = vsel %vm109, %v50, 0
  %v114 = vsel %vm109, %v52, 0
  %116 = vmatprep.subr.bf16.mxu0 0
  %117 = vmatpush1.bf16.msra.mxu0 %v98
  %118 = vmatprep.subr.bf16.mxu0 0
  %119 = vmatpush1.bf16.msra.mxu0 %v97
  %120 = vmatprep.subr.bf16.mxu0 0
  %121 = vmatpush1.bf16.msra.mxu0 %v96
  %122 = vmatprep.subr.bf16.mxu0 0
  %123 = vmatpush1.bf16.msra.mxu0 %v95
  %124 = vmatprep.subr.bf16.mxu0 0
  %125 = vmatpush1.bf16.msra.mxu0 %v94
  %126 = vmatprep.subr.bf16.mxu0 0
  %127 = vmatpush1.bf16.msra.mxu0 %v93
  %128 = vmatprep.subr.bf16.mxu0 0
  %129 = vmatpush1.bf16.msra.mxu0 %v92
  %130 = vmatprep.subr.bf16.mxu0 0
  %131 = vmatpush1.bf16.msra.mxu0 %v91
  %132 = vmatprep.subr.bf16.mxu0 0
  %133 = vmatpush2.bf16.msra.mxu0 0
  %134 = vmatprep.subr.bf16.mxu0 0
  %135 = vmatpush2.bf16.msra.mxu0 0
  %136 = vmatprep.subr.bf16.mxu0 0
  %137 = vmatpush2.bf16.msra.mxu0 0
  %138 = vmatprep.subr.bf16.mxu0 0
  %139 = vmatpush2.bf16.msra.mxu0 0
  %140 = vmatprep.subr.bf16.mxu0 0
  %141 = vmatpush2.bf16.msra.mxu0 0
  %142 = vmatprep.subr.bf16.mxu0 0
  %143 = vmatpush2.bf16.msra.mxu0 0
  %144 = vmatprep.subr.bf16.mxu0 0
  %145 = vmatpush2.bf16.msra.mxu0 0
  %146 = vmatprep.subr.bf16.mxu0 0
  %147 = vmatpush2.bf16.msra.mxu0 %v99
  %148 = vmatprep.mubr.bf16.mxu0 %v111
  %149 = vmatmul.mubr.bf16.gmra.mxu0 %v49
  %v150 = vpop.f32.mrf.mxu0
  %v151 = vadd.f32 0.0, %v150
  %v152 = vpop.f32.mrf.mxu0
  %v153 = vpop.f32.mrf.mxu0
  %v154 = vadd.f32 0.0, %v153
  %v155 = vpop.f32.mrf.mxu0
  %156 = vmatprep.mubr.bf16.mxu0 %v114
  %157 = vmatmul.mubr.bf16.gmra.mxu0 %v51
  %v158 = vpop.f32.mrf.mxu0
  %v159 = vadd.f32 0.0, %v158
  %v160 = vpop.f32.mrf.mxu0
  %v161 = vpop.f32.mrf.mxu0
  %v162 = vadd.f32 0.0, %v161
  %v163 = vpop.f32.mrf.mxu0
  %164 = vdwg.mxu0
  %s165 = scalar_lea.vmem %s0, 32
  %v166 = vld [vmem:[%s165] sm:$0xff]
  %v167 = vld [vmem:[%s165 + $0x8] sm:$0xff]
  %v168 = vld [vmem:[%s165 + $0x10] sm:$0xff]
  %v169 = vld [vmem:[%s165 + $0x18] sm:$0xff]
  %v174 = vunpack.c.l.b16 %v166
  %v175 = vunpack.c.h.b16 %v166
  %v176 = vunpack.c.l.b16 %v167
  %v177 = vunpack.c.h.b16 %v167
  %v178 = vunpack.c.l.b16 %v168
  %v179 = vunpack.c.h.b16 %v168
  %v180 = vunpack.c.l.b16 %v169
  %v181 = vunpack.c.h.b16 %v169
  %v182 = vpack.c.b16 %v176, %v174
  %v183 = vpack.c.b16 %v177, %v175
  %v184 = vpack.c.b16 %v180, %v178
  %v185 = vpack.c.b16 %v181, %v179
  %v189 = vsel %vm109, %v183, 0
  %v192 = vsel %vm109, %v185, 0
  %194 = vmatprep.subr.bf16.mxu0 0
  %195 = vmatpush1.bf16.msra.mxu0 %v98
  %196 = vmatprep.subr.bf16.mxu0 0
  %197 = vmatpush1.bf16.msra.mxu0 %v97
  %198 = vmatprep.subr.bf16.mxu0 0
  %199 = vmatpush1.bf16.msra.mxu0 %v96
  %200 = vmatprep.subr.bf16.mxu0 0
  %201 = vmatpush1.bf16.msra.mxu0 %v95
  %202 = vmatprep.subr.bf16.mxu0 0
  %203 = vmatpush1.bf16.msra.mxu0 %v94
  %204 = vmatprep.subr.bf16.mxu0 0
  %205 = vmatpush1.bf16.msra.mxu0 %v93
  %206 = vmatprep.subr.bf16.mxu0 0
  %207 = vmatpush1.bf16.msra.mxu0 %v92
  %208 = vmatprep.subr.bf16.mxu0 0
  %209 = vmatpush1.bf16.msra.mxu0 %v91
  %210 = vmatprep.subr.bf16.mxu0 0
  %211 = vmatpush2.bf16.msra.mxu0 0
  %212 = vmatprep.subr.bf16.mxu0 0
  %213 = vmatpush2.bf16.msra.mxu0 0
  %214 = vmatprep.subr.bf16.mxu0 0
  %215 = vmatpush2.bf16.msra.mxu0 0
  %216 = vmatprep.subr.bf16.mxu0 0
  %217 = vmatpush2.bf16.msra.mxu0 0
  %218 = vmatprep.subr.bf16.mxu0 0
  %219 = vmatpush2.bf16.msra.mxu0 0
  %220 = vmatprep.subr.bf16.mxu0 0
  %221 = vmatpush2.bf16.msra.mxu0 0
  %222 = vmatprep.subr.bf16.mxu0 0
  %223 = vmatpush2.bf16.msra.mxu0 0
  %224 = vmatprep.subr.bf16.mxu0 0
  %225 = vmatpush2.bf16.msra.mxu0 %v99
  %226 = vmatprep.mubr.bf16.mxu0 %v189
  %227 = vmatmul.mubr.bf16.gmra.mxu0 %v182
  %v228 = vpop.f32.mrf.mxu0
  %v229 = vadd.f32 0.0, %v228
  %v230 = vpop.f32.mrf.mxu0
  %v231 = vpop.f32.mrf.mxu0
  %v232 = vadd.f32 0.0, %v231
  %v233 = vpop.f32.mrf.mxu0
  %234 = vmatprep.mubr.bf16.mxu0 %v192
  %235 = vmatmul.mubr.bf16.gmra.mxu0 %v184
  %v236 = vpop.f32.mrf.mxu0
  %v237 = vadd.f32 0.0, %v236
  %v238 = vpop.f32.mrf.mxu0
  %v239 = vpop.f32.mrf.mxu0
  %v240 = vadd.f32 0.0, %v239
  %v241 = vpop.f32.mrf.mxu0
  %242 = vdwg.mxu0
  %v243 = vmax.f32 %v151, %v229
  %v244 = vmax.f32 %v154, %v232
  %v245 = vmax.f32 %v159, %v237
  %v246 = vmax.f32 %v162, %v240
  %s247 = scalar_lea.vmem %s0, 64
  %v248 = vld [vmem:[%s247] sm:$0xff]
  %v249 = vld [vmem:[%s247 + $0x8] sm:$0xff]
  %v250 = vld [vmem:[%s247 + $0x10] sm:$0xff]
  %v251 = vld [vmem:[%s247 + $0x18] sm:$0xff]
  %v256 = vunpack.c.l.b16 %v248
  %v257 = vunpack.c.h.b16 %v248
  %v258 = vunpack.c.l.b16 %v249
  %v259 = vunpack.c.h.b16 %v249
  %v260 = vunpack.c.l.b16 %v250
  %v261 = vunpack.c.h.b16 %v250
  %v262 = vunpack.c.l.b16 %v251
  %v263 = vunpack.c.h.b16 %v251
  %v264 = vpack.c.b16 %v258, %v256
  %v265 = vpack.c.b16 %v259, %v257
  %v266 = vpack.c.b16 %v262, %v260
  %v267 = vpack.c.b16 %v263, %v261
  %v271 = vsel %vm109, %v265, 0
  %v274 = vsel %vm109, %v267, 0
  %276 = vmatprep.subr.bf16.mxu0 0
  %277 = vmatpush1.bf16.msra.mxu0 %v98
  %278 = vmatprep.subr.bf16.mxu0 0
  %279 = vmatpush1.bf16.msra.mxu0 %v97
  %280 = vmatprep.subr.bf16.mxu0 0
  %281 = vmatpush1.bf16.msra.mxu0 %v96
  %282 = vmatprep.subr.bf16.mxu0 0
  %283 = vmatpush1.bf16.msra.mxu0 %v95
  %284 = vmatprep.subr.bf16.mxu0 0
  %285 = vmatpush1.bf16.msra.mxu0 %v94
  %286 = vmatprep.subr.bf16.mxu0 0
  %287 = vmatpush1.bf16.msra.mxu0 %v93
  %288 = vmatprep.subr.bf16.mxu0 0
  %289 = vmatpush1.bf16.msra.mxu0 %v92
  %290 = vmatprep.subr.bf16.mxu0 0
  %291 = vmatpush1.bf16.msra.mxu0 %v91
  %292 = vmatprep.subr.bf16.mxu0 0
  %293 = vmatpush2.bf16.msra.mxu0 0
  %294 = vmatprep.subr.bf16.mxu0 0
  %295 = vmatpush2.bf16.msra.mxu0 0
  %296 = vmatprep.subr.bf16.mxu0 0
  %297 = vmatpush2.bf16.msra.mxu0 0
  %298 = vmatprep.subr.bf16.mxu0 0
  %299 = vmatpush2.bf16.msra.mxu0 0
  %300 = vmatprep.subr.bf16.mxu0 0
  %301 = vmatpush2.bf16.msra.mxu0 0
  %302 = vmatprep.subr.bf16.mxu0 0
  %303 = vmatpush2.bf16.msra.mxu0 0
  %304 = vmatprep.subr.bf16.mxu0 0
  %305 = vmatpush2.bf16.msra.mxu0 0
  %306 = vmatprep.subr.bf16.mxu0 0
  %307 = vmatpush2.bf16.msra.mxu0 %v99
  %308 = vmatprep.mubr.bf16.mxu0 %v271
  %309 = vmatmul.mubr.bf16.gmra.mxu0 %v264
  %v310 = vpop.f32.mrf.mxu0
  %v311 = vadd.f32 0.0, %v310
  %v312 = vpop.f32.mrf.mxu0
  %v313 = vpop.f32.mrf.mxu0
  %v314 = vadd.f32 0.0, %v313
  %v315 = vpop.f32.mrf.mxu0
  %316 = vmatprep.mubr.bf16.mxu0 %v274
  %317 = vmatmul.mubr.bf16.gmra.mxu0 %v266
  %v318 = vpop.f32.mrf.mxu0
  %v319 = vadd.f32 0.0, %v318
  %v320 = vpop.f32.mrf.mxu0
  %v321 = vpop.f32.mrf.mxu0
  %v322 = vadd.f32 0.0, %v321
  %v323 = vpop.f32.mrf.mxu0
  %324 = vdwg.mxu0
  %v325 = vmax.f32 %v243, %v311
  %v326 = vmax.f32 %v244, %v314
  %v327 = vmax.f32 %v245, %v319
  %v328 = vmax.f32 %v246, %v322
  %s329 = scalar_lea.vmem %s0, 96
  %v330 = vld [vmem:[%s329] sm:$0xff]
  %v331 = vld [vmem:[%s329 + $0x8] sm:$0xff]
  %v332 = vld [vmem:[%s329 + $0x10] sm:$0xff]
  %v333 = vld [vmem:[%s329 + $0x18] sm:$0xff]
  %v338 = vunpack.c.l.b16 %v330
  %v339 = vunpack.c.h.b16 %v330
  %v340 = vunpack.c.l.b16 %v331
  %v341 = vunpack.c.h.b16 %v331
  %v342 = vunpack.c.l.b16 %v332
  %v343 = vunpack.c.h.b16 %v332
  %v344 = vunpack.c.l.b16 %v333
  %v345 = vunpack.c.h.b16 %v333
  %v346 = vpack.c.b16 %v340, %v338
  %v347 = vpack.c.b16 %v341, %v339
  %v348 = vpack.c.b16 %v344, %v342
  %v349 = vpack.c.b16 %v345, %v343
  %v353 = vsel %vm109, %v347, 0
  %v356 = vsel %vm109, %v349, 0
  %358 = vmatprep.subr.bf16.mxu0 0
  %359 = vmatpush1.bf16.msra.mxu0 %v98
  %360 = vmatprep.subr.bf16.mxu0 0
  %361 = vmatpush1.bf16.msra.mxu0 %v97
  %362 = vmatprep.subr.bf16.mxu0 0
  %363 = vmatpush1.bf16.msra.mxu0 %v96
  %364 = vmatprep.subr.bf16.mxu0 0
  %365 = vmatpush1.bf16.msra.mxu0 %v95
  %366 = vmatprep.subr.bf16.mxu0 0
  %367 = vmatpush1.bf16.msra.mxu0 %v94
  %368 = vmatprep.subr.bf16.mxu0 0
  %369 = vmatpush1.bf16.msra.mxu0 %v93
  %370 = vmatprep.subr.bf16.mxu0 0
  %371 = vmatpush1.bf16.msra.mxu0 %v92
  %372 = vmatprep.subr.bf16.mxu0 0
  %373 = vmatpush1.bf16.msra.mxu0 %v91
  %374 = vmatprep.subr.bf16.mxu0 0
  %375 = vmatpush2.bf16.msra.mxu0 0
  %376 = vmatprep.subr.bf16.mxu0 0
  %377 = vmatpush2.bf16.msra.mxu0 0
  %378 = vmatprep.subr.bf16.mxu0 0
  %379 = vmatpush2.bf16.msra.mxu0 0
  %380 = vmatprep.subr.bf16.mxu0 0
  %381 = vmatpush2.bf16.msra.mxu0 0
  %382 = vmatprep.subr.bf16.mxu0 0
  %383 = vmatpush2.bf16.msra.mxu0 0
  %384 = vmatprep.subr.bf16.mxu0 0
  %385 = vmatpush2.bf16.msra.mxu0 0
  %386 = vmatprep.subr.bf16.mxu0 0
  %387 = vmatpush2.bf16.msra.mxu0 0
  %388 = vmatprep.subr.bf16.mxu0 0
  %389 = vmatpush2.bf16.msra.mxu0 %v99
  %390 = vmatprep.mubr.bf16.mxu0 %v353
  %391 = vmatmul.mubr.bf16.gmra.mxu0 %v346
  %v392 = vpop.f32.mrf.mxu0
  %v393 = vadd.f32 0.0, %v392
  %v394 = vpop.f32.mrf.mxu0
  %v395 = vpop.f32.mrf.mxu0
  %v396 = vadd.f32 0.0, %v395
  %v397 = vpop.f32.mrf.mxu0
  %398 = vmatprep.mubr.bf16.mxu0 %v356
  %399 = vmatmul.mubr.bf16.gmra.mxu0 %v348
  %v400 = vpop.f32.mrf.mxu0
  %v401 = vadd.f32 0.0, %v400
  %v402 = vpop.f32.mrf.mxu0
  %v403 = vpop.f32.mrf.mxu0
  %v404 = vadd.f32 0.0, %v403
  %v405 = vpop.f32.mrf.mxu0
  %406 = vdwg.mxu0
  %v407 = vmax.f32 %v325, %v393
  %v408 = vmax.f32 %v326, %v396
  %v409 = vmax.f32 %v327, %v401
  %v410 = vmax.f32 %v328, %v404
  %v411 = vld [vmem:[%s2] sm:$0x1]
  %v413 = vlaneseq
  %v414 = vshrl.u32 %v413, 7
  %v415 = vsub.s32 0, %v414
  %v416 = vrot.slane %v411, %v415
  %v418 = vadd.f32 %v407, %v416
  %v419 = vadd.f32 %v408, %v416
  %v420 = vadd.f32 %v409, %v416
  %v421 = vadd.f32 %v410, %v416
  %v422 = vmax.f32 %v418, 0.0
  %v423 = vmax.f32 %v419, 0.0
  %v424 = vmax.f32 %v420, 0.0
  %v425 = vmax.f32 %v421, 0.0
  %vm426 = vcmask 261120
  %427 = vst.msk [vmem:[%s3] sm:$0xff] %vm426, %v422
  %428 = vst.msk [vmem:[%s3 + $0x8] sm:$0xff] %vm426, %v423
  %429 = vst.msk [vmem:[%s3 + $0x10] sm:$0xff] %vm426, %v424
  %430 = vst.msk [vmem:[%s3 + $0x18] sm:$0xff] %vm426, %v425
  // Predicated region
  $region14: #{vgg_forward.4} parent=0 // pred_check
    _
  $region15: #{vgg_forward.4} parent=0 // pred_check_branch
    %432 = sbr.rel (0) target = $region17
  $region16: #{vgg_forward.4} parent=0 // pred_region
    _
  $region17: #{vgg_forward.4} parent=0 // pred_fallthru
    _
  // Predicated region
  $region18: #{vgg_forward.4} parent=0 // pred_check
    _
  $region19: #{vgg_forward.4} parent=0 // pred_check_branch
    %434 = sbr.rel (0) target = $region21
  $region20: #{vgg_forward.4} parent=0 // pred_region
    _
  $region21: #{vgg_forward.4} parent=0 // pred_fallthru
    _

// kernel: vgg_forward.5
$region0: #{vgg_forward.5}
  #allocation0 [shape = 'u32[]', space=smem, size = 0x4, offset = 0x4, fixed_abs, tag = 'smem constant byte address 0x4 - core index']
  #allocation1 [shape = 'u32[144,128]{1,0:T(1,128)}', space=vmem, size = 0x12000, scoped, tag = 'internal scratch']
  %s0 = inlined_call_operand.vmem [shape: bf16[2,512], index: 0, kind: input, shape index: {}]
  %s1 = inlined_call_operand.vmem [shape: bf16[512,1024], index: 1, kind: input, shape index: {}]
  %s2 = inlined_call_operand.vmem [shape: f32[1,1024], index: 2, kind: input, shape index: {}]
  %s3 = inlined_call_operand.vmem [shape: bf16[1024,256], index: 3, kind: input, shape index: {}]
  %s4 = inlined_call_operand.vmem [shape: f32[1,256], index: 4, kind: input, shape index: {}]
  %s5 = inlined_call_operand.vmem [shape: bf16[256,10], index: 5, kind: input, shape index: {}]
  %s6 = inlined_call_operand.vmem [shape: f32[1,10], index: 6, kind: input, shape index: {}]
  %s7 = inlined_call_operand.hbm [shape: f32[2,10], index: 7, kind: output, shape index: {}]
  %s8 = sld [smem:[#allocation0]]
  $region38: #{vgg_forward.5} parent=0
    _
  %s10 = ssub.s32 1, %s8
  %s11 = scalar_select 0, %s10, %s8
  $region1: #{vgg_forward.5} parent=0
    #allocation2 [shape = 'u8[1024]{0}', space=vmem, size = 0x400, scoped, tag = 'output window, operand 0, single buffered']
    #allocation3 [shape = 's32[1]{0}', space=sflag, size = 0x4, scoped, tag = 'scoped memory for vgg_forward.5']
    %12 = vsyncpa [#allocation3], 0
    // Predicated region
    $region2: #{vgg_forward.5} parent=1 // pred_check
      _
    $region3: #{vgg_forward.5} parent=1 // pred_check_branch
      %14 = sbr.rel (0) target = $region5
    $region4: #{vgg_forward.5} parent=1 // pred_region
      _
    $region5: #{vgg_forward.5} parent=1 // pred_fallthru
      _
    // Predicated region
    $region6: #{vgg_forward.5} parent=1 // pred_check
      _
    $region7: #{vgg_forward.5} parent=1 // pred_check_branch
      %16 = sbr.rel (0) target = $region9
    $region8: #{vgg_forward.5} parent=1 // pred_region
      _
    $region9: #{vgg_forward.5} parent=1 // pred_fallthru
      _
    // Predicated region
    $region10: #{vgg_forward.5} parent=1 // pred_check
      _
    $region11: #{vgg_forward.5} parent=1 // pred_check_branch
      %18 = sbr.rel (0) target = $region13
    $region12: #{vgg_forward.5} parent=1 // pred_region
      _
    $region13: #{vgg_forward.5} parent=1 // pred_fallthru
      _
    // Predicated region
    $region14: #{vgg_forward.5} parent=1 // pred_check
      _
    $region15: #{vgg_forward.5} parent=1 // pred_check_branch
      %20 = sbr.rel (0) target = $region17
    $region16: #{vgg_forward.5} parent=1 // pred_region
      _
    $region17: #{vgg_forward.5} parent=1 // pred_fallthru
      _
    // Predicated region
    $region18: #{vgg_forward.5} parent=1 // pred_check
      _
    $region19: #{vgg_forward.5} parent=1 // pred_check_branch
      %22 = sbr.rel (0) target = $region21
    $region20: #{vgg_forward.5} parent=1 // pred_region
      _
    $region21: #{vgg_forward.5} parent=1 // pred_fallthru
      _
    // Predicated region
    $region22: #{vgg_forward.5} parent=1 // pred_check
      _
    $region23: #{vgg_forward.5} parent=1 // pred_check_branch
      %24 = sbr.rel (0) target = $region25
    $region24: #{vgg_forward.5} parent=1 // pred_region
      _
    $region25: #{vgg_forward.5} parent=1 // pred_fallthru
      _
    // Predicated region
    $region26: #{vgg_forward.5} parent=1 // pred_check
      _
    $region27: #{vgg_forward.5} parent=1 // pred_check_branch
      %26 = sbr.rel (0) target = $region29
    $region28: #{vgg_forward.5} parent=1 // pred_region
      _
    $region29: #{vgg_forward.5} parent=1 // pred_fallthru
      _
    %v28 = vld [vmem:[%s0] sm:$0xf]
    %v29 = vld [vmem:[%s1] sm:$0xff]
    %v30 = vld [vmem:[%s1 + $0x8] sm:$0xff]
    %v31 = vld [vmem:[%s1 + $0x10] sm:$0xff]
    %v32 = vld [vmem:[%s1 + $0x18] sm:$0xff]
    %v33 = vld [vmem:[%s1 + $0x20] sm:$0xff]
    %v34 = vld [vmem:[%s1 + $0x28] sm:$0xff]
    %v35 = vld [vmem:[%s1 + $0x30] sm:$0xff]
    %v36 = vld [vmem:[%s1 + $0x38] sm:$0xff]
    %v37 = vld [vmem:[%s1 + $0x40] sm:$0xff]
    %v38 = vld [vmem:[%s1 + $0x48] sm:$0xff]
    %v39 = vld [vmem:[%s1 + $0x50] sm:$0xff]
    %v40 = vld [vmem:[%s1 + $0x58] sm:$0xff]
    %v41 = vld [vmem:[%s1 + $0x60] sm:$0xff]
    %v42 = vld [vmem:[%s1 + $0x68] sm:$0xff]
    %v43 = vld [vmem:[%s1 + $0x70] sm:$0xff]
    %v44 = vld [vmem:[%s1 + $0x78] sm:$0xff]
    %v45 = vld [vmem:[%s1 + $0x80] sm:$0xff]
    %v46 = vld [vmem:[%s1 + $0x88] sm:$0xff]
    %v47 = vld [vmem:[%s1 + $0x90] sm:$0xff]
    %v48 = vld [vmem:[%s1 + $0x98] sm:$0xff]
    %v49 = vld [vmem:[%s1 + $0xa0] sm:$0xff]
    %v50 = vld [vmem:[%s1 + $0xa8] sm:$0xff]
    %v51 = vld [vmem:[%s1 + $0xb0] sm:$0xff]
    %v52 = vld [vmem:[%s1 + $0xb8] sm:$0xff]
    %v53 = vld [vmem:[%s1 + $0xc0] sm:$0xff]
    %v54 = vld [vmem:[%s1 + $0xc8] sm:$0xff]
    %v55 = vld [vmem:[%s1 + $0xd0] sm:$0xff]
    %v56 = vld [vmem:[%s1 + $0xd8] sm:$0xff]
    %v57 = vld [vmem:[%s1 + $0xe0] sm:$0xff]
    %v58 = vld [vmem:[%s1 + $0xe8] sm:$0xff]
    %v59 = vld [vmem:[%s1 + $0xf0] sm:$0xff]
    %v60 = vld [vmem:[%s1 + $0xf8] sm:$0xff]
    %v61 = vld [vmem:[%s1 + $0x100] sm:$0xff]
    %v62 = vld [vmem:[%s1 + $0x108] sm:$0xff]
    %v63 = vld [vmem:[%s1 + $0x110] sm:$0xff]
    %v64 = vld [vmem:[%s1 + $0x118] sm:$0xff]
    %v65 = vld [vmem:[%s1 + $0x120] sm:$0xff]
    %v66 = vld [vmem:[%s1 + $0x128] sm:$0xff]
    %v67 = vld [vmem:[%s1 + $0x130] sm:$0xff]
    %v68 = vld [vmem:[%s1 + $0x138] sm:$0xff]
    %v69 = vld [vmem:[%s1 + $0x140] sm:$0xff]
    %v70 = vld [vmem:[%s1 + $0x148] sm:$0xff]
    %v71 = vld [vmem:[%s1 + $0x150] sm:$0xff]
    %v72 = vld [vmem:[%s1 + $0x158] sm:$0xff]
    %v73 = vld [vmem:[%s1 + $0x160] sm:$0xff]
    %v74 = vld [vmem:[%s1 + $0x168] sm:$0xff]
    %v75 = vld [vmem:[%s1 + $0x170] sm:$0xff]
    %v76 = vld [vmem:[%s1 + $0x178] sm:$0xff]
    %v77 = vld [vmem:[%s1 + $0x180] sm:$0xff]
    %v78 = vld [vmem:[%s1 + $0x188] sm:$0xff]
    %v79 = vld [vmem:[%s1 + $0x190] sm:$0xff]
    %v80 = vld [vmem:[%s1 + $0x198] sm:$0xff]
    %v81 = vld [vmem:[%s1 + $0x1a0] sm:$0xff]
    %v82 = vld [vmem:[%s1 + $0x1a8] sm:$0xff]
    %v83 = vld [vmem:[%s1 + $0x1b0] sm:$0xff]
    %v84 = vld [vmem:[%s1 + $0x1b8] sm:$0xff]
    %v85 = vld [vmem:[%s1 + $0x1c0] sm:$0xff]
    %v86 = vld [vmem:[%s1 + $0x1c8] sm:$0xff]
    %v87 = vld [vmem:[%s1 + $0x1d0] sm:$0xff]
    %v88 = vld [vmem:[%s1 + $0x1d8] sm:$0xff]
    %v89 = vld [vmem:[%s1 + $0x1e0] sm:$0xff]
    %v90 = vld [vmem:[%s1 + $0x1e8] sm:$0xff]
    %v91 = vld [vmem:[%s1 + $0x1f0] sm:$0xff]
    %v92 = vld [vmem:[%s1 + $0x1f8] sm:$0xff]
    %v93 = vld [vmem:[%s1 + $0x200] sm:$0xff]
    %v94 = vld [vmem:[%s1 + $0x208] sm:$0xff]
    %v95 = vld [vmem:[%s1 + $0x210] sm:$0xff]
    %v96 = vld [vmem:[%s1 + $0x218] sm:$0xff]
    %v97 = vld [vmem:[%s1 + $0x220] sm:$0xff]
    %v98 = vld [vmem:[%s1 + $0x228] sm:$0xff]
    %v99 = vld [vmem:[%s1 + $0x230] sm:$0xff]
    %v100 = vld [vmem:[%s1 + $0x238] sm:$0xff]
    %v101 = vld [vmem:[%s1 + $0x240] sm:$0xff]
    %v102 = vld [vmem:[%s1 + $0x248] sm:$0xff]
    %v103 = vld [vmem:[%s1 + $0x250] sm:$0xff]
    %v104 = vld [vmem:[%s1 + $0x258] sm:$0xff]
    %v105 = vld [vmem:[%s1 + $0x260] sm:$0xff]
    %v106 = vld [vmem:[%s1 + $0x268] sm:$0xff]
    %v107 = vld [vmem:[%s1 + $0x270] sm:$0xff]
    %v108 = vld [vmem:[%s1 + $0x278] sm:$0xff]
    %v109 = vld [vmem:[%s1 + $0x280] sm:$0xff]
    %v110 = vld [vmem:[%s1 + $0x288] sm:$0xff]
    %v111 = vld [vmem:[%s1 + $0x290] sm:$0xff]
    %v112 = vld [vmem:[%s1 + $0x298] sm:$0xff]
    %v113 = vld [vmem:[%s1 + $0x2a0] sm:$0xff]
    %v114 = vld [vmem:[%s1 + $0x2a8] sm:$0xff]
    %v115 = vld [vmem:[%s1 + $0x2b0] sm:$0xff]
    %v116 = vld [vmem:[%s1 + $0x2b8] sm:$0xff]
    %v117 = vld [vmem:[%s1 + $0x2c0] sm:$0xff]
    %v118 = vld [vmem:[%s1 + $0x2c8] sm:$0xff]
    %v119 = vld [vmem:[%s1 + $0x2d0] sm:$0xff]
    %v120 = vld [vmem:[%s1 + $0x2d8] sm:$0xff]
    %v121 = vld [vmem:[%s1 + $0x2e0] sm:$0xff]
    %v122 = vld [vmem:[%s1 + $0x2e8] sm:$0xff]
    %v123 = vld [vmem:[%s1 + $0x2f0] sm:$0xff]
    %v124 = vld [vmem:[%s1 + $0x2f8] sm:$0xff]
    %v125 = vld [vmem:[%s1 + $0x300] sm:$0xff]
    %v126 = vld [vmem:[%s1 + $0x308] sm:$0xff]
    %v127 = vld [vmem:[%s1 + $0x310] sm:$0xff]
    %v128 = vld [vmem:[%s1 + $0x318] sm:$0xff]
    %v129 = vld [vmem:[%s1 + $0x320] sm:$0xff]
    %v130 = vld [vmem:[%s1 + $0x328] sm:$0xff]
    %v131 = vld [vmem:[%s1 + $0x330] sm:$0xff]
    %v132 = vld [vmem:[%s1 + $0x338] sm:$0xff]
    %v133 = vld [vmem:[%s1 + $0x340] sm:$0xff]
    %v134 = vld [vmem:[%s1 + $0x348] sm:$0xff]
    %v135 = vld [vmem:[%s1 + $0x350] sm:$0xff]
    %v136 = vld [vmem:[%s1 + $0x358] sm:$0xff]
    %v137 = vld [vmem:[%s1 + $0x360] sm:$0xff]
    %v138 = vld [vmem:[%s1 + $0x368] sm:$0xff]
    %v139 = vld [vmem:[%s1 + $0x370] sm:$0xff]
    %v140 = vld [vmem:[%s1 + $0x378] sm:$0xff]
    %v141 = vld [vmem:[%s1 + $0x380] sm:$0xff]
    %v142 = vld [vmem:[%s1 + $0x388] sm:$0xff]
    %v143 = vld [vmem:[%s1 + $0x390] sm:$0xff]
    %v144 = vld [vmem:[%s1 + $0x398] sm:$0xff]
    %v145 = vld [vmem:[%s1 + $0x3a0] sm:$0xff]
    %v146 = vld [vmem:[%s1 + $0x3a8] sm:$0xff]
    %v147 = vld [vmem:[%s1 + $0x3b0] sm:$0xff]
    %v148 = vld [vmem:[%s1 + $0x3b8] sm:$0xff]
    %v149 = vld [vmem:[%s1 + $0x3c0] sm:$0xff]
    %v150 = vld [vmem:[%s1 + $0x3c8] sm:$0xff]
    %v151 = vld [vmem:[%s1 + $0x3d0] sm:$0xff]
    %v152 = vld [vmem:[%s1 + $0x3d8] sm:$0xff]
    %v153 = vld [vmem:[%s1 + $0x3e0] sm:$0xff]
    %v154 = vld [vmem:[%s1 + $0x3e8] sm:$0xff]
    %v155 = vld [vmem:[%s1 + $0x3f0] sm:$0xff]
    %v156 = vld [vmem:[%s1 + $0x3f8] sm:$0xff]
    %v157 = vld [vmem:[%s1 + $0x400] sm:$0xff]
    %v158 = vld [vmem:[%s1 + $0x408] sm:$0xff]
    %v159 = vld [vmem:[%s1 + $0x410] sm:$0xff]
    %v160 = vld [vmem:[%s1 + $0x418] sm:$0xff]
    %v161 = vld [vmem:[%s1 + $0x420] sm:$0xff]
    %v162 = vld [vmem:[%s1 + $0x428] sm:$0xff]
    %v163 = vld [vmem:[%s1 + $0x430] sm:$0xff]
    %v164 = vld [vmem:[%s1 + $0x438] sm:$0xff]
    %v165 = vld [vmem:[%s1 + $0x440] sm:$0xff]
    %v166 = vld [vmem:[%s1 + $0x448] sm:$0xff]
    %v167 = vld [vmem:[%s1 + $0x450] sm:$0xff]
    %v168 = vld [vmem:[%s1 + $0x458] sm:$0xff]
    %v169 = vld [vmem:[%s1 + $0x460] sm:$0xff]
    %v170 = vld [vmem:[%s1 + $0x468] sm:$0xff]
    %v171 = vld [vmem:[%s1 + $0x470] sm:$0xff]
    %v172 = vld [vmem:[%s1 + $0x478] sm:$0xff]
    %v173 = vld [vmem:[%s1 + $0x480] sm:$0xff]
    %v174 = vld [vmem:[%s1 + $0x488] sm:$0xff]
    %v175 = vld [vmem:[%s1 + $0x490] sm:$0xff]
    %v176 = vld [vmem:[%s1 + $0x498] sm:$0xff]
    %v177 = vld [vmem:[%s1 + $0x4a0] sm:$0xff]
    %v178 = vld [vmem:[%s1 + $0x4a8] sm:$0xff]
    %v179 = vld [vmem:[%s1 + $0x4b0] sm:$0xff]
    %v180 = vld [vmem:[%s1 + $0x4b8] sm:$0xff]
    %v181 = vld [vmem:[%s1 + $0x4c0] sm:$0xff]
    %v182 = vld [vmem:[%s1 + $0x4c8] sm:$0xff]
    %v183 = vld [vmem:[%s1 + $0x4d0] sm:$0xff]
    %v184 = vld [vmem:[%s1 + $0x4d8] sm:$0xff]
    %v185 = vld [vmem:[%s1 + $0x4e0] sm:$0xff]
    %v186 = vld [vmem:[%s1 + $0x4e8] sm:$0xff]
    %v187 = vld [vmem:[%s1 + $0x4f0] sm:$0xff]
    %v188 = vld [vmem:[%s1 + $0x4f8] sm:$0xff]
    %v189 = vld [vmem:[%s1 + $0x500] sm:$0xff]
    %v190 = vld [vmem:[%s1 + $0x508] sm:$0xff]
    %v191 = vld [vmem:[%s1 + $0x510] sm:$0xff]
    %v192 = vld [vmem:[%s1 + $0x518] sm:$0xff]
    %v193 = vld [vmem:[%s1 + $0x520] sm:$0xff]
    %v194 = vld [vmem:[%s1 + $0x528] sm:$0xff]
    %v195 = vld [vmem:[%s1 + $0x530] sm:$0xff]
    %v196 = vld [vmem:[%s1 + $0x538] sm:$0xff]
    %v197 = vld [vmem:[%s1 + $0x540] sm:$0xff]
    %v198 = vld [vmem:[%s1 + $0x548] sm:$0xff]
    %v199 = vld [vmem:[%s1 + $0x550] sm:$0xff]
    %v200 = vld [vmem:[%s1 + $0x558] sm:$0xff]
    %v201 = vld [vmem:[%s1 + $0x560] sm:$0xff]
    %v202 = vld [vmem:[%s1 + $0x568] sm:$0xff]
    %v203 = vld [vmem:[%s1 + $0x570] sm:$0xff]
    %v204 = vld [vmem:[%s1 + $0x578] sm:$0xff]
    %v205 = vld [vmem:[%s1 + $0x580] sm:$0xff]
    %v206 = vld [vmem:[%s1 + $0x588] sm:$0xff]
    %v207 = vld [vmem:[%s1 + $0x590] sm:$0xff]
    %v208 = vld [vmem:[%s1 + $0x598] sm:$0xff]
    %v209 = vld [vmem:[%s1 + $0x5a0] sm:$0xff]
    %v210 = vld [vmem:[%s1 + $0x5a8] sm:$0xff]
    %v211 = vld [vmem:[%s1 + $0x5b0] sm:$0xff]
    %v212 = vld [vmem:[%s1 + $0x5b8] sm:$0xff]
    %v213 = vld [vmem:[%s1 + $0x5c0] sm:$0xff]
    %v214 = vld [vmem:[%s1 + $0x5c8] sm:$0xff]
    %v215 = vld [vmem:[%s1 + $0x5d0] sm:$0xff]
    %v216 = vld [vmem:[%s1 + $0x5d8] sm:$0xff]
    %v217 = vld [vmem:[%s1 + $0x5e0] sm:$0xff]
    %v218 = vld [vmem:[%s1 + $0x5e8] sm:$0xff]
    %v219 = vld [vmem:[%s1 + $0x5f0] sm:$0xff]
    %v220 = vld [vmem:[%s1 + $0x5f8] sm:$0xff]
    %v221 = vld [vmem:[%s1 + $0x600] sm:$0xff]
    %v222 = vld [vmem:[%s1 + $0x608] sm:$0xff]
    %v223 = vld [vmem:[%s1 + $0x610] sm:$0xff]
    %v224 = vld [vmem:[%s1 + $0x618] sm:$0xff]
    %v225 = vld [vmem:[%s1 + $0x620] sm:$0xff]
    %v226 = vld [vmem:[%s1 + $0x628] sm:$0xff]
    %v227 = vld [vmem:[%s1 + $0x630] sm:$0xff]
    %v228 = vld [vmem:[%s1 + $0x638] sm:$0xff]
    %v229 = vld [vmem:[%s1 + $0x640] sm:$0xff]
    %v230 = vld [vmem:[%s1 + $0x648] sm:$0xff]
    %v231 = vld [vmem:[%s1 + $0x650] sm:$0xff]
    %v232 = vld [vmem:[%s1 + $0x658] sm:$0xff]
    %v233 = vld [vmem:[%s1 + $0x660] sm:$0xff]
    %v234 = vld [vmem:[%s1 + $0x668] sm:$0xff]
    %v235 = vld [vmem:[%s1 + $0x670] sm:$0xff]
    %v236 = vld [vmem:[%s1 + $0x678] sm:$0xff]
    %v237 = vld [vmem:[%s1 + $0x680] sm:$0xff]
    %v238 = vld [vmem:[%s1 + $0x688] sm:$0xff]
    %v239 = vld [vmem:[%s1 + $0x690] sm:$0xff]
    %v240 = vld [vmem:[%s1 + $0x698] sm:$0xff]
    %v241 = vld [vmem:[%s1 + $0x6a0] sm:$0xff]
    %v242 = vld [vmem:[%s1 + $0x6a8] sm:$0xff]
    %v243 = vld [vmem:[%s1 + $0x6b0] sm:$0xff]
    %v244 = vld [vmem:[%s1 + $0x6b8] sm:$0xff]
    %v245 = vld [vmem:[%s1 + $0x6c0] sm:$0xff]
    %v246 = vld [vmem:[%s1 + $0x6c8] sm:$0xff]
    %v247 = vld [vmem:[%s1 + $0x6d0] sm:$0xff]
    %v248 = vld [vmem:[%s1 + $0x6d8] sm:$0xff]
    %v249 = vld [vmem:[%s1 + $0x6e0] sm:$0xff]
    %v250 = vld [vmem:[%s1 + $0x6e8] sm:$0xff]
    %v251 = vld [vmem:[%s1 + $0x6f0] sm:$0xff]
    %v252 = vld [vmem:[%s1 + $0x6f8] sm:$0xff]
    %v253 = vld [vmem:[%s1 + $0x700] sm:$0xff]
    %v254 = vld [vmem:[%s1 + $0x708] sm:$0xff]
    %v255 = vld [vmem:[%s1 + $0x710] sm:$0xff]
    %v256 = vld [vmem:[%s1 + $0x718] sm:$0xff]
    %v257 = vld [vmem:[%s1 + $0x720] sm:$0xff]
    %v258 = vld [vmem:[%s1 + $0x728] sm:$0xff]
    %v259 = vld [vmem:[%s1 + $0x730] sm:$0xff]
    %v260 = vld [vmem:[%s1 + $0x738] sm:$0xff]
    %v261 = vld [vmem:[%s1 + $0x740] sm:$0xff]
    %v262 = vld [vmem:[%s1 + $0x748] sm:$0xff]
    %v263 = vld [vmem:[%s1 + $0x750] sm:$0xff]
    %v264 = vld [vmem:[%s1 + $0x758] sm:$0xff]
    %v265 = vld [vmem:[%s1 + $0x760] sm:$0xff]
    %v266 = vld [vmem:[%s1 + $0x768] sm:$0xff]
    %v267 = vld [vmem:[%s1 + $0x770] sm:$0xff]
    %v268 = vld [vmem:[%s1 + $0x778] sm:$0xff]
    %v269 = vld [vmem:[%s1 + $0x780] sm:$0xff]
    %v270 = vld [vmem:[%s1 + $0x788] sm:$0xff]
    %v271 = vld [vmem:[%s1 + $0x790] sm:$0xff]
    %v272 = vld [vmem:[%s1 + $0x798] sm:$0xff]
    %v273 = vld [vmem:[%s1 + $0x7a0] sm:$0xff]
    %v274 = vld [vmem:[%s1 + $0x7a8] sm:$0xff]
    %v275 = vld [vmem:[%s1 + $0x7b0] sm:$0xff]
    %v276 = vld [vmem:[%s1 + $0x7b8] sm:$0xff]
    %v277 = vld [vmem:[%s1 + $0x7c0] sm:$0xff]
    %v278 = vld [vmem:[%s1 + $0x7c8] sm:$0xff]
    %v279 = vld [vmem:[%s1 + $0x7d0] sm:$0xff]
    %v280 = vld [vmem:[%s1 + $0x7d8] sm:$0xff]
    %v281 = vld [vmem:[%s1 + $0x7e0] sm:$0xff]
    %v282 = vld [vmem:[%s1 + $0x7e8] sm:$0xff]
    %v283 = vld [vmem:[%s1 + $0x7f0] sm:$0xff]
    %v284 = vld [vmem:[%s1 + $0x7f8] sm:$0xff]
    %v285 = vld [vmem:[%s2] sm:$0xff]
    %v287 = vlaneseq
    %v288 = vshrl.u32 %v287, 7
    %v289 = vsub.s32 0, %v288
    %v290 = vrot.slane %v285, %v289
    %v291 = vlaneseq
    %v292 = vshrl.u32 %v291, 7
    %v293 = vsub.s32 1, %v292
    %v294 = vrot.slane %v285, %v293
    %v295 = vlaneseq
    %v296 = vshrl.u32 %v295, 7
    %v297 = vsub.s32 2, %v296
    %v298 = vrot.slane %v285, %v297
    %v299 = vlaneseq
    %v300 = vshrl.u32 %v299, 7
    %v301 = vsub.s32 3, %v300
    %v302 = vrot.slane %v285, %v301
    %v303 = vlaneseq
    %v304 = vshrl.u32 %v303, 7
    %v305 = vsub.s32 4, %v304
    %v306 = vrot.slane %v285, %v305
    %v307 = vlaneseq
    %v308 = vshrl.u32 %v307, 7
    %v309 = vsub.s32 5, %v308
    %v310 = vrot.slane %v285, %v309
    %v311 = vlaneseq
    %v312 = vshrl.u32 %v311, 7
    %v313 = vsub.s32 6, %v312
    %v314 = vrot.slane %v285, %v313
    %v315 = vlaneseq
    %v316 = vshrl.u32 %v315, 7
    %v317 = vsub.s32 7, %v316
    %v318 = vrot.slane %v285, %v317
    %v329 = vunpack.c.l.s4 1966171168
    %v330 = vunpack.c.0.s8 %v329
    %v331 = vlaneseq
    %v332 = vshrl.u32 %v331, 7
    %v333 = vsub.s32 %v330, %v332
    %v334 = vrot.slane %v28, %v333
    %v335 = vcombine.high %v334, %v334
    %v337 = vunpack.c.l.s4 1966171168
    %v338 = vunpack.c.0.s8 %v337
    %v339 = vlaneseq
    %v340 = vshrl.u32 %v339, 7
    %v341 = vsub.s32 %v338, %v340
    %v342 = vrot.slane %v334, %v341
    %v344 = vunpack.c.l.s4 1966171168
    %v345 = vunpack.c.0.s8 %v344
    %v346 = vlaneseq
    %v347 = vshrl.u32 %v346, 7
    %v348 = vsub.s32 %v345, %v347
    %v349 = vrot.slane %v335, %v348
    %v350 = vcombine.high %v342, %v342
    %v351 = vcombine.high %v349, %v349
    %v612 = vunpack.c.l.b16 %v29
    %v613 = vunpack.c.h.b16 %v29
    %v614 = vunpack.c.l.b16 %v30
    %v615 = vunpack.c.h.b16 %v30
    %v616 = vunpack.c.l.b16 %v31
    %v617 = vunpack.c.h.b16 %v31
    %v618 = vunpack.c.l.b16 %v32
    %v619 = vunpack.c.h.b16 %v32
    %v620 = vunpack.c.l.b16 %v33
    %v621 = vunpack.c.h.b16 %v33
    %v622 = vunpack.c.l.b16 %v34
    %v623 = vunpack.c.h.b16 %v34
    %v624 = vunpack.c.l.b16 %v35
    %v625 = vunpack.c.h.b16 %v35
    %v626 = vunpack.c.l.b16 %v36
    %v627 = vunpack.c.h.b16 %v36
    %v628 = vunpack.c.l.b16 %v37
    %v629 = vunpack.c.h.b16 %v37
    %v630 = vunpack.c.l.b16 %v38
    %v631 = vunpack.c.h.b16 %v38
    %v632 = vunpack.c.l.b16 %v39
    %v633 = vunpack.c.h.b16 %v39
    %v634 = vunpack.c.l.b16 %v40
    %v635 = vunpack.c.h.b16 %v40
    %v636 = vunpack.c.l.b16 %v41
    %v637 = vunpack.c.h.b16 %v41
    %v638 = vunpack.c.l.b16 %v42
    %v639 = vunpack.c.h.b16 %v42
    %v640 = vunpack.c.l.b16 %v43
    %v641 = vunpack.c.h.b16 %v43
    %v642 = vunpack.c.l.b16 %v44
    %v643 = vunpack.c.h.b16 %v44
    %v644 = vunpack.c.l.b16 %v45
    %v645 = vunpack.c.h.b16 %v45
    %v646 = vunpack.c.l.b16 %v46
    %v647 = vunpack.c.h.b16 %v46
    %v648 = vunpack.c.l.b16 %v47
    %v649 = vunpack.c.h.b16 %v47
    %v650 = vunpack.c.l.b16 %v48
    %v651 = vunpack.c.h.b16 %v48
    %v652 = vunpack.c.l.b16 %v49
    %v653 = vunpack.c.h.b16 %v49
    %v654 = vunpack.c.l.b16 %v50
    %v655 = vunpack.c.h.b16 %v50
    %v656 = vunpack.c.l.b16 %v51
    %v657 = vunpack.c.h.b16 %v51
    %v658 = vunpack.c.l.b16 %v52
    %v659 = vunpack.c.h.b16 %v52
    %v660 = vunpack.c.l.b16 %v53
    %v661 = vunpack.c.h.b16 %v53
    %v662 = vunpack.c.l.b16 %v54
    %v663 = vunpack.c.h.b16 %v54
    %v664 = vunpack.c.l.b16 %v55
    %v665 = vunpack.c.h.b16 %v55
    %v666 = vunpack.c.l.b16 %v56
    %v667 = vunpack.c.h.b16 %v56
    %v668 = vunpack.c.l.b16 %v57
    %v669 = vunpack.c.h.b16 %v57
    %v670 = vunpack.c.l.b16 %v58
    %v671 = vunpack.c.h.b16 %v58
    %v672 = vunpack.c.l.b16 %v59
    %v673 = vunpack.c.h.b16 %v59
    %v674 = vunpack.c.l.b16 %v60
    %v675 = vunpack.c.h.b16 %v60
    %v676 = vunpack.c.l.b16 %v61
    %v677 = vunpack.c.h.b16 %v61
    %v678 = vunpack.c.l.b16 %v62
    %v679 = vunpack.c.h.b16 %v62
    %v680 = vunpack.c.l.b16 %v63
    %v681 = vunpack.c.h.b16 %v63
    %v682 = vunpack.c.l.b16 %v64
    %v683 = vunpack.c.h.b16 %v64
    %v684 = vunpack.c.l.b16 %v65
    %v685 = vunpack.c.h.b16 %v65
    %v686 = vunpack.c.l.b16 %v66
    %v687 = vunpack.c.h.b16 %v66
    %v688 = vunpack.c.l.b16 %v67
    %v689 = vunpack.c.h.b16 %v67
    %v690 = vunpack.c.l.b16 %v68
    %v691 = vunpack.c.h.b16 %v68
    %v692 = vunpack.c.l.b16 %v69
    %v693 = vunpack.c.h.b16 %v69
    %v694 = vunpack.c.l.b16 %v70
    %v695 = vunpack.c.h.b16 %v70
    %v696 = vunpack.c.l.b16 %v71
    %v697 = vunpack.c.h.b16 %v71
    %v698 = vunpack.c.l.b16 %v72
    %v699 = vunpack.c.h.b16 %v72
    %v700 = vunpack.c.l.b16 %v73
    %v701 = vunpack.c.h.b16 %v73
    %v702 = vunpack.c.l.b16 %v74
    %v703 = vunpack.c.h.b16 %v74
    %v704 = vunpack.c.l.b16 %v75
    %v705 = vunpack.c.h.b16 %v75
    %v706 = vunpack.c.l.b16 %v76
    %v707 = vunpack.c.h.b16 %v76
    %v708 = vunpack.c.l.b16 %v77
    %v709 = vunpack.c.h.b16 %v77
    %v710 = vunpack.c.l.b16 %v78
    %v711 = vunpack.c.h.b16 %v78
    %v712 = vunpack.c.l.b16 %v79
    %v713 = vunpack.c.h.b16 %v79
    %v714 = vunpack.c.l.b16 %v80
    %v715 = vunpack.c.h.b16 %v80
    %v716 = vunpack.c.l.b16 %v81
    %v717 = vunpack.c.h.b16 %v81
    %v718 = vunpack.c.l.b16 %v82
    %v719 = vunpack.c.h.b16 %v82
    %v720 = vunpack.c.l.b16 %v83
    %v721 = vunpack.c.h.b16 %v83
    %v722 = vunpack.c.l.b16 %v84
    %v723 = vunpack.c.h.b16 %v84
    %v724 = vunpack.c.l.b16 %v85
    %v725 = vunpack.c.h.b16 %v85
    %v726 = vunpack.c.l.b16 %v86
    %v727 = vunpack.c.h.b16 %v86
    %v728 = vunpack.c.l.b16 %v87
    %v729 = vunpack.c.h.b16 %v87
    %v730 = vunpack.c.l.b16 %v88
    %v731 = vunpack.c.h.b16 %v88
    %v732 = vunpack.c.l.b16 %v89
    %v733 = vunpack.c.h.b16 %v89
    %v734 = vunpack.c.l.b16 %v90
    %v735 = vunpack.c.h.b16 %v90
    %v736 = vunpack.c.l.b16 %v91
    %v737 = vunpack.c.h.b16 %v91
    %v738 = vunpack.c.l.b16 %v92
    %v739 = vunpack.c.h.b16 %v92
    %v740 = vunpack.c.l.b16 %v93
    %v741 = vunpack.c.h.b16 %v93
    %v742 = vunpack.c.l.b16 %v94
    %v743 = vunpack.c.h.b16 %v94
    %v744 = vunpack.c.l.b16 %v95
    %v745 = vunpack.c.h.b16 %v95
    %v746 = vunpack.c.l.b16 %v96
    %v747 = vunpack.c.h.b16 %v96
    %v748 = vunpack.c.l.b16 %v97
    %v749 = vunpack.c.h.b16 %v97
    %v750 = vunpack.c.l.b16 %v98
    %v751 = vunpack.c.h.b16 %v98
    %v752 = vunpack.c.l.b16 %v99
    %v753 = vunpack.c.h.b16 %v99
    %v754 = vunpack.c.l.b16 %v100
    %v755 = vunpack.c.h.b16 %v100
    %v756 = vunpack.c.l.b16 %v101
    %v757 = vunpack.c.h.b16 %v101
    %v758 = vunpack.c.l.b16 %v102
    %v759 = vunpack.c.h.b16 %v102
    %v760 = vunpack.c.l.b16 %v103
    %v761 = vunpack.c.h.b16 %v103
    %v762 = vunpack.c.l.b16 %v104
    %v763 = vunpack.c.h.b16 %v104
    %v764 = vunpack.c.l.b16 %v105
    %v765 = vunpack.c.h.b16 %v105
    %v766 = vunpack.c.l.b16 %v106
    %v767 = vunpack.c.h.b16 %v106
    %v768 = vunpack.c.l.b16 %v107
    %v769 = vunpack.c.h.b16 %v107
    %v770 = vunpack.c.l.b16 %v108
    %v771 = vunpack.c.h.b16 %v108
    %v772 = vunpack.c.l.b16 %v109
    %v773 = vunpack.c.h.b16 %v109
    %v774 = vunpack.c.l.b16 %v110
    %v775 = vunpack.c.h.b16 %v110
    %v776 = vunpack.c.l.b16 %v111
    %v777 = vunpack.c.h.b16 %v111
    %v778 = vunpack.c.l.b16 %v112
    %v779 = vunpack.c.h.b16 %v112
    %v780 = vunpack.c.l.b16 %v113
    %v781 = vunpack.c.h.b16 %v113
    %v782 = vunpack.c.l.b16 %v114
    %v783 = vunpack.c.h.b16 %v114
    %v784 = vunpack.c.l.b16 %v115
    %v785 = vunpack.c.h.b16 %v115
    %v786 = vunpack.c.l.b16 %v116
    %v787 = vunpack.c.h.b16 %v116
    %v788 = vunpack.c.l.b16 %v117
    %v789 = vunpack.c.h.b16 %v117
    %v790 = vunpack.c.l.b16 %v118
    %v791 = vunpack.c.h.b16 %v118
    %v792 = vunpack.c.l.b16 %v119
    %v793 = vunpack.c.h.b16 %v119
    %v794 = vunpack.c.l.b16 %v120
    %v795 = vunpack.c.h.b16 %v120
    %v796 = vunpack.c.l.b16 %v121
    %v797 = vunpack.c.h.b16 %v121
    %v798 = vunpack.c.l.b16 %v122
    %v799 = vunpack.c.h.b16 %v122
    %v800 = vunpack.c.l.b16 %v123
    %v801 = vunpack.c.h.b16 %v123
    %v802 = vunpack.c.l.b16 %v124
    %v803 = vunpack.c.h.b16 %v124
    %v804 = vunpack.c.l.b16 %v125
    %v805 = vunpack.c.h.b16 %v125
    %v806 = vunpack.c.l.b16 %v126
    %v807 = vunpack.c.h.b16 %v126
    %v808 = vunpack.c.l.b16 %v127
    %v809 = vunpack.c.h.b16 %v127
    %v810 = vunpack.c.l.b16 %v128
    %v811 = vunpack.c.h.b16 %v128
    %v812 = vunpack.c.l.b16 %v129
    %v813 = vunpack.c.h.b16 %v129
    %v814 = vunpack.c.l.b16 %v130
    %v815 = vunpack.c.h.b16 %v130
    %v816 = vunpack.c.l.b16 %v131
    %v817 = vunpack.c.h.b16 %v131
    %v818 = vunpack.c.l.b16 %v132
    %v819 = vunpack.c.h.b16 %v132
    %v820 = vunpack.c.l.b16 %v133
    %v821 = vunpack.c.h.b16 %v133
    %v822 = vunpack.c.l.b16 %v134
    %v823 = vunpack.c.h.b16 %v134
    %v824 = vunpack.c.l.b16 %v135
    %v825 = vunpack.c.h.b16 %v135
    %v826 = vunpack.c.l.b16 %v136
    %v827 = vunpack.c.h.b16 %v136
    %v828 = vunpack.c.l.b16 %v137
    %v829 = vunpack.c.h.b16 %v137
    %v830 = vunpack.c.l.b16 %v138
    %v831 = vunpack.c.h.b16 %v138
    %v832 = vunpack.c.l.b16 %v139
    %v833 = vunpack.c.h.b16 %v139
    %v834 = vunpack.c.l.b16 %v140
    %v835 = vunpack.c.h.b16 %v140
    %v836 = vunpack.c.l.b16 %v141
    %v837 = vunpack.c.h.b16 %v141
    %v838 = vunpack.c.l.b16 %v142
    %v839 = vunpack.c.h.b16 %v142
    %v840 = vunpack.c.l.b16 %v143
    %v841 = vunpack.c.h.b16 %v143
    %v842 = vunpack.c.l.b16 %v144
    %v843 = vunpack.c.h.b16 %v144
    %v844 = vunpack.c.l.b16 %v145
    %v845 = vunpack.c.h.b16 %v145
    %v846 = vunpack.c.l.b16 %v146
    %v847 = vunpack.c.h.b16 %v146
    %v848 = vunpack.c.l.b16 %v147
    %v849 = vunpack.c.h.b16 %v147
    %v850 = vunpack.c.l.b16 %v148
    %v851 = vunpack.c.h.b16 %v148
    %v852 = vunpack.c.l.b16 %v149
    %v853 = vunpack.c.h.b16 %v149
    %v854 = vunpack.c.l.b16 %v150
    %v855 = vunpack.c.h.b16 %v150
    %v856 = vunpack.c.l.b16 %v151
    %v857 = vunpack.c.h.b16 %v151
    %v858 = vunpack.c.l.b16 %v152
    %v859 = vunpack.c.h.b16 %v152
    %v860 = vunpack.c.l.b16 %v153
    %v861 = vunpack.c.h.b16 %v153
    %v862 = vunpack.c.l.b16 %v154
    %v863 = vunpack.c.h.b16 %v154
    %v864 = vunpack.c.l.b16 %v155
    %v865 = vunpack.c.h.b16 %v155
    %v866 = vunpack.c.l.b16 %v156
    %v867 = vunpack.c.h.b16 %v156
    %v868 = vunpack.c.l.b16 %v157
    %v869 = vunpack.c.h.b16 %v157
    %v870 = vunpack.c.l.b16 %v158
    %v871 = vunpack.c.h.b16 %v158
    %v872 = vunpack.c.l.b16 %v159
    %v873 = vunpack.c.h.b16 %v159
    %v874 = vunpack.c.l.b16 %v160
    %v875 = vunpack.c.h.b16 %v160
    %v876 = vunpack.c.l.b16 %v161
    %v877 = vunpack.c.h.b16 %v161
    %v878 = vunpack.c.l.b16 %v162
    %v879 = vunpack.c.h.b16 %v162
    %v880 = vunpack.c.l.b16 %v163
    %v881 = vunpack.c.h.b16 %v163
    %v882 = vunpack.c.l.b16 %v164
    %v883 = vunpack.c.h.b16 %v164
    %v884 = vunpack.c.l.b16 %v165
    %v885 = vunpack.c.h.b16 %v165
    %v886 = vunpack.c.l.b16 %v166
    %v887 = vunpack.c.h.b16 %v166
    %v888 = vunpack.c.l.b16 %v167
    %v889 = vunpack.c.h.b16 %v167
    %v890 = vunpack.c.l.b16 %v168
    %v891 = vunpack.c.h.b16 %v168
    %v892 = vunpack.c.l.b16 %v169
    %v893 = vunpack.c.h.b16 %v169
    %v894 = vunpack.c.l.b16 %v170
    %v895 = vunpack.c.h.b16 %v170
    %v896 = vunpack.c.l.b16 %v171
    %v897 = vunpack.c.h.b16 %v171
    %v898 = vunpack.c.l.b16 %v172
    %v899 = vunpack.c.h.b16 %v172
    %v900 = vunpack.c.l.b16 %v173
    %v901 = vunpack.c.h.b16 %v173
    %v902 = vunpack.c.l.b16 %v174
    %v903 = vunpack.c.h.b16 %v174
    %v904 = vunpack.c.l.b16 %v175
    %v905 = vunpack.c.h.b16 %v175
    %v906 = vunpack.c.l.b16 %v176
    %v907 = vunpack.c.h.b16 %v176
    %v908 = vunpack.c.l.b16 %v177
    %v909 = vunpack.c.h.b16 %v177
    %v910 = vunpack.c.l.b16 %v178
    %v911 = vunpack.c.h.b16 %v178
    %v912 = vunpack.c.l.b16 %v179
    %v913 = vunpack.c.h.b16 %v179
    %v914 = vunpack.c.l.b16 %v180
    %v915 = vunpack.c.h.b16 %v180
    %v916 = vunpack.c.l.b16 %v181
    %v917 = vunpack.c.h.b16 %v181
    %v918 = vunpack.c.l.b16 %v182
    %v919 = vunpack.c.h.b16 %v182
    %v920 = vunpack.c.l.b16 %v183
    %v921 = vunpack.c.h.b16 %v183
    %v922 = vunpack.c.l.b16 %v184
    %v923 = vunpack.c.h.b16 %v184
    %v924 = vunpack.c.l.b16 %v185
    %v925 = vunpack.c.h.b16 %v185
    %v926 = vunpack.c.l.b16 %v186
    %v927 = vunpack.c.h.b16 %v186
    %v928 = vunpack.c.l.b16 %v187
    %v929 = vunpack.c.h.b16 %v187
    %v930 = vunpack.c.l.b16 %v188
    %v931 = vunpack.c.h.b16 %v188
    %v932 = vunpack.c.l.b16 %v189
    %v933 = vunpack.c.h.b16 %v189
    %v934 = vunpack.c.l.b16 %v190
    %v935 = vunpack.c.h.b16 %v190
    %v936 = vunpack.c.l.b16 %v191
    %v937 = vunpack.c.h.b16 %v191
    %v938 = vunpack.c.l.b16 %v192
    %v939 = vunpack.c.h.b16 %v192
    %v940 = vunpack.c.l.b16 %v193
    %v941 = vunpack.c.h.b16 %v193
    %v942 = vunpack.c.l.b16 %v194
    %v943 = vunpack.c.h.b16 %v194
    %v944 = vunpack.c.l.b16 %v195
    %v945 = vunpack.c.h.b16 %v195
    %v946 = vunpack.c.l.b16 %v196
    %v947 = vunpack.c.h.b16 %v196
    %v948 = vunpack.c.l.b16 %v197
    %v949 = vunpack.c.h.b16 %v197
    %v950 = vunpack.c.l.b16 %v198
    %v951 = vunpack.c.h.b16 %v198
    %v952 = vunpack.c.l.b16 %v199
    %v953 = vunpack.c.h.b16 %v199
    %v954 = vunpack.c.l.b16 %v200
    %v955 = vunpack.c.h.b16 %v200
    %v956 = vunpack.c.l.b16 %v201
    %v957 = vunpack.c.h.b16 %v201
    %v958 = vunpack.c.l.b16 %v202
    %v959 = vunpack.c.h.b16 %v202
    %v960 = vunpack.c.l.b16 %v203
    %v961 = vunpack.c.h.b16 %v203
    %v962 = vunpack.c.l.b16 %v204
    %v963 = vunpack.c.h.b16 %v204
    %v964 = vunpack.c.l.b16 %v205
    %v965 = vunpack.c.h.b16 %v205
    %v966 = vunpack.c.l.b16 %v206
    %v967 = vunpack.c.h.b16 %v206
    %v968 = vunpack.c.l.b16 %v207
    %v969 = vunpack.c.h.b16 %v207
    %v970 = vunpack.c.l.b16 %v208
    %v971 = vunpack.c.h.b16 %v208
    %v972 = vunpack.c.l.b16 %v209
    %v973 = vunpack.c.h.b16 %v209
    %v974 = vunpack.c.l.b16 %v210
    %v975 = vunpack.c.h.b16 %v210
    %v976 = vunpack.c.l.b16 %v211
    %v977 = vunpack.c.h.b16 %v211
    %v978 = vunpack.c.l.b16 %v212
    %v979 = vunpack.c.h.b16 %v212
    %v980 = vunpack.c.l.b16 %v213
    %v981 = vunpack.c.h.b16 %v213
    %v982 = vunpack.c.l.b16 %v214
    %v983 = vunpack.c.h.b16 %v214
    %v984 = vunpack.c.l.b16 %v215
    %v985 = vunpack.c.h.b16 %v215
    %v986 = vunpack.c.l.b16 %v216
    %v987 = vunpack.c.h.b16 %v216
    %v988 = vunpack.c.l.b16 %v217
    %v989 = vunpack.c.h.b16 %v217
    %v990 = vunpack.c.l.b16 %v218
    %v991 = vunpack.c.h.b16 %v218
    %v992 = vunpack.c.l.b16 %v219
    %v993 = vunpack.c.h.b16 %v219
    %v994 = vunpack.c.l.b16 %v220
    %v995 = vunpack.c.h.b16 %v220
    %v996 = vunpack.c.l.b16 %v221
    %v997 = vunpack.c.h.b16 %v221
    %v998 = vunpack.c.l.b16 %v222
    %v999 = vunpack.c.h.b16 %v222
    %v1000 = vunpack.c.l.b16 %v223
    %v1001 = vunpack.c.h.b16 %v223
    %v1002 = vunpack.c.l.b16 %v224
    %v1003 = vunpack.c.h.b16 %v224
    %v1004 = vunpack.c.l.b16 %v225
    %v1005 = vunpack.c.h.b16 %v225
    %v1006 = vunpack.c.l.b16 %v226
    %v1007 = vunpack.c.h.b16 %v226
    %v1008 = vunpack.c.l.b16 %v227
    %v1009 = vunpack.c.h.b16 %v227
    %v1010 = vunpack.c.l.b16 %v228
    %v1011 = vunpack.c.h.b16 %v228
    %v1012 = vunpack.c.l.b16 %v229
    %v1013 = vunpack.c.h.b16 %v229
    %v1014 = vunpack.c.l.b16 %v230
    %v1015 = vunpack.c.h.b16 %v230
    %v1016 = vunpack.c.l.b16 %v231
    %v1017 = vunpack.c.h.b16 %v231
    %v1018 = vunpack.c.l.b16 %v232
    %v1019 = vunpack.c.h.b16 %v232
    %v1020 = vunpack.c.l.b16 %v233
    %v1021 = vunpack.c.h.b16 %v233
    %v1022 = vunpack.c.l.b16 %v234
    %v1023 = vunpack.c.h.b16 %v234
    %v1024 = vunpack.c.l.b16 %v235
    %v1025 = vunpack.c.h.b16 %v235
    %v1026 = vunpack.c.l.b16 %v236
    %v1027 = vunpack.c.h.b16 %v236
    %v1028 = vunpack.c.l.b16 %v237
    %v1029 = vunpack.c.h.b16 %v237
    %v1030 = vunpack.c.l.b16 %v238
    %v1031 = vunpack.c.h.b16 %v238
    %v1032 = vunpack.c.l.b16 %v239
    %v1033 = vunpack.c.h.b16 %v239
    %v1034 = vunpack.c.l.b16 %v240
    %v1035 = vunpack.c.h.b16 %v240
    %v1036 = vunpack.c.l.b16 %v241
    %v1037 = vunpack.c.h.b16 %v241
    %v1038 = vunpack.c.l.b16 %v242
    %v1039 = vunpack.c.h.b16 %v242
    %v1040 = vunpack.c.l.b16 %v243
    %v1041 = vunpack.c.h.b16 %v243
    %v1042 = vunpack.c.l.b16 %v244
    %v1043 = vunpack.c.h.b16 %v244
    %v1044 = vunpack.c.l.b16 %v245
    %v1045 = vunpack.c.h.b16 %v245
    %v1046 = vunpack.c.l.b16 %v246
    %v1047 = vunpack.c.h.b16 %v246
    %v1048 = vunpack.c.l.b16 %v247
    %v1049 = vunpack.c.h.b16 %v247
    %v1050 = vunpack.c.l.b16 %v248
    %v1051 = vunpack.c.h.b16 %v248
    %v1052 = vunpack.c.l.b16 %v249
    %v1053 = vunpack.c.h.b16 %v249
    %v1054 = vunpack.c.l.b16 %v250
    %v1055 = vunpack.c.h.b16 %v250
    %v1056 = vunpack.c.l.b16 %v251
    %v1057 = vunpack.c.h.b16 %v251
    %v1058 = vunpack.c.l.b16 %v252
    %v1059 = vunpack.c.h.b16 %v252
    %v1060 = vunpack.c.l.b16 %v253
    %v1061 = vunpack.c.h.b16 %v253
    %v1062 = vunpack.c.l.b16 %v254
    %v1063 = vunpack.c.h.b16 %v254
    %v1064 = vunpack.c.l.b16 %v255
    %v1065 = vunpack.c.h.b16 %v255
    %v1066 = vunpack.c.l.b16 %v256
    %v1067 = vunpack.c.h.b16 %v256
    %v1068 = vunpack.c.l.b16 %v257
    %v1069 = vunpack.c.h.b16 %v257
    %v1070 = vunpack.c.l.b16 %v258
    %v1071 = vunpack.c.h.b16 %v258
    %v1072 = vunpack.c.l.b16 %v259
    %v1073 = vunpack.c.h.b16 %v259
    %v1074 = vunpack.c.l.b16 %v260
    %v1075 = vunpack.c.h.b16 %v260
    %v1076 = vunpack.c.l.b16 %v261
    %v1077 = vunpack.c.h.b16 %v261
    %v1078 = vunpack.c.l.b16 %v262
    %v1079 = vunpack.c.h.b16 %v262
    %v1080 = vunpack.c.l.b16 %v263
    %v1081 = vunpack.c.h.b16 %v263
    %v1082 = vunpack.c.l.b16 %v264
    %v1083 = vunpack.c.h.b16 %v264
    %v1084 = vunpack.c.l.b16 %v265
    %v1085 = vunpack.c.h.b16 %v265
    %v1086 = vunpack.c.l.b16 %v266
    %v1087 = vunpack.c.h.b16 %v266
    %v1088 = vunpack.c.l.b16 %v267
    %v1089 = vunpack.c.h.b16 %v267
    %v1090 = vunpack.c.l.b16 %v268
    %v1091 = vunpack.c.h.b16 %v268
    %v1092 = vunpack.c.l.b16 %v269
    %v1093 = vunpack.c.h.b16 %v269
    %v1094 = vunpack.c.l.b16 %v270
    %v1095 = vunpack.c.h.b16 %v270
    %v1096 = vunpack.c.l.b16 %v271
    %v1097 = vunpack.c.h.b16 %v271
    %v1098 = vunpack.c.l.b16 %v272
    %v1099 = vunpack.c.h.b16 %v272
    %v1100 = vunpack.c.l.b16 %v273
    %v1101 = vunpack.c.h.b16 %v273
    %v1102 = vunpack.c.l.b16 %v274
    %v1103 = vunpack.c.h.b16 %v274
    %v1104 = vunpack.c.l.b16 %v275
    %v1105 = vunpack.c.h.b16 %v275
    %v1106 = vunpack.c.l.b16 %v276
    %v1107 = vunpack.c.h.b16 %v276
    %v1108 = vunpack.c.l.b16 %v277
    %v1109 = vunpack.c.h.b16 %v277
    %v1110 = vunpack.c.l.b16 %v278
    %v1111 = vunpack.c.h.b16 %v278
    %v1112 = vunpack.c.l.b16 %v279
    %v1113 = vunpack.c.h.b16 %v279
    %v1114 = vunpack.c.l.b16 %v280
    %v1115 = vunpack.c.h.b16 %v280
    %v1116 = vunpack.c.l.b16 %v281
    %v1117 = vunpack.c.h.b16 %v281
    %v1118 = vunpack.c.l.b16 %v282
    %v1119 = vunpack.c.h.b16 %v282
    %v1120 = vunpack.c.l.b16 %v283
    %v1121 = vunpack.c.h.b16 %v283
    %v1122 = vunpack.c.l.b16 %v284
    %v1123 = vunpack.c.h.b16 %v284
    %v1124 = vpack.c.b16 %v620, %v612
    %v1125 = vpack.c.b16 %v621, %v613
    %v1126 = vpack.c.b16 %v622, %v614
    %v1127 = vpack.c.b16 %v623, %v615
    %v1128 = vpack.c.b16 %v624, %v616
    %v1129 = vpack.c.b16 %v625, %v617
    %v1130 = vpack.c.b16 %v626, %v618
    %v1131 = vpack.c.b16 %v627, %v619
    %v1132 = vpack.c.b16 %v636, %v628
    %v1133 = vpack.c.b16 %v637, %v629
    %v1134 = vpack.c.b16 %v638, %v630
    %v1135 = vpack.c.b16 %v639, %v631
    %v1136 = vpack.c.b16 %v640, %v632
    %v1137 = vpack.c.b16 %v641, %v633
    %v1138 = vpack.c.b16 %v642, %v634
    %v1139 = vpack.c.b16 %v643, %v635
    %v1140 = vpack.c.b16 %v652, %v644
    %v1141 = vpack.c.b16 %v653, %v645
    %v1142 = vpack.c.b16 %v654, %v646
    %v1143 = vpack.c.b16 %v655, %v647
    %v1144 = vpack.c.b16 %v656, %v648
    %v1145 = vpack.c.b16 %v657, %v649
    %v1146 = vpack.c.b16 %v658, %v650
    %v1147 = vpack.c.b16 %v659, %v651
    %v1148 = vpack.c.b16 %v668, %v660
    %v1149 = vpack.c.b16 %v669, %v661
    %v1150 = vpack.c.b16 %v670, %v662
    %v1151 = vpack.c.b16 %v671, %v663
    %v1152 = vpack.c.b16 %v672, %v664
    %v1153 = vpack.c.b16 %v673, %v665
    %v1154 = vpack.c.b16 %v674, %v666
    %v1155 = vpack.c.b16 %v675, %v667
    %v1156 = vpack.c.b16 %v684, %v676
    %v1157 = vpack.c.b16 %v685, %v677
    %v1158 = vpack.c.b16 %v686, %v678
    %v1159 = vpack.c.b16 %v687, %v679
    %v1160 = vpack.c.b16 %v688, %v680
    %v1161 = vpack.c.b16 %v689, %v681
    %v1162 = vpack.c.b16 %v690, %v682
    %v1163 = vpack.c.b16 %v691, %v683
    %v1164 = vpack.c.b16 %v700, %v692
    %v1165 = vpack.c.b16 %v701, %v693
    %v1166 = vpack.c.b16 %v702, %v694
    %v1167 = vpack.c.b16 %v703, %v695
    %v1168 = vpack.c.b16 %v704, %v696
    %v1169 = vpack.c.b16 %v705, %v697
    %v1170 = vpack.c.b16 %v706, %v698
    %v1171 = vpack.c.b16 %v707, %v699
    %v1172 = vpack.c.b16 %v716, %v708
    %v1173 = vpack.c.b16 %v717, %v709
    %v1174 = vpack.c.b16 %v718, %v710
    %v1175 = vpack.c.b16 %v719, %v711
    %v1176 = vpack.c.b16 %v720, %v712
    %v1177 = vpack.c.b16 %v721, %v713
    %v1178 = vpack.c.b16 %v722, %v714
    %v1179 = vpack.c.b16 %v723, %v715
    %v1180 = vpack.c.b16 %v732, %v724
    %v1181 = vpack.c.b16 %v733, %v725
    %v1182 = vpack.c.b16 %v734, %v726
    %v1183 = vpack.c.b16 %v735, %v727
    %v1184 = vpack.c.b16 %v736, %v728
    %v1185 = vpack.c.b16 %v737, %v729
    %v1186 = vpack.c.b16 %v738, %v730
    %v1187 = vpack.c.b16 %v739, %v731
    %v1188 = vpack.c.b16 %v748, %v740
    %v1189 = vpack.c.b16 %v749, %v741
    %v1190 = vpack.c.b16 %v750, %v742
    %v1191 = vpack.c.b16 %v751, %v743
    %v1192 = vpack.c.b16 %v752, %v744
    %v1193 = vpack.c.b16 %v753, %v745
    %v1194 = vpack.c.b16 %v754, %v746
    %v1195 = vpack.c.b16 %v755, %v747
    %v1196 = vpack.c.b16 %v764, %v756
    %v1197 = vpack.c.b16 %v765, %v757
    %v1198 = vpack.c.b16 %v766, %v758
    %v1199 = vpack.c.b16 %v767, %v759
    %v1200 = vpack.c.b16 %v768, %v760
    %v1201 = vpack.c.b16 %v769, %v761
    %v1202 = vpack.c.b16 %v770, %v762
    %v1203 = vpack.c.b16 %v771, %v763
    %v1204 = vpack.c.b16 %v780, %v772
    %v1205 = vpack.c.b16 %v781, %v773
    %v1206 = vpack.c.b16 %v782, %v774
    %v1207 = vpack.c.b16 %v783, %v775
    %v1208 = vpack.c.b16 %v784, %v776
    %v1209 = vpack.c.b16 %v785, %v777
    %v1210 = vpack.c.b16 %v786, %v778
    %v1211 = vpack.c.b16 %v787, %v779
    %v1212 = vpack.c.b16 %v796, %v788
    %v1213 = vpack.c.b16 %v797, %v789
    %v1214 = vpack.c.b16 %v798, %v790
    %v1215 = vpack.c.b16 %v799, %v791
    %v1216 = vpack.c.b16 %v800, %v792
    %v1217 = vpack.c.b16 %v801, %v793
    %v1218 = vpack.c.b16 %v802, %v794
    %v1219 = vpack.c.b16 %v803, %v795
    %v1220 = vpack.c.b16 %v812, %v804
    %v1221 = vpack.c.b16 %v813, %v805
    %v1222 = vpack.c.b16 %v814, %v806
    %v1223 = vpack.c.b16 %v815, %v807
    %v1224 = vpack.c.b16 %v816, %v808
    %v1225 = vpack.c.b16 %v817, %v809
    %v1226 = vpack.c.b16 %v818, %v810
    %v1227 = vpack.c.b16 %v819, %v811
    %v1228 = vpack.c.b16 %v828, %v820
    %v1229 = vpack.c.b16 %v829, %v821
    %v1230 = vpack.c.b16 %v830, %v822
    %v1231 = vpack.c.b16 %v831, %v823
    %v1232 = vpack.c.b16 %v832, %v824
    %v1233 = vpack.c.b16 %v833, %v825
    %v1234 = vpack.c.b16 %v834, %v826
    %v1235 = vpack.c.b16 %v835, %v827
    %v1236 = vpack.c.b16 %v844, %v836
    %v1237 = vpack.c.b16 %v845, %v837
    %v1238 = vpack.c.b16 %v846, %v838
    %v1239 = vpack.c.b16 %v847, %v839
    %v1240 = vpack.c.b16 %v848, %v840
    %v1241 = vpack.c.b16 %v849, %v841
    %v1242 = vpack.c.b16 %v850, %v842
    %v1243 = vpack.c.b16 %v851, %v843
    %v1244 = vpack.c.b16 %v860, %v852
    %v1245 = vpack.c.b16 %v861, %v853
    %v1246 = vpack.c.b16 %v862, %v854
    %v1247 = vpack.c.b16 %v863, %v855
    %v1248 = vpack.c.b16 %v864, %v856
    %v1249 = vpack.c.b16 %v865, %v857
    %v1250 = vpack.c.b16 %v866, %v858
    %v1251 = vpack.c.b16 %v867, %v859
    %v1252 = vpack.c.b16 %v876, %v868
    %v1253 = vpack.c.b16 %v877, %v869
    %v1254 = vpack.c.b16 %v878, %v870
    %v1255 = vpack.c.b16 %v879, %v871
    %v1256 = vpack.c.b16 %v880, %v872
    %v1257 = vpack.c.b16 %v881, %v873
    %v1258 = vpack.c.b16 %v882, %v874
    %v1259 = vpack.c.b16 %v883, %v875
    %v1260 = vpack.c.b16 %v892, %v884
    %v1261 = vpack.c.b16 %v893, %v885
    %v1262 = vpack.c.b16 %v894, %v886
    %v1263 = vpack.c.b16 %v895, %v887
    %v1264 = vpack.c.b16 %v896, %v888
    %v1265 = vpack.c.b16 %v897, %v889
    %v1266 = vpack.c.b16 %v898, %v890
    %v1267 = vpack.c.b16 %v899, %v891
    %v1268 = vpack.c.b16 %v908, %v900
    %v1269 = vpack.c.b16 %v909, %v901
    %v1270 = vpack.c.b16 %v910, %v902
    %v1271 = vpack.c.b16 %v911, %v903
    %v1272 = vpack.c.b16 %v912, %v904
    %v1273 = vpack.c.b16 %v913, %v905
    %v1274 = vpack.c.b16 %v914, %v906
    %v1275 = vpack.c.b16 %v915, %v907
    %v1276 = vpack.c.b16 %v924, %v916
    %v1277 = vpack.c.b16 %v925, %v917
    %v1278 = vpack.c.b16 %v926, %v918
    %v1279 = vpack.c.b16 %v927, %v919
    %v1280 = vpack.c.b16 %v928, %v920
    %v1281 = vpack.c.b16 %v929, %v921
    %v1282 = vpack.c.b16 %v930, %v922
    %v1283 = vpack.c.b16 %v931, %v923
    %v1284 = vpack.c.b16 %v940, %v932
    %v1285 = vpack.c.b16 %v941, %v933
    %v1286 = vpack.c.b16 %v942, %v934
    %v1287 = vpack.c.b16 %v943, %v935
    %v1288 = vpack.c.b16 %v944, %v936
    %v1289 = vpack.c.b16 %v945, %v937
    %v1290 = vpack.c.b16 %v946, %v938
    %v1291 = vpack.c.b16 %v947, %v939
    %v1292 = vpack.c.b16 %v956, %v948
    %v1293 = vpack.c.b16 %v957, %v949
    %v1294 = vpack.c.b16 %v958, %v950
    %v1295 = vpack.c.b16 %v959, %v951
    %v1296 = vpack.c.b16 %v960, %v952
    %v1297 = vpack.c.b16 %v961, %v953
    %v1298 = vpack.c.b16 %v962, %v954
    %v1299 = vpack.c.b16 %v963, %v955
    %v1300 = vpack.c.b16 %v972, %v964
    %v1301 = vpack.c.b16 %v973, %v965
    %v1302 = vpack.c.b16 %v974, %v966
    %v1303 = vpack.c.b16 %v975, %v967
    %v1304 = vpack.c.b16 %v976, %v968
    %v1305 = vpack.c.b16 %v977, %v969
    %v1306 = vpack.c.b16 %v978, %v970
    %v1307 = vpack.c.b16 %v979, %v971
    %v1308 = vpack.c.b16 %v988, %v980
    %v1309 = vpack.c.b16 %v989, %v981
    %v1310 = vpack.c.b16 %v990, %v982
    %v1311 = vpack.c.b16 %v991, %v983
    %v1312 = vpack.c.b16 %v992, %v984
    %v1313 = vpack.c.b16 %v993, %v985
    %v1314 = vpack.c.b16 %v994, %v986
    %v1315 = vpack.c.b16 %v995, %v987
    %v1316 = vpack.c.b16 %v1004, %v996
    %v1317 = vpack.c.b16 %v1005, %v997
    %v1318 = vpack.c.b16 %v1006, %v998
    %v1319 = vpack.c.b16 %v1007, %v999
    %v1320 = vpack.c.b16 %v1008, %v1000
    %v1321 = vpack.c.b16 %v1009, %v1001
    %v1322 = vpack.c.b16 %v1010, %v1002
    %v1323 = vpack.c.b16 %v1011, %v1003
    %v1324 = vpack.c.b16 %v1020, %v1012
    %v1325 = vpack.c.b16 %v1021, %v1013
    %v1326 = vpack.c.b16 %v1022, %v1014
    %v1327 = vpack.c.b16 %v1023, %v1015
    %v1328 = vpack.c.b16 %v1024, %v1016
    %v1329 = vpack.c.b16 %v1025, %v1017
    %v1330 = vpack.c.b16 %v1026, %v1018
    %v1331 = vpack.c.b16 %v1027, %v1019
    %v1332 = vpack.c.b16 %v1036, %v1028
    %v1333 = vpack.c.b16 %v1037, %v1029
    %v1334 = vpack.c.b16 %v1038, %v1030
    %v1335 = vpack.c.b16 %v1039, %v1031
    %v1336 = vpack.c.b16 %v1040, %v1032
    %v1337 = vpack.c.b16 %v1041, %v1033
    %v1338 = vpack.c.b16 %v1042, %v1034
    %v1339 = vpack.c.b16 %v1043, %v1035
    %v1340 = vpack.c.b16 %v1052, %v1044
    %v1341 = vpack.c.b16 %v1053, %v1045
    %v1342 = vpack.c.b16 %v1054, %v1046
    %v1343 = vpack.c.b16 %v1055, %v1047
    %v1344 = vpack.c.b16 %v1056, %v1048
    %v1345 = vpack.c.b16 %v1057, %v1049
    %v1346 = vpack.c.b16 %v1058, %v1050
    %v1347 = vpack.c.b16 %v1059, %v1051
    %v1348 = vpack.c.b16 %v1068, %v1060
    %v1349 = vpack.c.b16 %v1069, %v1061
    %v1350 = vpack.c.b16 %v1070, %v1062
    %v1351 = vpack.c.b16 %v1071, %v1063
    %v1352 = vpack.c.b16 %v1072, %v1064
    %v1353 = vpack.c.b16 %v1073, %v1065
    %v1354 = vpack.c.b16 %v1074, %v1066
    %v1355 = vpack.c.b16 %v1075, %v1067
    %v1356 = vpack.c.b16 %v1084, %v1076
    %v1357 = vpack.c.b16 %v1085, %v1077
    %v1358 = vpack.c.b16 %v1086, %v1078
    %v1359 = vpack.c.b16 %v1087, %v1079
    %v1360 = vpack.c.b16 %v1088, %v1080
    %v1361 = vpack.c.b16 %v1089, %v1081
    %v1362 = vpack.c.b16 %v1090, %v1082
    %v1363 = vpack.c.b16 %v1091, %v1083
    %v1364 = vpack.c.b16 %v1100, %v1092
    %v1365 = vpack.c.b16 %v1101, %v1093
    %v1366 = vpack.c.b16 %v1102, %v1094
    %v1367 = vpack.c.b16 %v1103, %v1095
    %v1368 = vpack.c.b16 %v1104, %v1096
    %v1369 = vpack.c.b16 %v1105, %v1097
    %v1370 = vpack.c.b16 %v1106, %v1098
    %v1371 = vpack.c.b16 %v1107, %v1099
    %v1372 = vpack.c.b16 %v1116, %v1108
    %v1373 = vpack.c.b16 %v1117, %v1109
    %v1374 = vpack.c.b16 %v1118, %v1110
    %v1375 = vpack.c.b16 %v1119, %v1111
    %v1376 = vpack.c.b16 %v1120, %v1112
    %v1377 = vpack.c.b16 %v1121, %v1113
    %v1378 = vpack.c.b16 %v1122, %v1114
    %v1379 = vpack.c.b16 %v1123, %v1115
    %1636 = vmatprep.subr.bf16.mxu0 %v1181
    %1637 = vmatpush1.bf16.msra.mxu0 %v1180
    %1638 = vmatprep.subr.bf16.mxu0 %v1173
    %1639 = vmatpush1.bf16.msra.mxu0 %v1172
    %1640 = vmatprep.subr.bf16.mxu0 %v1165
    %1641 = vmatpush1.bf16.msra.mxu0 %v1164
    %1642 = vmatprep.subr.bf16.mxu0 %v1157
    %1643 = vmatpush1.bf16.msra.mxu0 %v1156
    %1644 = vmatprep.subr.bf16.mxu0 %v1149
    %1645 = vmatpush1.bf16.msra.mxu0 %v1148
    %1646 = vmatprep.subr.bf16.mxu0 %v1141
    %1647 = vmatpush1.bf16.msra.mxu0 %v1140
    %1648 = vmatprep.subr.bf16.mxu0 %v1133
    %1649 = vmatpush1.bf16.msra.mxu0 %v1132
    %1650 = vmatprep.subr.bf16.mxu0 %v1125
    %1651 = vmatpush1.bf16.msra.mxu0 %v1124
    %1652 = vmatprep.subr.bf16.mxu0 %v1245
    %1653 = vmatpush2.bf16.msra.mxu0 %v1244
    %1654 = vmatprep.subr.bf16.mxu0 %v1237
    %1655 = vmatpush2.bf16.msra.mxu0 %v1236
    %1656 = vmatprep.subr.bf16.mxu0 %v1229
    %1657 = vmatpush2.bf16.msra.mxu0 %v1228
    %1658 = vmatprep.subr.bf16.mxu0 %v1221
    %1659 = vmatpush2.bf16.msra.mxu0 %v1220
    %1660 = vmatprep.subr.bf16.mxu0 %v1213
    %1661 = vmatpush2.bf16.msra.mxu0 %v1212
    %1662 = vmatprep.subr.bf16.mxu0 %v1205
    %1663 = vmatpush2.bf16.msra.mxu0 %v1204
    %1664 = vmatprep.subr.bf16.mxu0 %v1197
    %1665 = vmatpush2.bf16.msra.mxu0 %v1196
    %1666 = vmatprep.subr.bf16.mxu0 %v1189
    %1667 = vmatpush2.bf16.msra.mxu0 %v1188
    %1668 = vmatprep.mubr.bf16.mxu0 %v349
    %1669 = vmatmul.mubr.bf16.gmra.mxu0 %v342
    %v1670 = vpop.f32.mrf.mxu0
    %v1671 = vadd.f32 %v290, %v1670
    %v1672 = vpop.f32.mrf.mxu0
    %v1673 = vadd.f32 %v294, %v1672
    %v1674 = vpop.f32.mrf.mxu0
    %v1675 = vpop.f32.mrf.mxu0
    %1676 = vdwg.mxu0
    %1677 = vmatprep.subr.bf16.mxu0 %v1309
    %1678 = vmatpush1.bf16.msra.mxu0 %v1308
    %1679 = vmatprep.subr.bf16.mxu0 %v1301
    %1680 = vmatpush1.bf16.msra.mxu0 %v1300
    %1681 = vmatprep.subr.bf16.mxu0 %v1293
    %1682 = vmatpush1.bf16.msra.mxu0 %v1292
    %1683 = vmatprep.subr.bf16.mxu0 %v1285
    %1684 = vmatpush1.bf16.msra.mxu0 %v1284
    %1685 = vmatprep.subr.bf16.mxu0 %v1277
    %1686 = vmatpush1.bf16.msra.mxu0 %v1276
    %1687 = vmatprep.subr.bf16.mxu0 %v1269
    %1688 = vmatpush1.bf16.msra.mxu0 %v1268
    %1689 = vmatprep.subr.bf16.mxu0 %v1261
    %1690 = vmatpush1.bf16.msra.mxu0 %v1260
    %1691 = vmatprep.subr.bf16.mxu0 %v1253
    %1692 = vmatpush1.bf16.msra.mxu0 %v1252
    %1693 = vmatprep.subr.bf16.mxu0 %v1373
    %1694 = vmatpush2.bf16.msra.mxu0 %v1372
    %1695 = vmatprep.subr.bf16.mxu0 %v1365
    %1696 = vmatpush2.bf16.msra.mxu0 %v1364
    %1697 = vmatprep.subr.bf16.mxu0 %v1357
    %1698 = vmatpush2.bf16.msra.mxu0 %v1356
    %1699 = vmatprep.subr.bf16.mxu0 %v1349
    %1700 = vmatpush2.bf16.msra.mxu0 %v1348
    %1701 = vmatprep.subr.bf16.mxu0 %v1341
    %1702 = vmatpush2.bf16.msra.mxu0 %v1340
    %1703 = vmatprep.subr.bf16.mxu0 %v1333
    %1704 = vmatpush2.bf16.msra.mxu0 %v1332
    %1705 = vmatprep.subr.bf16.mxu0 %v1325
    %1706 = vmatpush2.bf16.msra.mxu0 %v1324
    %1707 = vmatprep.subr.bf16.mxu0 %v1317
    %1708 = vmatpush2.bf16.msra.mxu0 %v1316
    %1709 = vmatprep.mubr.bf16.mxu0 %v351
    %1710 = vmatmul.mubr.bf16.gmra.mxu0 %v350
    %v1711 = vpop.f32.mrf.mxu0
    %v1712 = vadd.f32 %v1671, %v1711
    %v1713 = vpop.f32.mrf.mxu0
    %v1714 = vadd.f32 %v1673, %v1713
    %v1715 = vpop.f32.mrf.mxu0
    %v1716 = vpop.f32.mrf.mxu0
    %1717 = vdwg.mxu0
    %1718 = vmatprep.subr.bf16.mxu0 %v1183
    %1719 = vmatpush1.bf16.msra.mxu0 %v1182
    %1720 = vmatprep.subr.bf16.mxu0 %v1175
    %1721 = vmatpush1.bf16.msra.mxu0 %v1174
    %1722 = vmatprep.subr.bf16.mxu0 %v1167
    %1723 = vmatpush1.bf16.msra.mxu0 %v1166
    %1724 = vmatprep.subr.bf16.mxu0 %v1159
    %1725 = vmatpush1.bf16.msra.mxu0 %v1158
    %1726 = vmatprep.subr.bf16.mxu0 %v1151
    %1727 = vmatpush1.bf16.msra.mxu0 %v1150
    %1728 = vmatprep.subr.bf16.mxu0 %v1143
    %1729 = vmatpush1.bf16.msra.mxu0 %v1142
    %1730 = vmatprep.subr.bf16.mxu0 %v1135
    %1731 = vmatpush1.bf16.msra.mxu0 %v1134
    %1732 = vmatprep.subr.bf16.mxu0 %v1127
    %1733 = vmatpush1.bf16.msra.mxu0 %v1126
    %1734 = vmatprep.subr.bf16.mxu0 %v1247
    %1735 = vmatpush2.bf16.msra.mxu0 %v1246
    %1736 = vmatprep.subr.bf16.mxu0 %v1239
    %1737 = vmatpush2.bf16.msra.mxu0 %v1238
    %1738 = vmatprep.subr.bf16.mxu0 %v1231
    %1739 = vmatpush2.bf16.msra.mxu0 %v1230
    %1740 = vmatprep.subr.bf16.mxu0 %v1223
    %1741 = vmatpush2.bf16.msra.mxu0 %v1222
    %1742 = vmatprep.subr.bf16.mxu0 %v1215
    %1743 = vmatpush2.bf16.msra.mxu0 %v1214
    %1744 = vmatprep.subr.bf16.mxu0 %v1207
    %1745 = vmatpush2.bf16.msra.mxu0 %v1206
    %1746 = vmatprep.subr.bf16.mxu0 %v1199
    %1747 = vmatpush2.bf16.msra.mxu0 %v1198
    %1748 = vmatprep.subr.bf16.mxu0 %v1191
    %1749 = vmatpush2.bf16.msra.mxu0 %v1190
    %1750 = vmatprep.mubr.bf16.mxu0 %v349
    %1751 = vmatmul.mubr.bf16.gmra.mxu0 %v342
    %v1752 = vpop.f32.mrf.mxu0
    %v1753 = vadd.f32 %v298, %v1752
    %v1754 = vpop.f32.mrf.mxu0
    %v1755 = vadd.f32 %v302, %v1754
    %v1756 = vpop.f32.mrf.mxu0
    %v1757 = vpop.f32.mrf.mxu0
    %1758 = vdwg.mxu0
    %1759 = vmatprep.subr.bf16.mxu0 %v1311
    %1760 = vmatpush1.bf16.msra.mxu0 %v1310
    %1761 = vmatprep.subr.bf16.mxu0 %v1303
    %1762 = vmatpush1.bf16.msra.mxu0 %v1302
    %1763 = vmatprep.subr.bf16.mxu0 %v1295
    %1764 = vmatpush1.bf16.msra.mxu0 %v1294
    %1765 = vmatprep.subr.bf16.mxu0 %v1287
    %1766 = vmatpush1.bf16.msra.mxu0 %v1286
    %1767 = vmatprep.subr.bf16.mxu0 %v1279
    %1768 = vmatpush1.bf16.msra.mxu0 %v1278
    %1769 = vmatprep.subr.bf16.mxu0 %v1271
    %1770 = vmatpush1.bf16.msra.mxu0 %v1270
    %1771 = vmatprep.subr.bf16.mxu0 %v1263
    %1772 = vmatpush1.bf16.msra.mxu0 %v1262
    %1773 = vmatprep.subr.bf16.mxu0 %v1255
    %1774 = vmatpush1.bf16.msra.mxu0 %v1254
    %1775 = vmatprep.subr.bf16.mxu0 %v1375
    %1776 = vmatpush2.bf16.msra.mxu0 %v1374
    %1777 = vmatprep.subr.bf16.mxu0 %v1367
    %1778 = vmatpush2.bf16.msra.mxu0 %v1366
    %1779 = vmatprep.subr.bf16.mxu0 %v1359
    %1780 = vmatpush2.bf16.msra.mxu0 %v1358
    %1781 = vmatprep.subr.bf16.mxu0 %v1351
    %1782 = vmatpush2.bf16.msra.mxu0 %v1350
    %1783 = vmatprep.subr.bf16.mxu0 %v1343
    %1784 = vmatpush2.bf16.msra.mxu0 %v1342
    %1785 = vmatprep.subr.bf16.mxu0 %v1335
    %1786 = vmatpush2.bf16.msra.mxu0 %v1334
    %1787 = vmatprep.subr.bf16.mxu0 %v1327
    %1788 = vmatpush2.bf16.msra.mxu0 %v1326
    %1789 = vmatprep.subr.bf16.mxu0 %v1319
    %1790 = vmatpush2.bf16.msra.mxu0 %v1318
    %1791 = vmatprep.mubr.bf16.mxu0 %v351
    %1792 = vmatmul.mubr.bf16.gmra.mxu0 %v350
    %v1793 = vpop.f32.mrf.mxu0
    %v1794 = vadd.f32 %v1753, %v1793
    %v1795 = vpop.f32.mrf.mxu0
    %v1796 = vadd.f32 %v1755, %v1795
    %v1797 = vpop.f32.mrf.mxu0
    %v1798 = vpop.f32.mrf.mxu0
    %1799 = vdwg.mxu0
    %1800 = vmatprep.subr.bf16.mxu0 %v1185
    %1801 = vmatpush1.bf16.msra.mxu0 %v1184
    %1802 = vmatprep.subr.bf16.mxu0 %v1177
    %1803 = vmatpush1.bf16.msra.mxu0 %v1176
    %1804 = vmatprep.subr.bf16.mxu0 %v1169
    %1805 = vmatpush1.bf16.msra.mxu0 %v1168
    %1806 = vmatprep.subr.bf16.mxu0 %v1161
    %1807 = vmatpush1.bf16.msra.mxu0 %v1160
    %1808 = vmatprep.subr.bf16.mxu0 %v1153
    %1809 = vmatpush1.bf16.msra.mxu0 %v1152
    %1810 = vmatprep.subr.bf16.mxu0 %v1145
    %1811 = vmatpush1.bf16.msra.mxu0 %v1144
    %1812 = vmatprep.subr.bf16.mxu0 %v1137
    %1813 = vmatpush1.bf16.msra.mxu0 %v1136
    %1814 = vmatprep.subr.bf16.mxu0 %v1129
    %1815 = vmatpush1.bf16.msra.mxu0 %v1128
    %1816 = vmatprep.subr.bf16.mxu0 %v1249
    %1817 = vmatpush2.bf16.msra.mxu0 %v1248
    %1818 = vmatprep.subr.bf16.mxu0 %v1241
    %1819 = vmatpush2.bf16.msra.mxu0 %v1240
    %1820 = vmatprep.subr.bf16.mxu0 %v1233
    %1821 = vmatpush2.bf16.msra.mxu0 %v1232
    %1822 = vmatprep.subr.bf16.mxu0 %v1225
    %1823 = vmatpush2.bf16.msra.mxu0 %v1224
    %1824 = vmatprep.subr.bf16.mxu0 %v1217
    %1825 = vmatpush2.bf16.msra.mxu0 %v1216
    %1826 = vmatprep.subr.bf16.mxu0 %v1209
    %1827 = vmatpush2.bf16.msra.mxu0 %v1208
    %1828 = vmatprep.subr.bf16.mxu0 %v1201
    %1829 = vmatpush2.bf16.msra.mxu0 %v1200
    %1830 = vmatprep.subr.bf16.mxu0 %v1193
    %1831 = vmatpush2.bf16.msra.mxu0 %v1192
    %1832 = vmatprep.mubr.bf16.mxu0 %v349
    %1833 = vmatmul.mubr.bf16.gmra.mxu0 %v342
    %v1834 = vpop.f32.mrf.mxu0
    %v1835 = vadd.f32 %v306, %v1834
    %v1836 = vpop.f32.mrf.mxu0
    %v1837 = vadd.f32 %v310, %v1836
    %v1838 = vpop.f32.mrf.mxu0
    %v1839 = vpop.f32.mrf.mxu0
    %1840 = vdwg.mxu0
    %1841 = vmatprep.subr.bf16.mxu0 %v1313
    %1842 = vmatpush1.bf16.msra.mxu0 %v1312
    %1843 = vmatprep.subr.bf16.mxu0 %v1305
    %1844 = vmatpush1.bf16.msra.mxu0 %v1304
    %1845 = vmatprep.subr.bf16.mxu0 %v1297
    %1846 = vmatpush1.bf16.msra.mxu0 %v1296
    %1847 = vmatprep.subr.bf16.mxu0 %v1289
    %1848 = vmatpush1.bf16.msra.mxu0 %v1288
    %1849 = vmatprep.subr.bf16.mxu0 %v1281
    %1850 = vmatpush1.bf16.msra.mxu0 %v1280
    %1851 = vmatprep.subr.bf16.mxu0 %v1273
    %1852 = vmatpush1.bf16.msra.mxu0 %v1272
    %1853 = vmatprep.subr.bf16.mxu0 %v1265
    %1854 = vmatpush1.bf16.msra.mxu0 %v1264
    %1855 = vmatprep.subr.bf16.mxu0 %v1257
    %1856 = vmatpush1.bf16.msra.mxu0 %v1256
    %1857 = vmatprep.subr.bf16.mxu0 %v1377
    %1858 = vmatpush2.bf16.msra.mxu0 %v1376
    %1859 = vmatprep.subr.bf16.mxu0 %v1369
    %1860 = vmatpush2.bf16.msra.mxu0 %v1368
    %1861 = vmatprep.subr.bf16.mxu0 %v1361
    %1862 = vmatpush2.bf16.msra.mxu0 %v1360
    %1863 = vmatprep.subr.bf16.mxu0 %v1353
    %1864 = vmatpush2.bf16.msra.mxu0 %v1352
    %1865 = vmatprep.subr.bf16.mxu0 %v1345
    %1866 = vmatpush2.bf16.msra.mxu0 %v1344
    %1867 = vmatprep.subr.bf16.mxu0 %v1337
    %1868 = vmatpush2.bf16.msra.mxu0 %v1336
    %1869 = vmatprep.subr.bf16.mxu0 %v1329
    %1870 = vmatpush2.bf16.msra.mxu0 %v1328
    %1871 = vmatprep.subr.bf16.mxu0 %v1321
    %1872 = vmatpush2.bf16.msra.mxu0 %v1320
    %1873 = vmatprep.mubr.bf16.mxu0 %v351
    %1874 = vmatmul.mubr.bf16.gmra.mxu0 %v350
    %v1875 = vpop.f32.mrf.mxu0
    %v1876 = vadd.f32 %v1835, %v1875
    %v1877 = vpop.f32.mrf.mxu0
    %v1878 = vadd.f32 %v1837, %v1877
    %v1879 = vpop.f32.mrf.mxu0
    %v1880 = vpop.f32.mrf.mxu0
    %1881 = vdwg.mxu0
    %1882 = vmatprep.subr.bf16.mxu0 %v1187
    %1883 = vmatpush1.bf16.msra.mxu0 %v1186
    %1884 = vmatprep.subr.bf16.mxu0 %v1179
    %1885 = vmatpush1.bf16.msra.mxu0 %v1178
    %1886 = vmatprep.subr.bf16.mxu0 %v1171
    %1887 = vmatpush1.bf16.msra.mxu0 %v1170
    %1888 = vmatprep.subr.bf16.mxu0 %v1163
    %1889 = vmatpush1.bf16.msra.mxu0 %v1162
    %1890 = vmatprep.subr.bf16.mxu0 %v1155
    %1891 = vmatpush1.bf16.msra.mxu0 %v1154
    %1892 = vmatprep.subr.bf16.mxu0 %v1147
    %1893 = vmatpush1.bf16.msra.mxu0 %v1146
    %1894 = vmatprep.subr.bf16.mxu0 %v1139
    %1895 = vmatpush1.bf16.msra.mxu0 %v1138
    %1896 = vmatprep.subr.bf16.mxu0 %v1131
    %1897 = vmatpush1.bf16.msra.mxu0 %v1130
    %1898 = vmatprep.subr.bf16.mxu0 %v1251
    %1899 = vmatpush2.bf16.msra.mxu0 %v1250
    %1900 = vmatprep.subr.bf16.mxu0 %v1243
    %1901 = vmatpush2.bf16.msra.mxu0 %v1242
    %1902 = vmatprep.subr.bf16.mxu0 %v1235
    %1903 = vmatpush2.bf16.msra.mxu0 %v1234
    %1904 = vmatprep.subr.bf16.mxu0 %v1227
    %1905 = vmatpush2.bf16.msra.mxu0 %v1226
    %1906 = vmatprep.subr.bf16.mxu0 %v1219
    %1907 = vmatpush2.bf16.msra.mxu0 %v1218
    %1908 = vmatprep.subr.bf16.mxu0 %v1211
    %1909 = vmatpush2.bf16.msra.mxu0 %v1210
    %1910 = vmatprep.subr.bf16.mxu0 %v1203
    %1911 = vmatpush2.bf16.msra.mxu0 %v1202
    %1912 = vmatprep.subr.bf16.mxu0 %v1195
    %1913 = vmatpush2.bf16.msra.mxu0 %v1194
    %1914 = vmatprep.mubr.bf16.mxu0 %v349
    %1915 = vmatmul.mubr.bf16.gmra.mxu0 %v342
    %v1916 = vpop.f32.mrf.mxu0
    %v1917 = vadd.f32 %v314, %v1916
    %v1918 = vpop.f32.mrf.mxu0
    %v1919 = vadd.f32 %v318, %v1918
    %v1920 = vpop.f32.mrf.mxu0
    %v1921 = vpop.f32.mrf.mxu0
    %1922 = vdwg.mxu0
    %1923 = vmatprep.subr.bf16.mxu0 %v1315
    %1924 = vmatpush1.bf16.msra.mxu0 %v1314
    %1925 = vmatprep.subr.bf16.mxu0 %v1307
    %1926 = vmatpush1.bf16.msra.mxu0 %v1306
    %1927 = vmatprep.subr.bf16.mxu0 %v1299
    %1928 = vmatpush1.bf16.msra.mxu0 %v1298
    %1929 = vmatprep.subr.bf16.mxu0 %v1291
    %1930 = vmatpush1.bf16.msra.mxu0 %v1290
    %1931 = vmatprep.subr.bf16.mxu0 %v1283
    %1932 = vmatpush1.bf16.msra.mxu0 %v1282
    %1933 = vmatprep.subr.bf16.mxu0 %v1275
    %1934 = vmatpush1.bf16.msra.mxu0 %v1274
    %1935 = vmatprep.subr.bf16.mxu0 %v1267
    %1936 = vmatpush1.bf16.msra.mxu0 %v1266
    %1937 = vmatprep.subr.bf16.mxu0 %v1259
    %1938 = vmatpush1.bf16.msra.mxu0 %v1258
    %1939 = vmatprep.subr.bf16.mxu0 %v1379
    %1940 = vmatpush2.bf16.msra.mxu0 %v1378
    %1941 = vmatprep.subr.bf16.mxu0 %v1371
    %1942 = vmatpush2.bf16.msra.mxu0 %v1370
    %1943 = vmatprep.subr.bf16.mxu0 %v1363
    %1944 = vmatpush2.bf16.msra.mxu0 %v1362
    %1945 = vmatprep.subr.bf16.mxu0 %v1355
    %1946 = vmatpush2.bf16.msra.mxu0 %v1354
    %1947 = vmatprep.subr.bf16.mxu0 %v1347
    %1948 = vmatpush2.bf16.msra.mxu0 %v1346
    %1949 = vmatprep.subr.bf16.mxu0 %v1339
    %1950 = vmatpush2.bf16.msra.mxu0 %v1338
    %1951 = vmatprep.subr.bf16.mxu0 %v1331
    %1952 = vmatpush2.bf16.msra.mxu0 %v1330
    %1953 = vmatprep.subr.bf16.mxu0 %v1323
    %1954 = vmatpush2.bf16.msra.mxu0 %v1322
    %1955 = vmatprep.mubr.bf16.mxu0 %v351
    %1956 = vmatmul.mubr.bf16.gmra.mxu0 %v350
    %v1957 = vpop.f32.mrf.mxu0
    %v1958 = vadd.f32 %v1917, %v1957
    %v1959 = vpop.f32.mrf.mxu0
    %v1960 = vadd.f32 %v1919, %v1959
    %v1961 = vpop.f32.mrf.mxu0
    %v1962 = vpop.f32.mrf.mxu0
    %1963 = vdwg.mxu0
    %v1964 = vmax.f32 %v1712, 0.0
    %v1965 = vmax.f32 %v1714, 0.0
    %v1966 = vmax.f32 %v1794, 0.0
    %v1967 = vmax.f32 %v1796, 0.0
    %v1968 = vmax.f32 %v1876, 0.0
    %v1969 = vmax.f32 %v1878, 0.0
    %v1970 = vmax.f32 %v1958, 0.0
    %v1971 = vmax.f32 %v1960, 0.0
    %v1972 = vpack.c.bf16 %v1964, %v1964
    %v1973 = vpack.c.bf16 %v1965, %v1965
    %v1974 = vpack.c.bf16 %v1966, %v1966
    %v1975 = vpack.c.bf16 %v1967, %v1967
    %v1976 = vpack.c.bf16 %v1968, %v1968
    %v1977 = vpack.c.bf16 %v1969, %v1969
    %v1978 = vpack.c.bf16 %v1970, %v1970
    %v1979 = vpack.c.bf16 %v1971, %v1971
    %v1980 = vld [vmem:[%s3] sm:$0xff]
    %v1981 = vld [vmem:[%s3 + $0x8] sm:$0xff]
    %v1982 = vld [vmem:[%s3 + $0x10] sm:$0xff]
    %v1983 = vld [vmem:[%s3 + $0x18] sm:$0xff]
    %v1984 = vld [vmem:[%s3 + $0x20] sm:$0xff]
    %v1985 = vld [vmem:[%s3 + $0x28] sm:$0xff]
    %v1986 = vld [vmem:[%s3 + $0x30] sm:$0xff]
    %v1987 = vld [vmem:[%s3 + $0x38] sm:$0xff]
    %v1988 = vld [vmem:[%s3 + $0x40] sm:$0xff]
    %v1989 = vld [vmem:[%s3 + $0x48] sm:$0xff]
    %v1990 = vld [vmem:[%s3 + $0x50] sm:$0xff]
    %v1991 = vld [vmem:[%s3 + $0x58] sm:$0xff]
    %v1992 = vld [vmem:[%s3 + $0x60] sm:$0xff]
    %v1993 = vld [vmem:[%s3 + $0x68] sm:$0xff]
    %v1994 = vld [vmem:[%s3 + $0x70] sm:$0xff]
    %v1995 = vld [vmem:[%s3 + $0x78] sm:$0xff]
    %v1996 = vld [vmem:[%s3 + $0x80] sm:$0xff]
    %v1997 = vld [vmem:[%s3 + $0x88] sm:$0xff]
    %v1998 = vld [vmem:[%s3 + $0x90] sm:$0xff]
    %v1999 = vld [vmem:[%s3 + $0x98] sm:$0xff]
    %v2000 = vld [vmem:[%s3 + $0xa0] sm:$0xff]
    %v2001 = vld [vmem:[%s3 + $0xa8] sm:$0xff]
    %v2002 = vld [vmem:[%s3 + $0xb0] sm:$0xff]
    %v2003 = vld [vmem:[%s3 + $0xb8] sm:$0xff]
    %v2004 = vld [vmem:[%s3 + $0xc0] sm:$0xff]
    %v2005 = vld [vmem:[%s3 + $0xc8] sm:$0xff]
    %v2006 = vld [vmem:[%s3 + $0xd0] sm:$0xff]
    %v2007 = vld [vmem:[%s3 + $0xd8] sm:$0xff]
    %v2008 = vld [vmem:[%s3 + $0xe0] sm:$0xff]
    %v2009 = vld [vmem:[%s3 + $0xe8] sm:$0xff]
    %v2010 = vld [vmem:[%s3 + $0xf0] sm:$0xff]
    %v2011 = vld [vmem:[%s3 + $0xf8] sm:$0xff]
    %v2012 = vld [vmem:[%s3 + $0x100] sm:$0xff]
    %v2013 = vld [vmem:[%s3 + $0x108] sm:$0xff]
    %v2014 = vld [vmem:[%s3 + $0x110] sm:$0xff]
    %v2015 = vld [vmem:[%s3 + $0x118] sm:$0xff]
    %v2016 = vld [vmem:[%s3 + $0x120] sm:$0xff]
    %v2017 = vld [vmem:[%s3 + $0x128] sm:$0xff]
    %v2018 = vld [vmem:[%s3 + $0x130] sm:$0xff]
    %v2019 = vld [vmem:[%s3 + $0x138] sm:$0xff]
    %v2020 = vld [vmem:[%s3 + $0x140] sm:$0xff]
    %v2021 = vld [vmem:[%s3 + $0x148] sm:$0xff]
    %v2022 = vld [vmem:[%s3 + $0x150] sm:$0xff]
    %v2023 = vld [vmem:[%s3 + $0x158] sm:$0xff]
    %v2024 = vld [vmem:[%s3 + $0x160] sm:$0xff]
    %v2025 = vld [vmem:[%s3 + $0x168] sm:$0xff]
    %v2026 = vld [vmem:[%s3 + $0x170] sm:$0xff]
    %v2027 = vld [vmem:[%s3 + $0x178] sm:$0xff]
    %v2028 = vld [vmem:[%s3 + $0x180] sm:$0xff]
    %v2029 = vld [vmem:[%s3 + $0x188] sm:$0xff]
    %v2030 = vld [vmem:[%s3 + $0x190] sm:$0xff]
    %v2031 = vld [vmem:[%s3 + $0x198] sm:$0xff]
    %v2032 = vld [vmem:[%s3 + $0x1a0] sm:$0xff]
    %v2033 = vld [vmem:[%s3 + $0x1a8] sm:$0xff]
    %v2034 = vld [vmem:[%s3 + $0x1b0] sm:$0xff]
    %v2035 = vld [vmem:[%s3 + $0x1b8] sm:$0xff]
    %v2036 = vld [vmem:[%s3 + $0x1c0] sm:$0xff]
    %v2037 = vld [vmem:[%s3 + $0x1c8] sm:$0xff]
    %v2038 = vld [vmem:[%s3 + $0x1d0] sm:$0xff]
    %v2039 = vld [vmem:[%s3 + $0x1d8] sm:$0xff]
    %v2040 = vld [vmem:[%s3 + $0x1e0] sm:$0xff]
    %v2041 = vld [vmem:[%s3 + $0x1e8] sm:$0xff]
    %v2042 = vld [vmem:[%s3 + $0x1f0] sm:$0xff]
    %v2043 = vld [vmem:[%s3 + $0x1f8] sm:$0xff]
    %v2044 = vld [vmem:[%s3 + $0x200] sm:$0xff]
    %v2045 = vld [vmem:[%s3 + $0x208] sm:$0xff]
    %v2046 = vld [vmem:[%s3 + $0x210] sm:$0xff]
    %v2047 = vld [vmem:[%s3 + $0x218] sm:$0xff]
    %v2048 = vld [vmem:[%s3 + $0x220] sm:$0xff]
    %v2049 = vld [vmem:[%s3 + $0x228] sm:$0xff]
    %v2050 = vld [vmem:[%s3 + $0x230] sm:$0xff]
    %v2051 = vld [vmem:[%s3 + $0x238] sm:$0xff]
    %v2052 = vld [vmem:[%s3 + $0x240] sm:$0xff]
    %v2053 = vld [vmem:[%s3 + $0x248] sm:$0xff]
    %v2054 = vld [vmem:[%s3 + $0x250] sm:$0xff]
    %v2055 = vld [vmem:[%s3 + $0x258] sm:$0xff]
    %v2056 = vld [vmem:[%s3 + $0x260] sm:$0xff]
    %v2057 = vld [vmem:[%s3 + $0x268] sm:$0xff]
    %v2058 = vld [vmem:[%s3 + $0x270] sm:$0xff]
    %v2059 = vld [vmem:[%s3 + $0x278] sm:$0xff]
    %v2060 = vld [vmem:[%s3 + $0x280] sm:$0xff]
    %v2061 = vld [vmem:[%s3 + $0x288] sm:$0xff]
    %v2062 = vld [vmem:[%s3 + $0x290] sm:$0xff]
    %v2063 = vld [vmem:[%s3 + $0x298] sm:$0xff]
    %v2064 = vld [vmem:[%s3 + $0x2a0] sm:$0xff]
    %v2065 = vld [vmem:[%s3 + $0x2a8] sm:$0xff]
    %v2066 = vld [vmem:[%s3 + $0x2b0] sm:$0xff]
    %v2067 = vld [vmem:[%s3 + $0x2b8] sm:$0xff]
    %v2068 = vld [vmem:[%s3 + $0x2c0] sm:$0xff]
    %v2069 = vld [vmem:[%s3 + $0x2c8] sm:$0xff]
    %v2070 = vld [vmem:[%s3 + $0x2d0] sm:$0xff]
    %v2071 = vld [vmem:[%s3 + $0x2d8] sm:$0xff]
    %v2072 = vld [vmem:[%s3 + $0x2e0] sm:$0xff]
    %v2073 = vld [vmem:[%s3 + $0x2e8] sm:$0xff]
    %v2074 = vld [vmem:[%s3 + $0x2f0] sm:$0xff]
    %v2075 = vld [vmem:[%s3 + $0x2f8] sm:$0xff]
    %v2076 = vld [vmem:[%s3 + $0x300] sm:$0xff]
    %v2077 = vld [vmem:[%s3 + $0x308] sm:$0xff]
    %v2078 = vld [vmem:[%s3 + $0x310] sm:$0xff]
    %v2079 = vld [vmem:[%s3 + $0x318] sm:$0xff]
    %v2080 = vld [vmem:[%s3 + $0x320] sm:$0xff]
    %v2081 = vld [vmem:[%s3 + $0x328] sm:$0xff]
    %v2082 = vld [vmem:[%s3 + $0x330] sm:$0xff]
    %v2083 = vld [vmem:[%s3 + $0x338] sm:$0xff]
    %v2084 = vld [vmem:[%s3 + $0x340] sm:$0xff]
    %v2085 = vld [vmem:[%s3 + $0x348] sm:$0xff]
    %v2086 = vld [vmem:[%s3 + $0x350] sm:$0xff]
    %v2087 = vld [vmem:[%s3 + $0x358] sm:$0xff]
    %v2088 = vld [vmem:[%s3 + $0x360] sm:$0xff]
    %v2089 = vld [vmem:[%s3 + $0x368] sm:$0xff]
    %v2090 = vld [vmem:[%s3 + $0x370] sm:$0xff]
    %v2091 = vld [vmem:[%s3 + $0x378] sm:$0xff]
    %v2092 = vld [vmem:[%s3 + $0x380] sm:$0xff]
    %v2093 = vld [vmem:[%s3 + $0x388] sm:$0xff]
    %v2094 = vld [vmem:[%s3 + $0x390] sm:$0xff]
    %v2095 = vld [vmem:[%s3 + $0x398] sm:$0xff]
    %v2096 = vld [vmem:[%s3 + $0x3a0] sm:$0xff]
    %v2097 = vld [vmem:[%s3 + $0x3a8] sm:$0xff]
    %v2098 = vld [vmem:[%s3 + $0x3b0] sm:$0xff]
    %v2099 = vld [vmem:[%s3 + $0x3b8] sm:$0xff]
    %v2100 = vld [vmem:[%s3 + $0x3c0] sm:$0xff]
    %v2101 = vld [vmem:[%s3 + $0x3c8] sm:$0xff]
    %v2102 = vld [vmem:[%s3 + $0x3d0] sm:$0xff]
    %v2103 = vld [vmem:[%s3 + $0x3d8] sm:$0xff]
    %v2104 = vld [vmem:[%s3 + $0x3e0] sm:$0xff]
    %v2105 = vld [vmem:[%s3 + $0x3e8] sm:$0xff]
    %v2106 = vld [vmem:[%s3 + $0x3f0] sm:$0xff]
    %v2107 = vld [vmem:[%s3 + $0x3f8] sm:$0xff]
    %v2108 = vld [vmem:[%s4] sm:$0x3]
    %v2110 = vlaneseq
    %v2111 = vshrl.u32 %v2110, 7
    %v2112 = vsub.s32 0, %v2111
    %v2113 = vrot.slane %v2108, %v2112
    %v2114 = vlaneseq
    %v2115 = vshrl.u32 %v2114, 7
    %v2116 = vsub.s32 1, %v2115
    %v2117 = vrot.slane %v2108, %v2116
    %v2248 = vunpack.c.l.b16 %v1980
    %v2249 = vunpack.c.h.b16 %v1980
    %v2250 = vunpack.c.l.b16 %v1981
    %v2251 = vunpack.c.h.b16 %v1981
    %v2252 = vunpack.c.l.b16 %v1982
    %v2253 = vunpack.c.h.b16 %v1982
    %v2254 = vunpack.c.l.b16 %v1983
    %v2255 = vunpack.c.h.b16 %v1983
    %v2256 = vunpack.c.l.b16 %v1984
    %v2257 = vunpack.c.h.b16 %v1984
    %v2258 = vunpack.c.l.b16 %v1985
    %v2259 = vunpack.c.h.b16 %v1985
    %v2260 = vunpack.c.l.b16 %v1986
    %v2261 = vunpack.c.h.b16 %v1986
    %v2262 = vunpack.c.l.b16 %v1987
    %v2263 = vunpack.c.h.b16 %v1987
    %v2264 = vunpack.c.l.b16 %v1988
    %v2265 = vunpack.c.h.b16 %v1988
    %v2266 = vunpack.c.l.b16 %v1989
    %v2267 = vunpack.c.h.b16 %v1989
    %v2268 = vunpack.c.l.b16 %v1990
    %v2269 = vunpack.c.h.b16 %v1990
    %v2270 = vunpack.c.l.b16 %v1991
    %v2271 = vunpack.c.h.b16 %v1991
    %v2272 = vunpack.c.l.b16 %v1992
    %v2273 = vunpack.c.h.b16 %v1992
    %v2274 = vunpack.c.l.b16 %v1993
    %v2275 = vunpack.c.h.b16 %v1993
    %v2276 = vunpack.c.l.b16 %v1994
    %v2277 = vunpack.c.h.b16 %v1994
    %v2278 = vunpack.c.l.b16 %v1995
    %v2279 = vunpack.c.h.b16 %v1995
    %v2280 = vunpack.c.l.b16 %v1996
    %v2281 = vunpack.c.h.b16 %v1996
    %v2282 = vunpack.c.l.b16 %v1997
    %v2283 = vunpack.c.h.b16 %v1997
    %v2284 = vunpack.c.l.b16 %v1998
    %v2285 = vunpack.c.h.b16 %v1998
    %v2286 = vunpack.c.l.b16 %v1999
    %v2287 = vunpack.c.h.b16 %v1999
    %v2288 = vunpack.c.l.b16 %v2000
    %v2289 = vunpack.c.h.b16 %v2000
    %v2290 = vunpack.c.l.b16 %v2001
    %v2291 = vunpack.c.h.b16 %v2001
    %v2292 = vunpack.c.l.b16 %v2002
    %v2293 = vunpack.c.h.b16 %v2002
    %v2294 = vunpack.c.l.b16 %v2003
    %v2295 = vunpack.c.h.b16 %v2003
    %v2296 = vunpack.c.l.b16 %v2004
    %v2297 = vunpack.c.h.b16 %v2004
    %v2298 = vunpack.c.l.b16 %v2005
    %v2299 = vunpack.c.h.b16 %v2005
    %v2300 = vunpack.c.l.b16 %v2006
    %v2301 = vunpack.c.h.b16 %v2006
    %v2302 = vunpack.c.l.b16 %v2007
    %v2303 = vunpack.c.h.b16 %v2007
    %v2304 = vunpack.c.l.b16 %v2008
    %v2305 = vunpack.c.h.b16 %v2008
    %v2306 = vunpack.c.l.b16 %v2009
    %v2307 = vunpack.c.h.b16 %v2009
    %v2308 = vunpack.c.l.b16 %v2010
    %v2309 = vunpack.c.h.b16 %v2010
    %v2310 = vunpack.c.l.b16 %v2011
    %v2311 = vunpack.c.h.b16 %v2011
    %v2312 = vunpack.c.l.b16 %v2012
    %v2313 = vunpack.c.h.b16 %v2012
    %v2314 = vunpack.c.l.b16 %v2013
    %v2315 = vunpack.c.h.b16 %v2013
    %v2316 = vunpack.c.l.b16 %v2014
    %v2317 = vunpack.c.h.b16 %v2014
    %v2318 = vunpack.c.l.b16 %v2015
    %v2319 = vunpack.c.h.b16 %v2015
    %v2320 = vunpack.c.l.b16 %v2016
    %v2321 = vunpack.c.h.b16 %v2016
    %v2322 = vunpack.c.l.b16 %v2017
    %v2323 = vunpack.c.h.b16 %v2017
    %v2324 = vunpack.c.l.b16 %v2018
    %v2325 = vunpack.c.h.b16 %v2018
    %v2326 = vunpack.c.l.b16 %v2019
    %v2327 = vunpack.c.h.b16 %v2019
    %v2328 = vunpack.c.l.b16 %v2020
    %v2329 = vunpack.c.h.b16 %v2020
    %v2330 = vunpack.c.l.b16 %v2021
    %v2331 = vunpack.c.h.b16 %v2021
    %v2332 = vunpack.c.l.b16 %v2022
    %v2333 = vunpack.c.h.b16 %v2022
    %v2334 = vunpack.c.l.b16 %v2023
    %v2335 = vunpack.c.h.b16 %v2023
    %v2336 = vunpack.c.l.b16 %v2024
    %v2337 = vunpack.c.h.b16 %v2024
    %v2338 = vunpack.c.l.b16 %v2025
    %v2339 = vunpack.c.h.b16 %v2025
    %v2340 = vunpack.c.l.b16 %v2026
    %v2341 = vunpack.c.h.b16 %v2026
    %v2342 = vunpack.c.l.b16 %v2027
    %v2343 = vunpack.c.h.b16 %v2027
    %v2344 = vunpack.c.l.b16 %v2028
    %v2345 = vunpack.c.h.b16 %v2028
    %v2346 = vunpack.c.l.b16 %v2029
    %v2347 = vunpack.c.h.b16 %v2029
    %v2348 = vunpack.c.l.b16 %v2030
    %v2349 = vunpack.c.h.b16 %v2030
    %v2350 = vunpack.c.l.b16 %v2031
    %v2351 = vunpack.c.h.b16 %v2031
    %v2352 = vunpack.c.l.b16 %v2032
    %v2353 = vunpack.c.h.b16 %v2032
    %v2354 = vunpack.c.l.b16 %v2033
    %v2355 = vunpack.c.h.b16 %v2033
    %v2356 = vunpack.c.l.b16 %v2034
    %v2357 = vunpack.c.h.b16 %v2034
    %v2358 = vunpack.c.l.b16 %v2035
    %v2359 = vunpack.c.h.b16 %v2035
    %v2360 = vunpack.c.l.b16 %v2036
    %v2361 = vunpack.c.h.b16 %v2036
    %v2362 = vunpack.c.l.b16 %v2037
    %v2363 = vunpack.c.h.b16 %v2037
    %v2364 = vunpack.c.l.b16 %v2038
    %v2365 = vunpack.c.h.b16 %v2038
    %v2366 = vunpack.c.l.b16 %v2039
    %v2367 = vunpack.c.h.b16 %v2039
    %v2368 = vunpack.c.l.b16 %v2040
    %v2369 = vunpack.c.h.b16 %v2040
    %v2370 = vunpack.c.l.b16 %v2041
    %v2371 = vunpack.c.h.b16 %v2041
    %v2372 = vunpack.c.l.b16 %v2042
    %v2373 = vunpack.c.h.b16 %v2042
    %v2374 = vunpack.c.l.b16 %v2043
    %v2375 = vunpack.c.h.b16 %v2043
    %v2376 = vunpack.c.l.b16 %v2044
    %v2377 = vunpack.c.h.b16 %v2044
    %v2378 = vunpack.c.l.b16 %v2045
    %v2379 = vunpack.c.h.b16 %v2045
    %v2380 = vunpack.c.l.b16 %v2046
    %v2381 = vunpack.c.h.b16 %v2046
    %v2382 = vunpack.c.l.b16 %v2047
    %v2383 = vunpack.c.h.b16 %v2047
    %v2384 = vunpack.c.l.b16 %v2048
    %v2385 = vunpack.c.h.b16 %v2048
    %v2386 = vunpack.c.l.b16 %v2049
    %v2387 = vunpack.c.h.b16 %v2049
    %v2388 = vunpack.c.l.b16 %v2050
    %v2389 = vunpack.c.h.b16 %v2050
    %v2390 = vunpack.c.l.b16 %v2051
    %v2391 = vunpack.c.h.b16 %v2051
    %v2392 = vunpack.c.l.b16 %v2052
    %v2393 = vunpack.c.h.b16 %v2052
    %v2394 = vunpack.c.l.b16 %v2053
    %v2395 = vunpack.c.h.b16 %v2053
    %v2396 = vunpack.c.l.b16 %v2054
    %v2397 = vunpack.c.h.b16 %v2054
    %v2398 = vunpack.c.l.b16 %v2055
    %v2399 = vunpack.c.h.b16 %v2055
    %v2400 = vunpack.c.l.b16 %v2056
    %v2401 = vunpack.c.h.b16 %v2056
    %v2402 = vunpack.c.l.b16 %v2057
    %v2403 = vunpack.c.h.b16 %v2057
    %v2404 = vunpack.c.l.b16 %v2058
    %v2405 = vunpack.c.h.b16 %v2058
    %v2406 = vunpack.c.l.b16 %v2059
    %v2407 = vunpack.c.h.b16 %v2059
    %v2408 = vunpack.c.l.b16 %v2060
    %v2409 = vunpack.c.h.b16 %v2060
    %v2410 = vunpack.c.l.b16 %v2061
    %v2411 = vunpack.c.h.b16 %v2061
    %v2412 = vunpack.c.l.b16 %v2062
    %v2413 = vunpack.c.h.b16 %v2062
    %v2414 = vunpack.c.l.b16 %v2063
    %v2415 = vunpack.c.h.b16 %v2063
    %v2416 = vunpack.c.l.b16 %v2064
    %v2417 = vunpack.c.h.b16 %v2064
    %v2418 = vunpack.c.l.b16 %v2065
    %v2419 = vunpack.c.h.b16 %v2065
    %v2420 = vunpack.c.l.b16 %v2066
    %v2421 = vunpack.c.h.b16 %v2066
    %v2422 = vunpack.c.l.b16 %v2067
    %v2423 = vunpack.c.h.b16 %v2067
    %v2424 = vunpack.c.l.b16 %v2068
    %v2425 = vunpack.c.h.b16 %v2068
    %v2426 = vunpack.c.l.b16 %v2069
    %v2427 = vunpack.c.h.b16 %v2069
    %v2428 = vunpack.c.l.b16 %v2070
    %v2429 = vunpack.c.h.b16 %v2070
    %v2430 = vunpack.c.l.b16 %v2071
    %v2431 = vunpack.c.h.b16 %v2071
    %v2432 = vunpack.c.l.b16 %v2072
    %v2433 = vunpack.c.h.b16 %v2072
    %v2434 = vunpack.c.l.b16 %v2073
    %v2435 = vunpack.c.h.b16 %v2073
    %v2436 = vunpack.c.l.b16 %v2074
    %v2437 = vunpack.c.h.b16 %v2074
    %v2438 = vunpack.c.l.b16 %v2075
    %v2439 = vunpack.c.h.b16 %v2075
    %v2440 = vunpack.c.l.b16 %v2076
    %v2441 = vunpack.c.h.b16 %v2076
    %v2442 = vunpack.c.l.b16 %v2077
    %v2443 = vunpack.c.h.b16 %v2077
    %v2444 = vunpack.c.l.b16 %v2078
    %v2445 = vunpack.c.h.b16 %v2078
    %v2446 = vunpack.c.l.b16 %v2079
    %v2447 = vunpack.c.h.b16 %v2079
    %v2448 = vunpack.c.l.b16 %v2080
    %v2449 = vunpack.c.h.b16 %v2080
    %v2450 = vunpack.c.l.b16 %v2081
    %v2451 = vunpack.c.h.b16 %v2081
    %v2452 = vunpack.c.l.b16 %v2082
    %v2453 = vunpack.c.h.b16 %v2082
    %v2454 = vunpack.c.l.b16 %v2083
    %v2455 = vunpack.c.h.b16 %v2083
    %v2456 = vunpack.c.l.b16 %v2084
    %v2457 = vunpack.c.h.b16 %v2084
    %v2458 = vunpack.c.l.b16 %v2085
    %v2459 = vunpack.c.h.b16 %v2085
    %v2460 = vunpack.c.l.b16 %v2086
    %v2461 = vunpack.c.h.b16 %v2086
    %v2462 = vunpack.c.l.b16 %v2087
    %v2463 = vunpack.c.h.b16 %v2087
    %v2464 = vunpack.c.l.b16 %v2088
    %v2465 = vunpack.c.h.b16 %v2088
    %v2466 = vunpack.c.l.b16 %v2089
    %v2467 = vunpack.c.h.b16 %v2089
    %v2468 = vunpack.c.l.b16 %v2090
    %v2469 = vunpack.c.h.b16 %v2090
    %v2470 = vunpack.c.l.b16 %v2091
    %v2471 = vunpack.c.h.b16 %v2091
    %v2472 = vunpack.c.l.b16 %v2092
    %v2473 = vunpack.c.h.b16 %v2092
    %v2474 = vunpack.c.l.b16 %v2093
    %v2475 = vunpack.c.h.b16 %v2093
    %v2476 = vunpack.c.l.b16 %v2094
    %v2477 = vunpack.c.h.b16 %v2094
    %v2478 = vunpack.c.l.b16 %v2095
    %v2479 = vunpack.c.h.b16 %v2095
    %v2480 = vunpack.c.l.b16 %v2096
    %v2481 = vunpack.c.h.b16 %v2096
    %v2482 = vunpack.c.l.b16 %v2097
    %v2483 = vunpack.c.h.b16 %v2097
    %v2484 = vunpack.c.l.b16 %v2098
    %v2485 = vunpack.c.h.b16 %v2098
    %v2486 = vunpack.c.l.b16 %v2099
    %v2487 = vunpack.c.h.b16 %v2099
    %v2488 = vunpack.c.l.b16 %v2100
    %v2489 = vunpack.c.h.b16 %v2100
    %v2490 = vunpack.c.l.b16 %v2101
    %v2491 = vunpack.c.h.b16 %v2101
    %v2492 = vunpack.c.l.b16 %v2102
    %v2493 = vunpack.c.h.b16 %v2102
    %v2494 = vunpack.c.l.b16 %v2103
    %v2495 = vunpack.c.h.b16 %v2103
    %v2496 = vunpack.c.l.b16 %v2104
    %v2497 = vunpack.c.h.b16 %v2104
    %v2498 = vunpack.c.l.b16 %v2105
    %v2499 = vunpack.c.h.b16 %v2105
    %v2500 = vunpack.c.l.b16 %v2106
    %v2501 = vunpack.c.h.b16 %v2106
    %v2502 = vunpack.c.l.b16 %v2107
    %v2503 = vunpack.c.h.b16 %v2107
    %v2504 = vpack.c.b16 %v2250, %v2248
    %v2505 = vpack.c.b16 %v2251, %v2249
    %v2506 = vpack.c.b16 %v2254, %v2252
    %v2507 = vpack.c.b16 %v2255, %v2253
    %v2508 = vpack.c.b16 %v2258, %v2256
    %v2509 = vpack.c.b16 %v2259, %v2257
    %v2510 = vpack.c.b16 %v2262, %v2260
    %v2511 = vpack.c.b16 %v2263, %v2261
    %v2512 = vpack.c.b16 %v2266, %v2264
    %v2513 = vpack.c.b16 %v2267, %v2265
    %v2514 = vpack.c.b16 %v2270, %v2268
    %v2515 = vpack.c.b16 %v2271, %v2269
    %v2516 = vpack.c.b16 %v2274, %v2272
    %v2517 = vpack.c.b16 %v2275, %v2273
    %v2518 = vpack.c.b16 %v2278, %v2276
    %v2519 = vpack.c.b16 %v2279, %v2277
    %v2520 = vpack.c.b16 %v2282, %v2280
    %v2521 = vpack.c.b16 %v2283, %v2281
    %v2522 = vpack.c.b16 %v2286, %v2284
    %v2523 = vpack.c.b16 %v2287, %v2285
    %v2524 = vpack.c.b16 %v2290, %v2288
    %v2525 = vpack.c.b16 %v2291, %v2289
    %v2526 = vpack.c.b16 %v2294, %v2292
    %v2527 = vpack.c.b16 %v2295, %v2293
    %v2528 = vpack.c.b16 %v2298, %v2296
    %v2529 = vpack.c.b16 %v2299, %v2297
    %v2530 = vpack.c.b16 %v2302, %v2300
    %v2531 = vpack.c.b16 %v2303, %v2301
    %v2532 = vpack.c.b16 %v2306, %v2304
    %v2533 = vpack.c.b16 %v2307, %v2305
    %v2534 = vpack.c.b16 %v2310, %v2308
    %v2535 = vpack.c.b16 %v2311, %v2309
    %v2536 = vpack.c.b16 %v2314, %v2312
    %v2537 = vpack.c.b16 %v2315, %v2313
    %v2538 = vpack.c.b16 %v2318, %v2316
    %v2539 = vpack.c.b16 %v2319, %v2317
    %v2540 = vpack.c.b16 %v2322, %v2320
    %v2541 = vpack.c.b16 %v2323, %v2321
    %v2542 = vpack.c.b16 %v2326, %v2324
    %v2543 = vpack.c.b16 %v2327, %v2325
    %v2544 = vpack.c.b16 %v2330, %v2328
    %v2545 = vpack.c.b16 %v2331, %v2329
    %v2546 = vpack.c.b16 %v2334, %v2332
    %v2547 = vpack.c.b16 %v2335, %v2333
    %v2548 = vpack.c.b16 %v2338, %v2336
    %v2549 = vpack.c.b16 %v2339, %v2337
    %v2550 = vpack.c.b16 %v2342, %v2340
    %v2551 = vpack.c.b16 %v2343, %v2341
    %v2552 = vpack.c.b16 %v2346, %v2344
    %v2553 = vpack.c.b16 %v2347, %v2345
    %v2554 = vpack.c.b16 %v2350, %v2348
    %v2555 = vpack.c.b16 %v2351, %v2349
    %v2556 = vpack.c.b16 %v2354, %v2352
    %v2557 = vpack.c.b16 %v2355, %v2353
    %v2558 = vpack.c.b16 %v2358, %v2356
    %v2559 = vpack.c.b16 %v2359, %v2357
    %v2560 = vpack.c.b16 %v2362, %v2360
    %v2561 = vpack.c.b16 %v2363, %v2361
    %v2562 = vpack.c.b16 %v2366, %v2364
    %v2563 = vpack.c.b16 %v2367, %v2365
    %v2564 = vpack.c.b16 %v2370, %v2368
    %v2565 = vpack.c.b16 %v2371, %v2369
    %v2566 = vpack.c.b16 %v2374, %v2372
    %v2567 = vpack.c.b16 %v2375, %v2373
    %v2568 = vpack.c.b16 %v2378, %v2376
    %v2569 = vpack.c.b16 %v2379, %v2377
    %v2570 = vpack.c.b16 %v2382, %v2380
    %v2571 = vpack.c.b16 %v2383, %v2381
    %v2572 = vpack.c.b16 %v2386, %v2384
    %v2573 = vpack.c.b16 %v2387, %v2385
    %v2574 = vpack.c.b16 %v2390, %v2388
    %v2575 = vpack.c.b16 %v2391, %v2389
    %v2576 = vpack.c.b16 %v2394, %v2392
    %v2577 = vpack.c.b16 %v2395, %v2393
    %v2578 = vpack.c.b16 %v2398, %v2396
    %v2579 = vpack.c.b16 %v2399, %v2397
    %v2580 = vpack.c.b16 %v2402, %v2400
    %v2581 = vpack.c.b16 %v2403, %v2401
    %v2582 = vpack.c.b16 %v2406, %v2404
    %v2583 = vpack.c.b16 %v2407, %v2405
    %v2584 = vpack.c.b16 %v2410, %v2408
    %v2585 = vpack.c.b16 %v2411, %v2409
    %v2586 = vpack.c.b16 %v2414, %v2412
    %v2587 = vpack.c.b16 %v2415, %v2413
    %v2588 = vpack.c.b16 %v2418, %v2416
    %v2589 = vpack.c.b16 %v2419, %v2417
    %v2590 = vpack.c.b16 %v2422, %v2420
    %v2591 = vpack.c.b16 %v2423, %v2421
    %v2592 = vpack.c.b16 %v2426, %v2424
    %v2593 = vpack.c.b16 %v2427, %v2425
    %v2594 = vpack.c.b16 %v2430, %v2428
    %v2595 = vpack.c.b16 %v2431, %v2429
    %v2596 = vpack.c.b16 %v2434, %v2432
    %v2597 = vpack.c.b16 %v2435, %v2433
    %v2598 = vpack.c.b16 %v2438, %v2436
    %v2599 = vpack.c.b16 %v2439, %v2437
    %v2600 = vpack.c.b16 %v2442, %v2440
    %v2601 = vpack.c.b16 %v2443, %v2441
    %v2602 = vpack.c.b16 %v2446, %v2444
    %v2603 = vpack.c.b16 %v2447, %v2445
    %v2604 = vpack.c.b16 %v2450, %v2448
    %v2605 = vpack.c.b16 %v2451, %v2449
    %v2606 = vpack.c.b16 %v2454, %v2452
    %v2607 = vpack.c.b16 %v2455, %v2453
    %v2608 = vpack.c.b16 %v2458, %v2456
    %v2609 = vpack.c.b16 %v2459, %v2457
    %v2610 = vpack.c.b16 %v2462, %v2460
    %v2611 = vpack.c.b16 %v2463, %v2461
    %v2612 = vpack.c.b16 %v2466, %v2464
    %v2613 = vpack.c.b16 %v2467, %v2465
    %v2614 = vpack.c.b16 %v2470, %v2468
    %v2615 = vpack.c.b16 %v2471, %v2469
    %v2616 = vpack.c.b16 %v2474, %v2472
    %v2617 = vpack.c.b16 %v2475, %v2473
    %v2618 = vpack.c.b16 %v2478, %v2476
    %v2619 = vpack.c.b16 %v2479, %v2477
    %v2620 = vpack.c.b16 %v2482, %v2480
    %v2621 = vpack.c.b16 %v2483, %v2481
    %v2622 = vpack.c.b16 %v2486, %v2484
    %v2623 = vpack.c.b16 %v2487, %v2485
    %v2624 = vpack.c.b16 %v2490, %v2488
    %v2625 = vpack.c.b16 %v2491, %v2489
    %v2626 = vpack.c.b16 %v2494, %v2492
    %v2627 = vpack.c.b16 %v2495, %v2493
    %v2628 = vpack.c.b16 %v2498, %v2496
    %v2629 = vpack.c.b16 %v2499, %v2497
    %v2630 = vpack.c.b16 %v2502, %v2500
    %v2631 = vpack.c.b16 %v2503, %v2501
    %2760 = vmatprep.subr.bf16.mxu0 %v2519
    %2761 = vmatpush1.bf16.msra.mxu0 %v2518
    %2762 = vmatprep.subr.bf16.mxu0 %v2517
    %2763 = vmatpush1.bf16.msra.mxu0 %v2516
    %2764 = vmatprep.subr.bf16.mxu0 %v2515
    %2765 = vmatpush1.bf16.msra.mxu0 %v2514
    %2766 = vmatprep.subr.bf16.mxu0 %v2513
    %2767 = vmatpush1.bf16.msra.mxu0 %v2512
    %2768 = vmatprep.subr.bf16.mxu0 %v2511
    %2769 = vmatpush1.bf16.msra.mxu0 %v2510
    %2770 = vmatprep.subr.bf16.mxu0 %v2509
    %2771 = vmatpush1.bf16.msra.mxu0 %v2508
    %2772 = vmatprep.subr.bf16.mxu0 %v2507
    %2773 = vmatpush1.bf16.msra.mxu0 %v2506
    %2774 = vmatprep.subr.bf16.mxu0 %v2505
    %2775 = vmatpush1.bf16.msra.mxu0 %v2504
    %2776 = vmatprep.subr.bf16.mxu0 %v2535
    %2777 = vmatpush2.bf16.msra.mxu0 %v2534
    %2778 = vmatprep.subr.bf16.mxu0 %v2533
    %2779 = vmatpush2.bf16.msra.mxu0 %v2532
    %2780 = vmatprep.subr.bf16.mxu0 %v2531
    %2781 = vmatpush2.bf16.msra.mxu0 %v2530
    %2782 = vmatprep.subr.bf16.mxu0 %v2529
    %2783 = vmatpush2.bf16.msra.mxu0 %v2528
    %2784 = vmatprep.subr.bf16.mxu0 %v2527
    %2785 = vmatpush2.bf16.msra.mxu0 %v2526
    %2786 = vmatprep.subr.bf16.mxu0 %v2525
    %2787 = vmatpush2.bf16.msra.mxu0 %v2524
    %2788 = vmatprep.subr.bf16.mxu0 %v2523
    %2789 = vmatpush2.bf16.msra.mxu0 %v2522
    %2790 = vmatprep.subr.bf16.mxu0 %v2521
    %2791 = vmatpush2.bf16.msra.mxu0 %v2520
    %2792 = vmatprep.mubr.bf16.mxu0 %v1973
    %2793 = vmatmul.mubr.bf16.gmra.mxu0 %v1972
    %v2794 = vpop.f32.mrf.mxu0
    %v2795 = vadd.f32 %v2113, %v2794
    %v2796 = vpop.f32.mrf.mxu0
    %v2797 = vadd.f32 %v2117, %v2796
    %v2798 = vpop.f32.mrf.mxu0
    %v2799 = vpop.f32.mrf.mxu0
    %2800 = vdwg.mxu0
    %2801 = vmatprep.subr.bf16.mxu0 %v2551
    %2802 = vmatpush1.bf16.msra.mxu0 %v2550
    %2803 = vmatprep.subr.bf16.mxu0 %v2549
    %2804 = vmatpush1.bf16.msra.mxu0 %v2548
    %2805 = vmatprep.subr.bf16.mxu0 %v2547
    %2806 = vmatpush1.bf16.msra.mxu0 %v2546
    %2807 = vmatprep.subr.bf16.mxu0 %v2545
    %2808 = vmatpush1.bf16.msra.mxu0 %v2544
    %2809 = vmatprep.subr.bf16.mxu0 %v2543
    %2810 = vmatpush1.bf16.msra.mxu0 %v2542
    %2811 = vmatprep.subr.bf16.mxu0 %v2541
    %2812 = vmatpush1.bf16.msra.mxu0 %v2540
    %2813 = vmatprep.subr.bf16.mxu0 %v2539
    %2814 = vmatpush1.bf16.msra.mxu0 %v2538
    %2815 = vmatprep.subr.bf16.mxu0 %v2537
    %2816 = vmatpush1.bf16.msra.mxu0 %v2536
    %2817 = vmatprep.subr.bf16.mxu0 %v2567
    %2818 = vmatpush2.bf16.msra.mxu0 %v2566
    %2819 = vmatprep.subr.bf16.mxu0 %v2565
    %2820 = vmatpush2.bf16.msra.mxu0 %v2564
    %2821 = vmatprep.subr.bf16.mxu0 %v2563
    %2822 = vmatpush2.bf16.msra.mxu0 %v2562
    %2823 = vmatprep.subr.bf16.mxu0 %v2561
    %2824 = vmatpush2.bf16.msra.mxu0 %v2560
    %2825 = vmatprep.subr.bf16.mxu0 %v2559
    %2826 = vmatpush2.bf16.msra.mxu0 %v2558
    %2827 = vmatprep.subr.bf16.mxu0 %v2557
    %2828 = vmatpush2.bf16.msra.mxu0 %v2556
    %2829 = vmatprep.subr.bf16.mxu0 %v2555
    %2830 = vmatpush2.bf16.msra.mxu0 %v2554
    %2831 = vmatprep.subr.bf16.mxu0 %v2553
    %2832 = vmatpush2.bf16.msra.mxu0 %v2552
    %2833 = vmatprep.mubr.bf16.mxu0 %v1975
    %2834 = vmatmul.mubr.bf16.gmra.mxu0 %v1974
    %v2835 = vpop.f32.mrf.mxu0
    %v2836 = vadd.f32 %v2795, %v2835
    %v2837 = vpop.f32.mrf.mxu0
    %v2838 = vadd.f32 %v2797, %v2837
    %v2839 = vpop.f32.mrf.mxu0
    %v2840 = vpop.f32.mrf.mxu0
    %2841 = vdwg.mxu0
    %2842 = vmatprep.subr.bf16.mxu0 %v2583
    %2843 = vmatpush1.bf16.msra.mxu0 %v2582
    %2844 = vmatprep.subr.bf16.mxu0 %v2581
    %2845 = vmatpush1.bf16.msra.mxu0 %v2580
    %2846 = vmatprep.subr.bf16.mxu0 %v2579
    %2847 = vmatpush1.bf16.msra.mxu0 %v2578
    %2848 = vmatprep.subr.bf16.mxu0 %v2577
    %2849 = vmatpush1.bf16.msra.mxu0 %v2576
    %2850 = vmatprep.subr.bf16.mxu0 %v2575
    %2851 = vmatpush1.bf16.msra.mxu0 %v2574
    %2852 = vmatprep.subr.bf16.mxu0 %v2573
    %2853 = vmatpush1.bf16.msra.mxu0 %v2572
    %2854 = vmatprep.subr.bf16.mxu0 %v2571
    %2855 = vmatpush1.bf16.msra.mxu0 %v2570
    %2856 = vmatprep.subr.bf16.mxu0 %v2569
    %2857 = vmatpush1.bf16.msra.mxu0 %v2568
    %2858 = vmatprep.subr.bf16.mxu0 %v2599
    %2859 = vmatpush2.bf16.msra.mxu0 %v2598
    %2860 = vmatprep.subr.bf16.mxu0 %v2597
    %2861 = vmatpush2.bf16.msra.mxu0 %v2596
    %2862 = vmatprep.subr.bf16.mxu0 %v2595
    %2863 = vmatpush2.bf16.msra.mxu0 %v2594
    %2864 = vmatprep.subr.bf16.mxu0 %v2593
    %2865 = vmatpush2.bf16.msra.mxu0 %v2592
    %2866 = vmatprep.subr.bf16.mxu0 %v2591
    %2867 = vmatpush2.bf16.msra.mxu0 %v2590
    %2868 = vmatprep.subr.bf16.mxu0 %v2589
    %2869 = vmatpush2.bf16.msra.mxu0 %v2588
    %2870 = vmatprep.subr.bf16.mxu0 %v2587
    %2871 = vmatpush2.bf16.msra.mxu0 %v2586
    %2872 = vmatprep.subr.bf16.mxu0 %v2585
    %2873 = vmatpush2.bf16.msra.mxu0 %v2584
    %2874 = vmatprep.mubr.bf16.mxu0 %v1977
    %2875 = vmatmul.mubr.bf16.gmra.mxu0 %v1976
    %v2876 = vpop.f32.mrf.mxu0
    %v2877 = vadd.f32 %v2836, %v2876
    %v2878 = vpop.f32.mrf.mxu0
    %v2879 = vadd.f32 %v2838, %v2878
    %v2880 = vpop.f32.mrf.mxu0
    %v2881 = vpop.f32.mrf.mxu0
    %2882 = vdwg.mxu0
    %2883 = vmatprep.subr.bf16.mxu0 %v2615
    %2884 = vmatpush1.bf16.msra.mxu0 %v2614
    %2885 = vmatprep.subr.bf16.mxu0 %v2613
    %2886 = vmatpush1.bf16.msra.mxu0 %v2612
    %2887 = vmatprep.subr.bf16.mxu0 %v2611
    %2888 = vmatpush1.bf16.msra.mxu0 %v2610
    %2889 = vmatprep.subr.bf16.mxu0 %v2609
    %2890 = vmatpush1.bf16.msra.mxu0 %v2608
    %2891 = vmatprep.subr.bf16.mxu0 %v2607
    %2892 = vmatpush1.bf16.msra.mxu0 %v2606
    %2893 = vmatprep.subr.bf16.mxu0 %v2605
    %2894 = vmatpush1.bf16.msra.mxu0 %v2604
    %2895 = vmatprep.subr.bf16.mxu0 %v2603
    %2896 = vmatpush1.bf16.msra.mxu0 %v2602
    %2897 = vmatprep.subr.bf16.mxu0 %v2601
    %2898 = vmatpush1.bf16.msra.mxu0 %v2600
    %2899 = vmatprep.subr.bf16.mxu0 %v2631
    %2900 = vmatpush2.bf16.msra.mxu0 %v2630
    %2901 = vmatprep.subr.bf16.mxu0 %v2629
    %2902 = vmatpush2.bf16.msra.mxu0 %v2628
    %2903 = vmatprep.subr.bf16.mxu0 %v2627
    %2904 = vmatpush2.bf16.msra.mxu0 %v2626
    %2905 = vmatprep.subr.bf16.mxu0 %v2625
    %2906 = vmatpush2.bf16.msra.mxu0 %v2624
    %2907 = vmatprep.subr.bf16.mxu0 %v2623
    %2908 = vmatpush2.bf16.msra.mxu0 %v2622
    %2909 = vmatprep.subr.bf16.mxu0 %v2621
    %2910 = vmatpush2.bf16.msra.mxu0 %v2620
    %2911 = vmatprep.subr.bf16.mxu0 %v2619
    %2912 = vmatpush2.bf16.msra.mxu0 %v2618
    %2913 = vmatprep.subr.bf16.mxu0 %v2617
    %2914 = vmatpush2.bf16.msra.mxu0 %v2616
    %2915 = vmatprep.mubr.bf16.mxu0 %v1979
    %2916 = vmatmul.mubr.bf16.gmra.mxu0 %v1978
    %v2917 = vpop.f32.mrf.mxu0
    %v2918 = vadd.f32 %v2877, %v2917
    %v2919 = vpop.f32.mrf.mxu0
    %v2920 = vadd.f32 %v2879, %v2919
    %v2921 = vpop.f32.mrf.mxu0
    %v2922 = vpop.f32.mrf.mxu0
    %2923 = vdwg.mxu0
    %v2924 = vmax.f32 %v2918, 0.0
    %v2925 = vmax.f32 %v2920, 0.0
    %v2926 = vpack.c.bf16 %v2924, %v2924
    %v2927 = vpack.c.bf16 %v2925, %v2925
    %v2928 = vld [vmem:[%s5] sm:$0xf]
    %v2929 = vld [vmem:[%s5 + $0x4] sm:$0xf]
    %v2930 = vld [vmem:[%s5 + $0x8] sm:$0xf]
    %v2931 = vld [vmem:[%s5 + $0xc] sm:$0xf]
    %v2932 = vld [vmem:[%s5 + $0x10] sm:$0xf]
    %v2933 = vld [vmem:[%s5 + $0x14] sm:$0xf]
    %v2934 = vld [vmem:[%s5 + $0x18] sm:$0xf]
    %v2935 = vld [vmem:[%s5 + $0x1c] sm:$0xf]
    %v2936 = vld [vmem:[%s5 + $0x20] sm:$0xf]
    %v2937 = vld [vmem:[%s5 + $0x24] sm:$0xf]
    %v2938 = vld [vmem:[%s5 + $0x28] sm:$0xf]
    %v2939 = vld [vmem:[%s5 + $0x2c] sm:$0xf]
    %v2940 = vld [vmem:[%s5 + $0x30] sm:$0xf]
    %v2941 = vld [vmem:[%s5 + $0x34] sm:$0xf]
    %v2942 = vld [vmem:[%s5 + $0x38] sm:$0xf]
    %v2943 = vld [vmem:[%s5 + $0x3c] sm:$0xf]
    %v2944 = vld [vmem:[%s5 + $0x40] sm:$0xf]
    %v2945 = vld [vmem:[%s5 + $0x44] sm:$0xf]
    %v2946 = vld [vmem:[%s5 + $0x48] sm:$0xf]
    %v2947 = vld [vmem:[%s5 + $0x4c] sm:$0xf]
    %v2948 = vld [vmem:[%s5 + $0x50] sm:$0xf]
    %v2949 = vld [vmem:[%s5 + $0x54] sm:$0xf]
    %v2950 = vld [vmem:[%s5 + $0x58] sm:$0xf]
    %v2951 = vld [vmem:[%s5 + $0x5c] sm:$0xf]
    %v2952 = vld [vmem:[%s5 + $0x60] sm:$0xf]
    %v2953 = vld [vmem:[%s5 + $0x64] sm:$0xf]
    %v2954 = vld [vmem:[%s5 + $0x68] sm:$0xf]
    %v2955 = vld [vmem:[%s5 + $0x6c] sm:$0xf]
    %v2956 = vld [vmem:[%s5 + $0x70] sm:$0xf]
    %v2957 = vld [vmem:[%s5 + $0x74] sm:$0xf]
    %v2958 = vld [vmem:[%s5 + $0x78] sm:$0xf]
    %v2959 = vld [vmem:[%s5 + $0x7c] sm:$0xf]
    %v2960 = vld [vmem:[%s6] sm:$0x1]
    %v2962 = vlaneseq
    %v2963 = vshrl.u32 %v2962, 7
    %v2964 = vsub.s32 0, %v2963
    %v2965 = vrot.slane %v2960, %v2964
    %v2999 = vunpack.c.l.b16 %v2928
    %v3000 = vunpack.c.l.b16 %v2929
    %v3001 = vunpack.c.l.b16 %v2930
    %v3002 = vunpack.c.l.b16 %v2931
    %v3003 = vunpack.c.l.b16 %v2932
    %v3004 = vunpack.c.l.b16 %v2933
    %v3005 = vunpack.c.l.b16 %v2934
    %v3006 = vunpack.c.l.b16 %v2935
    %v3007 = vunpack.c.l.b16 %v2936
    %v3008 = vunpack.c.l.b16 %v2937
    %v3009 = vunpack.c.l.b16 %v2938
    %v3010 = vunpack.c.l.b16 %v2939
    %v3011 = vunpack.c.l.b16 %v2940
    %v3012 = vunpack.c.l.b16 %v2941
    %v3013 = vunpack.c.l.b16 %v2942
    %v3014 = vunpack.c.l.b16 %v2943
    %v3015 = vunpack.c.l.b16 %v2944
    %v3016 = vunpack.c.l.b16 %v2945
    %v3017 = vunpack.c.l.b16 %v2946
    %v3018 = vunpack.c.l.b16 %v2947
    %v3019 = vunpack.c.l.b16 %v2948
    %v3020 = vunpack.c.l.b16 %v2949
    %v3021 = vunpack.c.l.b16 %v2950
    %v3022 = vunpack.c.l.b16 %v2951
    %v3023 = vunpack.c.l.b16 %v2952
    %v3024 = vunpack.c.l.b16 %v2953
    %v3025 = vunpack.c.l.b16 %v2954
    %v3026 = vunpack.c.l.b16 %v2955
    %v3027 = vunpack.c.l.b16 %v2956
    %v3028 = vunpack.c.l.b16 %v2957
    %v3029 = vunpack.c.l.b16 %v2958
    %v3030 = vunpack.c.l.b16 %v2959
    %v3031 = vpack.c.b16 %v3000, %v2999
    %v3032 = vpack.c.b16 %v3002, %v3001
    %v3033 = vpack.c.b16 %v3004, %v3003
    %v3034 = vpack.c.b16 %v3006, %v3005
    %v3035 = vpack.c.b16 %v3008, %v3007
    %v3036 = vpack.c.b16 %v3010, %v3009
    %v3037 = vpack.c.b16 %v3012, %v3011
    %v3038 = vpack.c.b16 %v3014, %v3013
    %v3039 = vpack.c.b16 %v3016, %v3015
    %v3040 = vpack.c.b16 %v3018, %v3017
    %v3041 = vpack.c.b16 %v3020, %v3019
    %v3042 = vpack.c.b16 %v3022, %v3021
    %v3043 = vpack.c.b16 %v3024, %v3023
    %v3044 = vpack.c.b16 %v3026, %v3025
    %v3045 = vpack.c.b16 %v3028, %v3027
    %v3046 = vpack.c.b16 %v3030, %v3029
    %3063 = vmatprep.subr.bf16.mxu0 0
    %3064 = vmatpush1.bf16.msra.mxu0 %v3038
    %3065 = vmatprep.subr.bf16.mxu0 0
    %3066 = vmatpush1.bf16.msra.mxu0 %v3037
    %3067 = vmatprep.subr.bf16.mxu0 0
    %3068 = vmatpush1.bf16.msra.mxu0 %v3036
    %3069 = vmatprep.subr.bf16.mxu0 0
    %3070 = vmatpush1.bf16.msra.mxu0 %v3035
    %3071 = vmatprep.subr.bf16.mxu0 0
    %3072 = vmatpush1.bf16.msra.mxu0 %v3034
    %3073 = vmatprep.subr.bf16.mxu0 0
    %3074 = vmatpush1.bf16.msra.mxu0 %v3033
    %3075 = vmatprep.subr.bf16.mxu0 0
    %3076 = vmatpush1.bf16.msra.mxu0 %v3032
    %3077 = vmatprep.subr.bf16.mxu0 0
    %3078 = vmatpush1.bf16.msra.mxu0 %v3031
    %3079 = vmatprep.subr.bf16.mxu0 0
    %3080 = vmatpush2.bf16.msra.mxu0 %v3046
    %3081 = vmatprep.subr.bf16.mxu0 0
    %3082 = vmatpush2.bf16.msra.mxu0 %v3045
    %3083 = vmatprep.subr.bf16.mxu0 0
    %3084 = vmatpush2.bf16.msra.mxu0 %v3044
    %3085 = vmatprep.subr.bf16.mxu0 0
    %3086 = vmatpush2.bf16.msra.mxu0 %v3043
    %3087 = vmatprep.subr.bf16.mxu0 0
    %3088 = vmatpush2.bf16.msra.mxu0 %v3042
    %3089 = vmatprep.subr.bf16.mxu0 0
    %3090 = vmatpush2.bf16.msra.mxu0 %v3041
    %3091 = vmatprep.subr.bf16.mxu0 0
    %3092 = vmatpush2.bf16.msra.mxu0 %v3040
    %3093 = vmatprep.subr.bf16.mxu0 0
    %3094 = vmatpush2.bf16.msra.mxu0 %v3039
    %3095 = vmatprep.mubr.bf16.mxu0 %v2927
    %3096 = vmatmul.mubr.bf16.gmra.mxu0 %v2926
    %v3097 = vpop.f32.mrf.mxu0
    %v3098 = vadd.f32 %v2965, %v3097
    %v3099 = vpop.f32.mrf.mxu0
    %v3100 = vpop.f32.mrf.mxu0
    %v3101 = vpop.f32.mrf.mxu0
    %3102 = vdwg.mxu0
    %vm3103 = vcmask 74752
    %3104 = vst.msk [vmem:[#allocation2] sm:$0x3] %vm3103, %v3098
    // Predicated region
    $region30: #{vgg_forward.5} parent=1 // pred_check
      _
    $region31: #{vgg_forward.5} parent=1 // pred_check_branch
      %3106 = sbr.rel (0) target = $region33
    $region32: #{vgg_forward.5} parent=1 // pred_region
      %s3108 = ssub.s32 32, 32
      %3109 = vsyncadd [#allocation3], %s3108
      %s3111 = sshll.u32 [#allocation2], 4
      %s3112 = int_to_ptr.vmem [resolvable:$true] %s3111
      %3114 = dma.vmem_to_hbm [thread:$0]  %s3112, 32, %s7, [#allocation3]
    $region33: #{vgg_forward.5} parent=1 // pred_fallthru
      _
    // Predicated region
    $region34: #{vgg_forward.5} parent=1 // pred_check
      _
    $region35: #{vgg_forward.5} parent=1 // pred_check_branch
      %3116 = sbr.rel (0) target = $region37
    $region36: #{vgg_forward.5} parent=1 // pred_region
      %3117 = dma.done [#allocation3], 32
    $region37: #{vgg_forward.5} parent=1 // pred_fallthru
      _
    %3118 = vsyncpa [#allocation3], 1

</llo_original>
